<compile_context>
chip_gen: v7x
topology: tpu7x:2x2x1
jax: 0.10.0
libtpu: 0.0.40
codegen_flags: <defaults>
</compile_context>

<pallas_src>
import jax
import jax.numpy as jnp
from jax.experimental import pallas as pl
from jax.experimental.pallas import tpu as pltpu


def _round_up(x, m):
    return ((x + m - 1) // m) * m


def _pick_block_n(n):
    """Largest multiple-of-8 divisor of n that is <= 512, preferring >= 2 blocks
    so the 'parallel' grid axis feeds both TensorCores on v7x."""
    cands = [b for b in range(8, min(512, n) + 1, 8) if n % b == 0]
    if not cands:
        return n
    two_plus = [b for b in cands if n // b >= 2]
    return max(two_plus) if two_plus else max(cands)


def _ndp_kernel(xproj_ref, w_hh_ref, b_hn_ref, w_out_ref, b_out_ref, triu_ref,
                out_ref):
    """Shared Graph-GRU recurrence + linear head + softmax + cumsum + clamp.

    xproj_ref : (T, bn, 3G)  pre-projected, BN-applied, gate-padded inputs
    w_hh_ref  : (G, 3G)      hidden weights packed [r|z|n], gate-padded
    b_hn_ref  : (1, G)       hidden bias of the 'new' gate (stays inside r*(...))
    w_out_ref : (G, OUT)     logit head weight, padded to 128 output lanes
    b_out_ref : (1, OUT)     logit head bias; padded lanes hold -1e9
    triu_ref  : (OUT, OUT)   upper-triangular ones (cumsum as one MXU push)
    out_ref   : (bn, OUT)    clamped cumulative probabilities (lane-dense)
    """
    T, bn, three_g = xproj_ref.shape
    G = three_g // 3
    f32 = jnp.float32

    w_hh = w_hh_ref[...]                                       # (G, 3G)
    b_hn = jnp.broadcast_to(b_hn_ref[...], (bn, G))            # hoisted broadcast

    # ---- Serial GRU recurrence: one (bn,G)@(G,3G) MXU matmul per step. ------
    h = jnp.zeros((bn, G), dtype=f32)
    for t in range(T):                                         # T is small & static
        gx = xproj_ref[t]                                      # (bn, 3G) ref load
        gh = jnp.dot(h, w_hh, preferred_element_type=f32)      # (bn, 3G)
        rz = jax.nn.sigmoid(gx[:, :2 * G] + gh[:, :2 * G])     # one EUP pass for r,z
        r = rz[:, :G]
        z = rz[:, G:]
        n = jnp.tanh(gx[:, 2 * G:] + r * (gh[:, 2 * G:] + b_hn))
        h = n + z * (h - n)                                    # == (1-z)*n + z*h

    # ---- Final linear head + softmax(dim=1) over lane-dense padded classes. --
    logits = jnp.dot(h, w_out_ref[...],
                     preferred_element_type=f32) + b_out_ref[...]   # (bn, OUT)
    m = jnp.max(logits, axis=1, keepdims=True)
    e = jnp.exp(logits - m)                                    # padded lanes -> 0
    p = e / jnp.sum(e, axis=1, keepdims=True)

    # ---- cumsum(dim=1): single (bn,OUT)@(OUT,OUT) triangular MXU matmul. -----
    cs = jnp.dot(p, triu_ref[...], preferred_element_type=f32)

    eps = 5e-08
    out_ref[...] = jnp.clip(cs, eps, 1.0 - eps)


def ndp_forward(x, gamma, beta, w_ih, w_hh, b_ih, b_hh, w_out, b_out,
                *, block_n=None):
    """Forward pass.

    x      : (T, N, F)   window-major input (layout the PyTorch module receives)
    gamma  : (T*F,)      BatchNorm weight        beta : (T*F,) BatchNorm bias
    w_ih   : (3, F, H)   GRU input weights  (gate order: reset, update, new)
    w_hh   : (3, H, H)   GRU hidden weights
    b_ih   : (3, H)      GRU input biases        b_hh : (3, H) GRU hidden biases
    w_out  : (H, C)      logit_f weight          b_out: (C,)   logit_f bias
    Returns (N, C) clamped cumulative class probabilities.
    """
    T, N, F_ = x.shape
    H = w_hh.shape[2]
    C = w_out.shape[1]
    TF = T * F_
    f32 = jnp.float32

    G = _round_up(H, 128)          # per-gate lane width (lane-aligned slices)
    OUT = _round_up(C, 128)        # lane-dense output width

    if block_n is None:
        block_n = _pick_block_n(N)
    assert N % block_n == 0 and (block_n == N or block_n % 8 == 0)
    nblocks = N // block_n

    # ---- layout + training-mode BatchNorm (two-pass stats), fused by XLA -----
    x2d = jnp.transpose(x, (1, 0, 2)).reshape(N, TF).astype(f32)
    mean = jnp.mean(x2d, axis=0, keepdims=True)
    var = jnp.mean(jnp.square(x2d - mean), axis=0, keepdims=True)  # biased var
    scale = gamma.reshape(1, TF).astype(f32) * jax.lax.rsqrt(var + 1e-5)
    shift = beta.reshape(1, TF).astype(f32) - mean * scale
    xn = (x2d * scale + shift).reshape(N, T, F_)

    # ---- gate-padded weight packing (done once per call) ---------------------
    def pad_cols(w, width):
        return jnp.pad(w.astype(f32), ((0, 0), (0, width - w.shape[1])))

    w_ih_p = jnp.concatenate([pad_cols(w_ih[g], G) for g in range(3)],
                             axis=1)                                   # (F, 3G)
    b_gate = jnp.concatenate([
        jnp.pad((b_ih[0] + b_hh[0]).astype(f32), (0, G - H)),          # r: pre-summed
        jnp.pad((b_ih[1] + b_hh[1]).astype(f32), (0, G - H)),          # z: pre-summed
        jnp.pad(b_ih[2].astype(f32), (0, G - H)),                      # n: input side only
    ])                                                                 # (3G,)

    w_hh_p = jnp.concatenate(
        [jnp.pad(w_hh[g].astype(f32), ((0, G - H), (0, G - H))) for g in range(3)],
        axis=1)                                                        # (G, 3G)
    b_hn = jnp.pad(b_hh[2].astype(f32), (0, G - H)).reshape(1, G)

    w_out_p = jnp.pad(w_out.astype(f32), ((0, G - H), (0, OUT - C)))   # (G, OUT)
    b_out_p = jnp.concatenate(
        [b_out.astype(f32), jnp.full((OUT - C,), -1e9, dtype=f32)]).reshape(1, OUT)
    triu = jnp.triu(jnp.ones((OUT, OUT), dtype=f32))                   # cumsum matrix

    # ---- hoisted input-side GRU projection for ALL timesteps (XLA, one pass) -
    # Lane-dense (T, N, 3G) slab becomes the kernel's blocked input; per-step
    # slices inside the kernel are leading-axis ref loads (no spills/extracts).
    xproj = jnp.einsum('ntf,fg->tng', xn, w_ih_p) + b_gate             # (T, N, 3G)

    out_pad = pl.pallas_call(
        _ndp_kernel,
        out_shape=jax.ShapeDtypeStruct((N, OUT), f32),
        grid=(nblocks,),
        in_specs=[
            pl.BlockSpec((T, block_n, 3 * G), lambda i: (0, i, 0)),
            pl.BlockSpec((G, 3 * G), lambda i: (0, 0)),
            pl.BlockSpec((1, G), lambda i: (0, 0)),
            pl.BlockSpec((G, OUT), lambda i: (0, 0)),
            pl.BlockSpec((1, OUT), lambda i: (0, 0)),
            pl.BlockSpec((OUT, OUT), lambda i: (0, 0)),
        ],
        out_specs=pl.BlockSpec((block_n, OUT), lambda i: (i, 0)),
        compiler_params=pltpu.CompilerParams(
            dimension_semantics=("parallel",)),
    )(xproj, w_hh_p, b_hn, w_out_p, b_out_p, triu)

    return out_pad[:, :C]


ndp_forward_jit = jax.jit(ndp_forward, static_argnames=("block_n",))


def _ndp_reference(x, gamma, beta, w_ih, w_hh, b_ih, b_hh, w_out, b_out):
    """Pure-jnp reference mirroring the PyTorch module's forward."""
    T, N, F_ = x.shape
    H = w_hh.shape[2]
    x2d = jnp.transpose(x, (1, 0, 2)).reshape(N, T * F_)
    mean = jnp.mean(x2d, axis=0, keepdims=True)
    var = jnp.mean((x2d - mean) ** 2, axis=0, keepdims=True)
    xn = (x2d - mean) / jnp.sqrt(var + 1e-5) * gamma + beta
    xn = xn.reshape(N, T, F_).transpose(1, 0, 2)
    h = jnp.zeros((N, H), jnp.float32)
    for t in range(T):
        xt = xn[t]
        r = jax.nn.sigmoid(xt @ w_ih[0] + b_ih[0] + h @ w_hh[0] + b_hh[0])
        z = jax.nn.sigmoid(xt @ w_ih[1] + b_ih[1] + h @ w_hh[1] + b_hh[1])
        n = jnp.tanh(xt @ w_ih[2] + b_ih[2] + r * (h @ w_hh[2] + b_hh[2]))
        h = (1.0 - z) * n + z * h
    logits = h @ w_out + b_out
    p = jax.nn.softmax(logits, axis=1)
    cs = jnp.cumsum(p, axis=1)
    return jnp.clip(cs, 5e-08, 1.0 - 5e-08)


if __name__ == "__main__":
    # window_size T=8, num_stock N=64, feature_size F=4,
    # lstm_num_units H=32, cum_labels+1 C=8
    T, N, F, H, C = 8, 64, 4, 32, 8

    key = jax.random.PRNGKey(0)
    ks = jax.random.split(key, 9)

    x = jax.random.normal(ks[0], (T, N, F), dtype=jnp.float32)
    gamma = 1.0 + 0.1 * jax.random.normal(ks[1], (T * F,), dtype=jnp.float32)
    beta = 0.1 * jax.random.normal(ks[2], (T * F,), dtype=jnp.float32)
    # GRU params (gates packed along leading axis: [reset, update, new])
    w_ih = 0.1 * jax.random.normal(ks[3], (3, F, H), dtype=jnp.float32)
    w_hh = 0.1 * jax.random.normal(ks[4], (3, H, H), dtype=jnp.float32)
    b_ih = 0.1 * jax.random.normal(ks[5], (3, H), dtype=jnp.float32)
    b_hh = 0.1 * jax.random.normal(ks[6], (3, H), dtype=jnp.float32)
    w_out = 0.1 * jax.random.normal(ks[7], (H, C), dtype=jnp.float32)
    b_out = 0.1 * jax.random.normal(ks[8], (C,), dtype=jnp.float32)

    # default block_n picks 32 -> 2 grid blocks (exercises grid + v7x megacore)
    out = ndp_forward_jit(x, gamma, beta, w_ih, w_hh, b_ih, b_hh, w_out, b_out)
    jax.block_until_ready(out)

    ref = _ndp_reference(x, gamma, beta, w_ih, w_hh, b_ih, b_hh, w_out, b_out)
    max_err = float(jnp.max(jnp.abs(out - ref)))

    assert out.shape == (N, C)
    assert bool(jnp.all(jnp.isfinite(out)))
    assert max_err < 5e-4, f"mismatch vs reference: {max_err}"
    print("KERNEL_OK")
</pallas_src>

<mosaic_0001>
module attributes {stable_mosaic.version = 11 : i64} {
  func.func @_ndp_kernel(%arg0: i32, %arg1: memref<8x32x384xf32, #tpu.memory_space<vmem>>, %arg2: memref<128x384xf32, #tpu.memory_space<vmem>>, %arg3: memref<1x128xf32, #tpu.memory_space<vmem>>, %arg4: memref<128x128xf32, #tpu.memory_space<vmem>>, %arg5: memref<1x128xf32, #tpu.memory_space<vmem>>, %arg6: memref<128x128xf32, #tpu.memory_space<vmem>>, %arg7: memref<32x128xf32, #tpu.memory_space<vmem>>) attributes {dimension_semantics = [#tpu.dimension_semantics<parallel>], iteration_bounds = array<i64: 2>, scalar_prefetch = 0 : i64, scratch_operands = 0 : i64, tpu.core_type = #tpu.core_type<tc>, window_params = [{transform_indices = @transform_0, window_bounds = array<i64: 8, 32, 384>}, {pipeline_mode = #tpu.pipeline_mode<synchronous>, transform_indices = @transform_1, window_bounds = array<i64: 128, 384>}, {pipeline_mode = #tpu.pipeline_mode<synchronous>, transform_indices = @transform_2, window_bounds = array<i64: 1, 128>}, {pipeline_mode = #tpu.pipeline_mode<synchronous>, transform_indices = @transform_3, window_bounds = array<i64: 128, 128>}, {pipeline_mode = #tpu.pipeline_mode<synchronous>, transform_indices = @transform_4, window_bounds = array<i64: 1, 128>}, {pipeline_mode = #tpu.pipeline_mode<synchronous>, transform_indices = @transform_5, window_bounds = array<i64: 128, 128>}, {transform_indices = @transform_6, window_bounds = array<i64: 32, 128>}]} {
    %c0 = arith.constant 0 : index
    %c0_0 = arith.constant 0 : index
    %0 = vector.load %arg2[%c0, %c0_0] : memref<128x384xf32, #tpu.memory_space<vmem>>, vector<128x384xf32>
    %c0_1 = arith.constant 0 : index
    %c0_2 = arith.constant 0 : index
    %1 = vector.load %arg3[%c0_1, %c0_2] : memref<1x128xf32, #tpu.memory_space<vmem>>, vector<1x128xf32>
    %2 = vector.shape_cast %1 : vector<1x128xf32> to vector<1x128xf32>
    %3 = vector.broadcast %2 : vector<1x128xf32> to vector<32x128xf32>
    %cst = arith.constant 0.000000e+00 : f32
    %4 = vector.broadcast %cst : f32 to vector<32x128xf32>
    %c0_3 = arith.constant 0 : index
    %c0_4 = arith.constant 0 : index
    %c0_5 = arith.constant 0 : index
    %5 = vector.load %arg1[%c0_3, %c0_4, %c0_5] : memref<8x32x384xf32, #tpu.memory_space<vmem>>, vector<1x32x384xf32>
    %6 = vector.shape_cast %5 : vector<1x32x384xf32> to vector<32x384xf32>
    %cst_6 = arith.constant dense<0.000000e+00> : vector<32x384xf32>
    %7 = tpu.matmul %4, %0, %cst_6 {dimension_numbers = #tpu.dot_dimension_numbers<[1], [0], [0], [1], [0, 0, 1, 1], [], []>} : vector<32x128xf32>, vector<128x384xf32>, vector<32x384xf32> -> vector<32x384xf32>
    %8 = vector.extract_strided_slice %6 {offsets = [0, 0], sizes = [32, 256], strides = [1, 1]} : vector<32x384xf32> to vector<32x256xf32>
    %9 = vector.extract_strided_slice %7 {offsets = [0, 0], sizes = [32, 256], strides = [1, 1]} : vector<32x384xf32> to vector<32x256xf32>
    %10 = arith.addf %8, %9 : vector<32x256xf32>
    %11 = arith.negf %10 : vector<32x256xf32>
    %12 = math.exp %11 : vector<32x256xf32>
    %cst_7 = arith.constant 1.000000e+00 : f32
    %13 = vector.broadcast %cst_7 : f32 to vector<32x256xf32>
    %14 = arith.addf %13, %12 : vector<32x256xf32>
    %15 = arith.divf %13, %14 : vector<32x256xf32>
    %16 = vector.extract_strided_slice %15 {offsets = [0, 0], sizes = [32, 128], strides = [1, 1]} : vector<32x256xf32> to vector<32x128xf32>
    %17 = vector.extract_strided_slice %15 {offsets = [0, 128], sizes = [32, 128], strides = [1, 1]} : vector<32x256xf32> to vector<32x128xf32>
    %18 = vector.extract_strided_slice %6 {offsets = [0, 256], sizes = [32, 128], strides = [1, 1]} : vector<32x384xf32> to vector<32x128xf32>
    %19 = vector.extract_strided_slice %7 {offsets = [0, 256], sizes = [32, 128], strides = [1, 1]} : vector<32x384xf32> to vector<32x128xf32>
    %20 = arith.addf %19, %3 : vector<32x128xf32>
    %21 = arith.mulf %16, %20 : vector<32x128xf32>
    %22 = arith.addf %18, %21 : vector<32x128xf32>
    %23 = math.tanh %22 : vector<32x128xf32>
    %24 = arith.subf %4, %23 : vector<32x128xf32>
    %25 = arith.mulf %17, %24 : vector<32x128xf32>
    %26 = arith.addf %23, %25 : vector<32x128xf32>
    %c1 = arith.constant 1 : index
    %c0_8 = arith.constant 0 : index
    %c0_9 = arith.constant 0 : index
    %27 = vector.load %arg1[%c1, %c0_8, %c0_9] : memref<8x32x384xf32, #tpu.memory_space<vmem>>, vector<1x32x384xf32>
    %28 = vector.shape_cast %27 : vector<1x32x384xf32> to vector<32x384xf32>
    %cst_10 = arith.constant dense<0.000000e+00> : vector<32x384xf32>
    %29 = tpu.matmul %26, %0, %cst_10 {dimension_numbers = #tpu.dot_dimension_numbers<[1], [0], [0], [1], [0, 0, 1, 1], [], []>} : vector<32x128xf32>, vector<128x384xf32>, vector<32x384xf32> -> vector<32x384xf32>
    %30 = vector.extract_strided_slice %28 {offsets = [0, 0], sizes = [32, 256], strides = [1, 1]} : vector<32x384xf32> to vector<32x256xf32>
    %31 = vector.extract_strided_slice %29 {offsets = [0, 0], sizes = [32, 256], strides = [1, 1]} : vector<32x384xf32> to vector<32x256xf32>
    %32 = arith.addf %30, %31 : vector<32x256xf32>
    %33 = arith.negf %32 : vector<32x256xf32>
    %34 = math.exp %33 : vector<32x256xf32>
    %cst_11 = arith.constant 1.000000e+00 : f32
    %35 = vector.broadcast %cst_11 : f32 to vector<32x256xf32>
    %36 = arith.addf %35, %34 : vector<32x256xf32>
    %37 = arith.divf %35, %36 : vector<32x256xf32>
    %38 = vector.extract_strided_slice %37 {offsets = [0, 0], sizes = [32, 128], strides = [1, 1]} : vector<32x256xf32> to vector<32x128xf32>
    %39 = vector.extract_strided_slice %37 {offsets = [0, 128], sizes = [32, 128], strides = [1, 1]} : vector<32x256xf32> to vector<32x128xf32>
    %40 = vector.extract_strided_slice %28 {offsets = [0, 256], sizes = [32, 128], strides = [1, 1]} : vector<32x384xf32> to vector<32x128xf32>
    %41 = vector.extract_strided_slice %29 {offsets = [0, 256], sizes = [32, 128], strides = [1, 1]} : vector<32x384xf32> to vector<32x128xf32>
    %42 = arith.addf %41, %3 : vector<32x128xf32>
    %43 = arith.mulf %38, %42 : vector<32x128xf32>
    %44 = arith.addf %40, %43 : vector<32x128xf32>
    %45 = math.tanh %44 : vector<32x128xf32>
    %46 = arith.subf %26, %45 : vector<32x128xf32>
    %47 = arith.mulf %39, %46 : vector<32x128xf32>
    %48 = arith.addf %45, %47 : vector<32x128xf32>
    %c2 = arith.constant 2 : index
    %c0_12 = arith.constant 0 : index
    %c0_13 = arith.constant 0 : index
    %49 = vector.load %arg1[%c2, %c0_12, %c0_13] : memref<8x32x384xf32, #tpu.memory_space<vmem>>, vector<1x32x384xf32>
    %50 = vector.shape_cast %49 : vector<1x32x384xf32> to vector<32x384xf32>
    %cst_14 = arith.constant dense<0.000000e+00> : vector<32x384xf32>
    %51 = tpu.matmul %48, %0, %cst_14 {dimension_numbers = #tpu.dot_dimension_numbers<[1], [0], [0], [1], [0, 0, 1, 1], [], []>} : vector<32x128xf32>, vector<128x384xf32>, vector<32x384xf32> -> vector<32x384xf32>
    %52 = vector.extract_strided_slice %50 {offsets = [0, 0], sizes = [32, 256], strides = [1, 1]} : vector<32x384xf32> to vector<32x256xf32>
    %53 = vector.extract_strided_slice %51 {offsets = [0, 0], sizes = [32, 256], strides = [1, 1]} : vector<32x384xf32> to vector<32x256xf32>
    %54 = arith.addf %52, %53 : vector<32x256xf32>
    %55 = arith.negf %54 : vector<32x256xf32>
    %56 = math.exp %55 : vector<32x256xf32>
    %cst_15 = arith.constant 1.000000e+00 : f32
    %57 = vector.broadcast %cst_15 : f32 to vector<32x256xf32>
    %58 = arith.addf %57, %56 : vector<32x256xf32>
    %59 = arith.divf %57, %58 : vector<32x256xf32>
    %60 = vector.extract_strided_slice %59 {offsets = [0, 0], sizes = [32, 128], strides = [1, 1]} : vector<32x256xf32> to vector<32x128xf32>
    %61 = vector.extract_strided_slice %59 {offsets = [0, 128], sizes = [32, 128], strides = [1, 1]} : vector<32x256xf32> to vector<32x128xf32>
    %62 = vector.extract_strided_slice %50 {offsets = [0, 256], sizes = [32, 128], strides = [1, 1]} : vector<32x384xf32> to vector<32x128xf32>
    %63 = vector.extract_strided_slice %51 {offsets = [0, 256], sizes = [32, 128], strides = [1, 1]} : vector<32x384xf32> to vector<32x128xf32>
    %64 = arith.addf %63, %3 : vector<32x128xf32>
    %65 = arith.mulf %60, %64 : vector<32x128xf32>
    %66 = arith.addf %62, %65 : vector<32x128xf32>
    %67 = math.tanh %66 : vector<32x128xf32>
    %68 = arith.subf %48, %67 : vector<32x128xf32>
    %69 = arith.mulf %61, %68 : vector<32x128xf32>
    %70 = arith.addf %67, %69 : vector<32x128xf32>
    %c3 = arith.constant 3 : index
    %c0_16 = arith.constant 0 : index
    %c0_17 = arith.constant 0 : index
    %71 = vector.load %arg1[%c3, %c0_16, %c0_17] : memref<8x32x384xf32, #tpu.memory_space<vmem>>, vector<1x32x384xf32>
    %72 = vector.shape_cast %71 : vector<1x32x384xf32> to vector<32x384xf32>
    %cst_18 = arith.constant dense<0.000000e+00> : vector<32x384xf32>
    %73 = tpu.matmul %70, %0, %cst_18 {dimension_numbers = #tpu.dot_dimension_numbers<[1], [0], [0], [1], [0, 0, 1, 1], [], []>} : vector<32x128xf32>, vector<128x384xf32>, vector<32x384xf32> -> vector<32x384xf32>
    %74 = vector.extract_strided_slice %72 {offsets = [0, 0], sizes = [32, 256], strides = [1, 1]} : vector<32x384xf32> to vector<32x256xf32>
    %75 = vector.extract_strided_slice %73 {offsets = [0, 0], sizes = [32, 256], strides = [1, 1]} : vector<32x384xf32> to vector<32x256xf32>
    %76 = arith.addf %74, %75 : vector<32x256xf32>
    %77 = arith.negf %76 : vector<32x256xf32>
    %78 = math.exp %77 : vector<32x256xf32>
    %cst_19 = arith.constant 1.000000e+00 : f32
    %79 = vector.broadcast %cst_19 : f32 to vector<32x256xf32>
    %80 = arith.addf %79, %78 : vector<32x256xf32>
    %81 = arith.divf %79, %80 : vector<32x256xf32>
    %82 = vector.extract_strided_slice %81 {offsets = [0, 0], sizes = [32, 128], strides = [1, 1]} : vector<32x256xf32> to vector<32x128xf32>
    %83 = vector.extract_strided_slice %81 {offsets = [0, 128], sizes = [32, 128], strides = [1, 1]} : vector<32x256xf32> to vector<32x128xf32>
    %84 = vector.extract_strided_slice %72 {offsets = [0, 256], sizes = [32, 128], strides = [1, 1]} : vector<32x384xf32> to vector<32x128xf32>
    %85 = vector.extract_strided_slice %73 {offsets = [0, 256], sizes = [32, 128], strides = [1, 1]} : vector<32x384xf32> to vector<32x128xf32>
    %86 = arith.addf %85, %3 : vector<32x128xf32>
    %87 = arith.mulf %82, %86 : vector<32x128xf32>
    %88 = arith.addf %84, %87 : vector<32x128xf32>
    %89 = math.tanh %88 : vector<32x128xf32>
    %90 = arith.subf %70, %89 : vector<32x128xf32>
    %91 = arith.mulf %83, %90 : vector<32x128xf32>
    %92 = arith.addf %89, %91 : vector<32x128xf32>
    %c4 = arith.constant 4 : index
    %c0_20 = arith.constant 0 : index
    %c0_21 = arith.constant 0 : index
    %93 = vector.load %arg1[%c4, %c0_20, %c0_21] : memref<8x32x384xf32, #tpu.memory_space<vmem>>, vector<1x32x384xf32>
    %94 = vector.shape_cast %93 : vector<1x32x384xf32> to vector<32x384xf32>
    %cst_22 = arith.constant dense<0.000000e+00> : vector<32x384xf32>
    %95 = tpu.matmul %92, %0, %cst_22 {dimension_numbers = #tpu.dot_dimension_numbers<[1], [0], [0], [1], [0, 0, 1, 1], [], []>} : vector<32x128xf32>, vector<128x384xf32>, vector<32x384xf32> -> vector<32x384xf32>
    %96 = vector.extract_strided_slice %94 {offsets = [0, 0], sizes = [32, 256], strides = [1, 1]} : vector<32x384xf32> to vector<32x256xf32>
    %97 = vector.extract_strided_slice %95 {offsets = [0, 0], sizes = [32, 256], strides = [1, 1]} : vector<32x384xf32> to vector<32x256xf32>
    %98 = arith.addf %96, %97 : vector<32x256xf32>
    %99 = arith.negf %98 : vector<32x256xf32>
    %100 = math.exp %99 : vector<32x256xf32>
    %cst_23 = arith.constant 1.000000e+00 : f32
    %101 = vector.broadcast %cst_23 : f32 to vector<32x256xf32>
    %102 = arith.addf %101, %100 : vector<32x256xf32>
    %103 = arith.divf %101, %102 : vector<32x256xf32>
    %104 = vector.extract_strided_slice %103 {offsets = [0, 0], sizes = [32, 128], strides = [1, 1]} : vector<32x256xf32> to vector<32x128xf32>
    %105 = vector.extract_strided_slice %103 {offsets = [0, 128], sizes = [32, 128], strides = [1, 1]} : vector<32x256xf32> to vector<32x128xf32>
    %106 = vector.extract_strided_slice %94 {offsets = [0, 256], sizes = [32, 128], strides = [1, 1]} : vector<32x384xf32> to vector<32x128xf32>
    %107 = vector.extract_strided_slice %95 {offsets = [0, 256], sizes = [32, 128], strides = [1, 1]} : vector<32x384xf32> to vector<32x128xf32>
    %108 = arith.addf %107, %3 : vector<32x128xf32>
    %109 = arith.mulf %104, %108 : vector<32x128xf32>
    %110 = arith.addf %106, %109 : vector<32x128xf32>
    %111 = math.tanh %110 : vector<32x128xf32>
    %112 = arith.subf %92, %111 : vector<32x128xf32>
    %113 = arith.mulf %105, %112 : vector<32x128xf32>
    %114 = arith.addf %111, %113 : vector<32x128xf32>
    %c5 = arith.constant 5 : index
    %c0_24 = arith.constant 0 : index
    %c0_25 = arith.constant 0 : index
    %115 = vector.load %arg1[%c5, %c0_24, %c0_25] : memref<8x32x384xf32, #tpu.memory_space<vmem>>, vector<1x32x384xf32>
    %116 = vector.shape_cast %115 : vector<1x32x384xf32> to vector<32x384xf32>
    %cst_26 = arith.constant dense<0.000000e+00> : vector<32x384xf32>
    %117 = tpu.matmul %114, %0, %cst_26 {dimension_numbers = #tpu.dot_dimension_numbers<[1], [0], [0], [1], [0, 0, 1, 1], [], []>} : vector<32x128xf32>, vector<128x384xf32>, vector<32x384xf32> -> vector<32x384xf32>
    %118 = vector.extract_strided_slice %116 {offsets = [0, 0], sizes = [32, 256], strides = [1, 1]} : vector<32x384xf32> to vector<32x256xf32>
    %119 = vector.extract_strided_slice %117 {offsets = [0, 0], sizes = [32, 256], strides = [1, 1]} : vector<32x384xf32> to vector<32x256xf32>
    %120 = arith.addf %118, %119 : vector<32x256xf32>
    %121 = arith.negf %120 : vector<32x256xf32>
    %122 = math.exp %121 : vector<32x256xf32>
    %cst_27 = arith.constant 1.000000e+00 : f32
    %123 = vector.broadcast %cst_27 : f32 to vector<32x256xf32>
    %124 = arith.addf %123, %122 : vector<32x256xf32>
    %125 = arith.divf %123, %124 : vector<32x256xf32>
    %126 = vector.extract_strided_slice %125 {offsets = [0, 0], sizes = [32, 128], strides = [1, 1]} : vector<32x256xf32> to vector<32x128xf32>
    %127 = vector.extract_strided_slice %125 {offsets = [0, 128], sizes = [32, 128], strides = [1, 1]} : vector<32x256xf32> to vector<32x128xf32>
    %128 = vector.extract_strided_slice %116 {offsets = [0, 256], sizes = [32, 128], strides = [1, 1]} : vector<32x384xf32> to vector<32x128xf32>
    %129 = vector.extract_strided_slice %117 {offsets = [0, 256], sizes = [32, 128], strides = [1, 1]} : vector<32x384xf32> to vector<32x128xf32>
    %130 = arith.addf %129, %3 : vector<32x128xf32>
    %131 = arith.mulf %126, %130 : vector<32x128xf32>
    %132 = arith.addf %128, %131 : vector<32x128xf32>
    %133 = math.tanh %132 : vector<32x128xf32>
    %134 = arith.subf %114, %133 : vector<32x128xf32>
    %135 = arith.mulf %127, %134 : vector<32x128xf32>
    %136 = arith.addf %133, %135 : vector<32x128xf32>
    %c6 = arith.constant 6 : index
    %c0_28 = arith.constant 0 : index
    %c0_29 = arith.constant 0 : index
    %137 = vector.load %arg1[%c6, %c0_28, %c0_29] : memref<8x32x384xf32, #tpu.memory_space<vmem>>, vector<1x32x384xf32>
    %138 = vector.shape_cast %137 : vector<1x32x384xf32> to vector<32x384xf32>
    %cst_30 = arith.constant dense<0.000000e+00> : vector<32x384xf32>
    %139 = tpu.matmul %136, %0, %cst_30 {dimension_numbers = #tpu.dot_dimension_numbers<[1], [0], [0], [1], [0, 0, 1, 1], [], []>} : vector<32x128xf32>, vector<128x384xf32>, vector<32x384xf32> -> vector<32x384xf32>
    %140 = vector.extract_strided_slice %138 {offsets = [0, 0], sizes = [32, 256], strides = [1, 1]} : vector<32x384xf32> to vector<32x256xf32>
    %141 = vector.extract_strided_slice %139 {offsets = [0, 0], sizes = [32, 256], strides = [1, 1]} : vector<32x384xf32> to vector<32x256xf32>
    %142 = arith.addf %140, %141 : vector<32x256xf32>
    %143 = arith.negf %142 : vector<32x256xf32>
    %144 = math.exp %143 : vector<32x256xf32>
    %cst_31 = arith.constant 1.000000e+00 : f32
    %145 = vector.broadcast %cst_31 : f32 to vector<32x256xf32>
    %146 = arith.addf %145, %144 : vector<32x256xf32>
    %147 = arith.divf %145, %146 : vector<32x256xf32>
    %148 = vector.extract_strided_slice %147 {offsets = [0, 0], sizes = [32, 128], strides = [1, 1]} : vector<32x256xf32> to vector<32x128xf32>
    %149 = vector.extract_strided_slice %147 {offsets = [0, 128], sizes = [32, 128], strides = [1, 1]} : vector<32x256xf32> to vector<32x128xf32>
    %150 = vector.extract_strided_slice %138 {offsets = [0, 256], sizes = [32, 128], strides = [1, 1]} : vector<32x384xf32> to vector<32x128xf32>
    %151 = vector.extract_strided_slice %139 {offsets = [0, 256], sizes = [32, 128], strides = [1, 1]} : vector<32x384xf32> to vector<32x128xf32>
    %152 = arith.addf %151, %3 : vector<32x128xf32>
    %153 = arith.mulf %148, %152 : vector<32x128xf32>
    %154 = arith.addf %150, %153 : vector<32x128xf32>
    %155 = math.tanh %154 : vector<32x128xf32>
    %156 = arith.subf %136, %155 : vector<32x128xf32>
    %157 = arith.mulf %149, %156 : vector<32x128xf32>
    %158 = arith.addf %155, %157 : vector<32x128xf32>
    %c7 = arith.constant 7 : index
    %c0_32 = arith.constant 0 : index
    %c0_33 = arith.constant 0 : index
    %159 = vector.load %arg1[%c7, %c0_32, %c0_33] : memref<8x32x384xf32, #tpu.memory_space<vmem>>, vector<1x32x384xf32>
    %160 = vector.shape_cast %159 : vector<1x32x384xf32> to vector<32x384xf32>
    %cst_34 = arith.constant dense<0.000000e+00> : vector<32x384xf32>
    %161 = tpu.matmul %158, %0, %cst_34 {dimension_numbers = #tpu.dot_dimension_numbers<[1], [0], [0], [1], [0, 0, 1, 1], [], []>} : vector<32x128xf32>, vector<128x384xf32>, vector<32x384xf32> -> vector<32x384xf32>
    %162 = vector.extract_strided_slice %160 {offsets = [0, 0], sizes = [32, 256], strides = [1, 1]} : vector<32x384xf32> to vector<32x256xf32>
    %163 = vector.extract_strided_slice %161 {offsets = [0, 0], sizes = [32, 256], strides = [1, 1]} : vector<32x384xf32> to vector<32x256xf32>
    %164 = arith.addf %162, %163 : vector<32x256xf32>
    %165 = arith.negf %164 : vector<32x256xf32>
    %166 = math.exp %165 : vector<32x256xf32>
    %cst_35 = arith.constant 1.000000e+00 : f32
    %167 = vector.broadcast %cst_35 : f32 to vector<32x256xf32>
    %168 = arith.addf %167, %166 : vector<32x256xf32>
    %169 = arith.divf %167, %168 : vector<32x256xf32>
    %170 = vector.extract_strided_slice %169 {offsets = [0, 0], sizes = [32, 128], strides = [1, 1]} : vector<32x256xf32> to vector<32x128xf32>
    %171 = vector.extract_strided_slice %169 {offsets = [0, 128], sizes = [32, 128], strides = [1, 1]} : vector<32x256xf32> to vector<32x128xf32>
    %172 = vector.extract_strided_slice %160 {offsets = [0, 256], sizes = [32, 128], strides = [1, 1]} : vector<32x384xf32> to vector<32x128xf32>
    %173 = vector.extract_strided_slice %161 {offsets = [0, 256], sizes = [32, 128], strides = [1, 1]} : vector<32x384xf32> to vector<32x128xf32>
    %174 = arith.addf %173, %3 : vector<32x128xf32>
    %175 = arith.mulf %170, %174 : vector<32x128xf32>
    %176 = arith.addf %172, %175 : vector<32x128xf32>
    %177 = math.tanh %176 : vector<32x128xf32>
    %178 = arith.subf %158, %177 : vector<32x128xf32>
    %179 = arith.mulf %171, %178 : vector<32x128xf32>
    %180 = arith.addf %177, %179 : vector<32x128xf32>
    %c0_36 = arith.constant 0 : index
    %c0_37 = arith.constant 0 : index
    %181 = vector.load %arg4[%c0_36, %c0_37] : memref<128x128xf32, #tpu.memory_space<vmem>>, vector<128x128xf32>
    %cst_38 = arith.constant dense<0.000000e+00> : vector<32x128xf32>
    %182 = tpu.matmul %180, %181, %cst_38 {dimension_numbers = #tpu.dot_dimension_numbers<[1], [0], [0], [1], [0, 0, 1, 1], [], []>} : vector<32x128xf32>, vector<128x128xf32>, vector<32x128xf32> -> vector<32x128xf32>
    %c0_39 = arith.constant 0 : index
    %c0_40 = arith.constant 0 : index
    %183 = vector.load %arg5[%c0_39, %c0_40] : memref<1x128xf32, #tpu.memory_space<vmem>>, vector<1x128xf32>
    %184 = vector.broadcast %183 : vector<1x128xf32> to vector<32x128xf32>
    %185 = arith.addf %182, %184 : vector<32x128xf32>
    %cst_41 = arith.constant dense<0xFF800000> : vector<32xf32>
    %186 = vector.multi_reduction <maximumf>, %185, %cst_41 [1] : vector<32x128xf32> to vector<32xf32>
    %187 = vector.shape_cast %186 : vector<32xf32> to vector<32x1xf32>
    %188 = vector.broadcast %187 : vector<32x1xf32> to vector<32x128xf32>
    %189 = arith.subf %185, %188 : vector<32x128xf32>
    %190 = math.exp %189 : vector<32x128xf32>
    %cst_42 = arith.constant dense<0.000000e+00> : vector<32xf32>
    %191 = vector.multi_reduction <add>, %190, %cst_42 [1] : vector<32x128xf32> to vector<32xf32>
    %192 = vector.shape_cast %191 : vector<32xf32> to vector<32x1xf32>
    %193 = vector.broadcast %192 : vector<32x1xf32> to vector<32x128xf32>
    %194 = arith.divf %190, %193 : vector<32x128xf32>
    %c0_43 = arith.constant 0 : index
    %c0_44 = arith.constant 0 : index
    %195 = vector.load %arg6[%c0_43, %c0_44] : memref<128x128xf32, #tpu.memory_space<vmem>>, vector<128x128xf32>
    %cst_45 = arith.constant dense<0.000000e+00> : vector<32x128xf32>
    %196 = tpu.matmul %194, %195, %cst_45 {dimension_numbers = #tpu.dot_dimension_numbers<[1], [0], [0], [1], [0, 0, 1, 1], [], []>} : vector<32x128xf32>, vector<128x128xf32>, vector<32x128xf32> -> vector<32x128xf32>
    %cst_46 = arith.constant 5.000000e-08 : f32
    %cst_47 = arith.constant 0.99999994 : f32
    %197 = vector.broadcast %cst_46 : f32 to vector<32x128xf32>
    %198 = arith.maximumf %197, %196 : vector<32x128xf32>
    %199 = vector.broadcast %cst_47 : f32 to vector<32x128xf32>
    %200 = arith.minimumf %199, %198 : vector<32x128xf32>
    %c0_48 = arith.constant 0 : index
    %c0_49 = arith.constant 0 : index
    %201 = vector.load %arg7[%c0_48, %c0_49] : memref<32x128xf32, #tpu.memory_space<vmem>>, vector<32x128xf32>
    tpu.vector_store %arg7[%c0_48, %c0_49], %200 {strides = array<i32>} : memref<32x128xf32, #tpu.memory_space<vmem>>, vector<32x128xf32>,
    return
  }
  func.func @transform_0(%arg0: i32) -> (i32, i32, i32) {
    %c0_i32 = arith.constant 0 : i32
    %c0_i32_0 = arith.constant 0 : i32
    %c0_i32_1 = arith.constant 0 : i32
    return %c0_i32, %arg0, %c0_i32_0 : i32, i32, i32
  }
  func.func @transform_1(%arg0: i32) -> (i32, i32) {
    %c0_i32 = arith.constant 0 : i32
    %c0_i32_0 = arith.constant 0 : i32
    %c0_i32_1 = arith.constant 0 : i32
    return %c0_i32, %c0_i32_0 : i32, i32
  }
  func.func @transform_2(%arg0: i32) -> (i32, i32) {
    %c0_i32 = arith.constant 0 : i32
    %c0_i32_0 = arith.constant 0 : i32
    %c0_i32_1 = arith.constant 0 : i32
    return %c0_i32, %c0_i32_0 : i32, i32
  }
  func.func @transform_3(%arg0: i32) -> (i32, i32) {
    %c0_i32 = arith.constant 0 : i32
    %c0_i32_0 = arith.constant 0 : i32
    %c0_i32_1 = arith.constant 0 : i32
    return %c0_i32, %c0_i32_0 : i32, i32
  }
  func.func @transform_4(%arg0: i32) -> (i32, i32) {
    %c0_i32 = arith.constant 0 : i32
    %c0_i32_0 = arith.constant 0 : i32
    %c0_i32_1 = arith.constant 0 : i32
    return %c0_i32, %c0_i32_0 : i32, i32
  }
  func.func @transform_5(%arg0: i32) -> (i32, i32) {
    %c0_i32 = arith.constant 0 : i32
    %c0_i32_0 = arith.constant 0 : i32
    %c0_i32_1 = arith.constant 0 : i32
    return %c0_i32, %c0_i32_0 : i32, i32
  }
  func.func @transform_6(%arg0: i32) -> (i32, i32) {
    %c0_i32 = arith.constant 0 : i32
    %c0_i32_0 = arith.constant 0 : i32
    return %arg0, %c0_i32 : i32, i32
  }
}

</mosaic_0001>

<llo_original>
// kernel: ndp_forward.1
$region0: #{ndp_forward.1}
  #allocation0 [shape = 'u32[]', space=smem, size = 0x4, offset = 0x4, fixed_abs, tag = 'smem constant byte address 0x4 - core index']
  #allocation1 [shape = 'u32[144,128]{1,0:T(1,128)}', space=vmem, size = 0x12000, scoped, tag = 'internal scratch']
  %s0 = inlined_call_operand.vmem [shape: f32[8,64,384], index: 0, kind: input, shape index: {}]
  %s1 = inlined_call_operand.vmem [shape: f32[128,384], index: 1, kind: input, shape index: {}]
  %s2 = inlined_call_operand.vmem [shape: f32[1,128], index: 2, kind: input, shape index: {}]
  %s3 = inlined_call_operand.vmem [shape: f32[128,128], index: 3, kind: input, shape index: {}]
  %s4 = inlined_call_operand.vmem [shape: f32[1,128], index: 4, kind: input, shape index: {}]
  %s5 = inlined_call_operand.vmem [shape: f32[128,128], index: 5, kind: input, shape index: {}]
  %s6 = inlined_call_operand.vmem [shape: f32[64,128], index: 6, kind: output, shape index: {}]
  %s7 = sld [smem:[#allocation0]]
  $region80: #{ndp_forward.1} parent=0
    _
  %s9 = ssub.s32 1, %s7
  %s10 = scalar_select 0, %s9, %s7
  $region1: #{ndp_forward.1} parent=0
    #allocation2 [shape = 'u8[786432]{0}', space=vmem, size = 0xc0000, scoped, tag = 'input window, operand 0']
    loop: start=0, step=1, limit=4
    $region2: #{ndp_forward.1} parent=1 // loop_pre_header
      _
    $region3: #{ndp_forward.1} parent=1 // loop_header
      %s12 = sphi 0, %s16
      %p13 = scmp.ge.s32.totalorder %s12, 4
      %s22 = sphi 0, %s24
      %s25 = sphi 0, %s22
      %s26 = sphi 0, %s25
      %s42 = sphi 0, %s26
      %s46 = sphi 0, %s46
      %s48 = sphi 0, %s46
      %s49 = sphi 0, %s48
      %s63 = sphi 0, %s49
      %s67 = sphi 0, %s67
      %s69 = sphi 0, %s67
      %s70 = sphi 0, %s69
      %s84 = sphi 0, %s70
      %s88 = sphi 0, %s88
      %s90 = sphi 0, %s88
      %s91 = sphi 0, %s90
      %s105 = sphi 0, %s91
      %s109 = sphi 0, %s109
      %s111 = sphi 0, %s109
      %s112 = sphi 0, %s111
      %s126 = sphi 0, %s112
      %s130 = sphi 0, %s130
      %s132 = sphi 0, %s130
      %s133 = sphi 0, %s132
      %s147 = sphi 0, %s133
      %s153 = sphi 0, %s155
      %s156 = sphi 0, %s153
      %s157 = sphi 0, %s156
      %s173 = sphi 0, %s157
    $region4: #{ndp_forward.1} parent=1 // loop_header_branch
      %15 = sbr.rel (%p13) target = $region8
    $region5: #{ndp_forward.1} parent=1 // loop_body
      %s17 = ssub.s32 %s12, 1
      %s18 = ssub.s32 %s12, 2
      %s19 = sadd.s32 %s12, 1
      %s20 = ssub.s32 %s12, %s19
      %p21 = scmp.eq.s32.totalorder %s20, 0
      %s23 = sadd.s32 %s22, 1
      %s24 = scalar_select %p21, %s22, %s23
      %p27 = pneg %p21
      %p28 = scmp.eq.s32.totalorder %s12, 1
      %p29 = por %p27, %p28
      %p30 = scmp.ne.s32.totalorder %s22, %s25
      %p31 = scmp.eq.s32.totalorder %s12, 0
      %p32 = por %p30, %p31
      %p33 = scmp.ne.s32.totalorder %s22, %s25
      %p34 = scmp.eq.s32.totalorder %s17, 1
      %p35 = por %p33, %p34
      %p36 = scmp.ne.s32.totalorder %s25, %s26
      %p37 = scmp.eq.s32.totalorder %s17, 0
      %p38 = por %p36, %p37
      %p39 = scmp.ne.s32.totalorder %s25, %s26
      %p40 = scmp.eq.s32.totalorder %s18, 1
      %p41 = por %p39, %p40
      %p43 = scmp.ne.s32.totalorder %s26, %s42
      %p44 = scmp.eq.s32.totalorder %s18, 0
      %p45 = por %p43, %p44
      %s47 = sadd.s32 %s46, 1
      %p50 = scmp.eq.s32.totalorder %s12, 1
      %p51 = scmp.ne.s32.totalorder %s46, %s48
      %p52 = scmp.eq.s32.totalorder %s12, 0
      %p53 = por %p51, %p52
      %p54 = scmp.ne.s32.totalorder %s46, %s48
      %p55 = scmp.eq.s32.totalorder %s17, 1
      %p56 = por %p54, %p55
      %p57 = scmp.ne.s32.totalorder %s48, %s49
      %p58 = scmp.eq.s32.totalorder %s17, 0
      %p59 = por %p57, %p58
      %p60 = scmp.ne.s32.totalorder %s48, %s49
      %p61 = scmp.eq.s32.totalorder %s18, 1
      %p62 = por %p60, %p61
      %p64 = scmp.ne.s32.totalorder %s49, %s63
      %p65 = scmp.eq.s32.totalorder %s18, 0
      %p66 = por %p64, %p65
      %s68 = sadd.s32 %s67, 1
      %p71 = scmp.eq.s32.totalorder %s12, 1
      %p72 = scmp.ne.s32.totalorder %s67, %s69
      %p73 = scmp.eq.s32.totalorder %s12, 0
      %p74 = por %p72, %p73
      %p75 = scmp.ne.s32.totalorder %s67, %s69
      %p76 = scmp.eq.s32.totalorder %s17, 1
      %p77 = por %p75, %p76
      %p78 = scmp.ne.s32.totalorder %s69, %s70
      %p79 = scmp.eq.s32.totalorder %s17, 0
      %p80 = por %p78, %p79
      %p81 = scmp.ne.s32.totalorder %s69, %s70
      %p82 = scmp.eq.s32.totalorder %s18, 1
      %p83 = por %p81, %p82
      %p85 = scmp.ne.s32.totalorder %s70, %s84
      %p86 = scmp.eq.s32.totalorder %s18, 0
      %p87 = por %p85, %p86
      %s89 = sadd.s32 %s88, 1
      %p92 = scmp.eq.s32.totalorder %s12, 1
      %p93 = scmp.ne.s32.totalorder %s88, %s90
      %p94 = scmp.eq.s32.totalorder %s12, 0
      %p95 = por %p93, %p94
      %p96 = scmp.ne.s32.totalorder %s88, %s90
      %p97 = scmp.eq.s32.totalorder %s17, 1
      %p98 = por %p96, %p97
      %p99 = scmp.ne.s32.totalorder %s90, %s91
      %p100 = scmp.eq.s32.totalorder %s17, 0
      %p101 = por %p99, %p100
      %p102 = scmp.ne.s32.totalorder %s90, %s91
      %p103 = scmp.eq.s32.totalorder %s18, 1
      %p104 = por %p102, %p103
      %p106 = scmp.ne.s32.totalorder %s91, %s105
      %p107 = scmp.eq.s32.totalorder %s18, 0
      %p108 = por %p106, %p107
      %s110 = sadd.s32 %s109, 1
      %p113 = scmp.eq.s32.totalorder %s12, 1
      %p114 = scmp.ne.s32.totalorder %s109, %s111
      %p115 = scmp.eq.s32.totalorder %s12, 0
      %p116 = por %p114, %p115
      %p117 = scmp.ne.s32.totalorder %s109, %s111
      %p118 = scmp.eq.s32.totalorder %s17, 1
      %p119 = por %p117, %p118
      %p120 = scmp.ne.s32.totalorder %s111, %s112
      %p121 = scmp.eq.s32.totalorder %s17, 0
      %p122 = por %p120, %p121
      %p123 = scmp.ne.s32.totalorder %s111, %s112
      %p124 = scmp.eq.s32.totalorder %s18, 1
      %p125 = por %p123, %p124
      %p127 = scmp.ne.s32.totalorder %s112, %s126
      %p128 = scmp.eq.s32.totalorder %s18, 0
      %p129 = por %p127, %p128
      %s131 = sadd.s32 %s130, 1
      %p134 = scmp.eq.s32.totalorder %s12, 1
      %p135 = scmp.ne.s32.totalorder %s130, %s132
      %p136 = scmp.eq.s32.totalorder %s12, 0
      %p137 = por %p135, %p136
      %p138 = scmp.ne.s32.totalorder %s130, %s132
      %p139 = scmp.eq.s32.totalorder %s17, 1
      %p140 = por %p138, %p139
      %p141 = scmp.ne.s32.totalorder %s132, %s133
      %p142 = scmp.eq.s32.totalorder %s17, 0
      %p143 = por %p141, %p142
      %p144 = scmp.ne.s32.totalorder %s132, %s133
      %p145 = scmp.eq.s32.totalorder %s18, 1
      %p146 = por %p144, %p145
      %p148 = scmp.ne.s32.totalorder %s133, %s147
      %p149 = scmp.eq.s32.totalorder %s18, 0
      %p150 = por %p148, %p149
      %s151 = ssub.s32 %s12, %s19
      %p152 = scmp.eq.s32.totalorder %s151, 0
      %s154 = sadd.s32 %s153, 1
      %s155 = scalar_select %p152, %s153, %s154
      %p158 = pneg %p152
      %p159 = scmp.eq.s32.totalorder %s12, 1
      %p160 = por %p158, %p159
      %p161 = scmp.ne.s32.totalorder %s153, %s156
      %p162 = scmp.eq.s32.totalorder %s12, 0
      %p163 = por %p161, %p162
      %p164 = scmp.ne.s32.totalorder %s153, %s156
      %p165 = scmp.eq.s32.totalorder %s17, 1
      %p166 = por %p164, %p165
      %p167 = scmp.ne.s32.totalorder %s156, %s157
      %p168 = scmp.eq.s32.totalorder %s17, 0
      %p169 = por %p167, %p168
      %p170 = scmp.ne.s32.totalorder %s156, %s157
      %p171 = scmp.eq.s32.totalorder %s18, 1
      %p172 = por %p170, %p171
      %p174 = scmp.ne.s32.totalorder %s157, %s173
      %p175 = scmp.eq.s32.totalorder %s18, 0
      %p176 = por %p174, %p175
      %p177 = scmp.le.s32.totalorder 1, %s12
      %p178 = scmp.lt.s32.totalorder %s12, 3
      %p179 = pnand %p177, %p178
      %p180 = pneg %p179
      // Predicated region
      $region9: #{ndp_forward.1} parent=5 // pred_check
        _
      $region10: #{ndp_forward.1} parent=5 // pred_check_branch
        %182 = sbr.rel (%p179) target = $region12
      $region11: #{ndp_forward.1} parent=5 // pred_region
        %s183 = ssub.s32 %s12, 1
        // Predicated region
        $region13: #{ndp_forward.1} parent=11 // pred_check
          %p184 = pneg %p59
        $region14: #{ndp_forward.1} parent=11 // pred_check_branch
          %186 = sbr.rel (%p184) target = $region16
        $region15: #{ndp_forward.1} parent=11 // pred_region
          _
        $region16: #{ndp_forward.1} parent=11 // pred_fallthru
          _
        // Predicated region
        $region17: #{ndp_forward.1} parent=11 // pred_check
          %p187 = pneg %p80
        $region18: #{ndp_forward.1} parent=11 // pred_check_branch
          %189 = sbr.rel (%p187) target = $region20
        $region19: #{ndp_forward.1} parent=11 // pred_region
          _
        $region20: #{ndp_forward.1} parent=11 // pred_fallthru
          _
        // Predicated region
        $region21: #{ndp_forward.1} parent=11 // pred_check
          %p190 = pneg %p101
        $region22: #{ndp_forward.1} parent=11 // pred_check_branch
          %192 = sbr.rel (%p190) target = $region24
        $region23: #{ndp_forward.1} parent=11 // pred_region
          _
        $region24: #{ndp_forward.1} parent=11 // pred_fallthru
          _
        // Predicated region
        $region25: #{ndp_forward.1} parent=11 // pred_check
          %p193 = pneg %p122
        $region26: #{ndp_forward.1} parent=11 // pred_check_branch
          %195 = sbr.rel (%p193) target = $region28
        $region27: #{ndp_forward.1} parent=11 // pred_region
          _
        $region28: #{ndp_forward.1} parent=11 // pred_fallthru
          _
        // Predicated region
        $region29: #{ndp_forward.1} parent=11 // pred_check
          %p196 = pneg %p143
        $region30: #{ndp_forward.1} parent=11 // pred_check_branch
          %198 = sbr.rel (%p196) target = $region32
        $region31: #{ndp_forward.1} parent=11 // pred_region
          _
        $region32: #{ndp_forward.1} parent=11 // pred_fallthru
          _
      $region12: #{ndp_forward.1} parent=5 // pred_fallthru
        _
      %p199 = scmp.lt.s32.totalorder %s12, 2
      // Predicated region
      $region33: #{ndp_forward.1} parent=5 // pred_check
        %p200 = pneg %p199
      $region34: #{ndp_forward.1} parent=5 // pred_check_branch
        %202 = sbr.rel (%p200) target = $region36
      $region35: #{ndp_forward.1} parent=5 // pred_region
        // Predicated region
        $region37: #{ndp_forward.1} parent=35 // pred_check
          %p203 = pneg %p32
        $region38: #{ndp_forward.1} parent=35 // pred_check_branch
          %205 = sbr.rel (%p203) target = $region40
        $region39: #{ndp_forward.1} parent=35 // pred_region
          %s206 = sand.u32 %s22, 1
          %s207 = sand.u32 %s22, 1
          %s208 = smul.addr %s207, 768
          %s209 = scalar_lea.vmem [#allocation2], %s208
          %s210 = smul.u32 4, %s12
          %s211 = smul.addr %s210, 3
          %s212 = smul.addr %s211, 8
          %s213 = scalar_lea.vmem %s0, %s212
          // Predicated region
          $region41: #{ndp_forward.1} parent=39 // pred_check
            _
          $region42: #{ndp_forward.1} parent=39 // pred_check_branch
            %215 = sbr.rel (0) target = $region44
          $region43: #{ndp_forward.1} parent=39 // pred_region
            // Predicated region
            $region45: #{ndp_forward.1} parent=43 // pred_check
              _
            $region46: #{ndp_forward.1} parent=43 // pred_check_branch
              %217 = sbr.rel (0) target = $region48
            $region47: #{ndp_forward.1} parent=43 // pred_region
              loop: start=0, step=1, limit=1
              $region49: #{ndp_forward.1} parent=47 // loop_pre_header
                _
              $region50: #{ndp_forward.1} parent=47 // loop_header
                %s219 = sphi 0, %s223
                %p220 = scmp.ge.s32.totalorder %s219, 1
                %s224 = sphi %s213, %s213
                %s225 = sphi %s209, %s209
              $region51: #{ndp_forward.1} parent=47 // loop_header_branch
                %222 = sbr.rel (%p220) target = $region55
              $region52: #{ndp_forward.1} parent=47 // loop_body
                %v226 = vld [vmem:[%s224] sm:$0xff]
                %227 = vst [vmem:[%s225] sm:$0xff] %v226
                %v228 = vld [vmem:[%s224 + $0x8] sm:$0xff]
                %229 = vst [vmem:[%s225 + $0x8] sm:$0xff] %v228
                %v230 = vld [vmem:[%s224 + $0x10] sm:$0xff]
                %231 = vst [vmem:[%s225 + $0x10] sm:$0xff] %v230
                %v232 = vld [vmem:[%s224 + $0x18] sm:$0xff]
                %233 = vst [vmem:[%s225 + $0x18] sm:$0xff] %v232
                %v234 = vld [vmem:[%s224 + $0x20] sm:$0xff]
                %235 = vst [vmem:[%s225 + $0x20] sm:$0xff] %v234
                %v236 = vld [vmem:[%s224 + $0x28] sm:$0xff]
                %237 = vst [vmem:[%s225 + $0x28] sm:$0xff] %v236
                %v238 = vld [vmem:[%s224 + $0x30] sm:$0xff]
                %239 = vst [vmem:[%s225 + $0x30] sm:$0xff] %v238
                %v240 = vld [vmem:[%s224 + $0x38] sm:$0xff]
                %241 = vst [vmem:[%s225 + $0x38] sm:$0xff] %v240
                %v242 = vld [vmem:[%s224 + $0x40] sm:$0xff]
                %243 = vst [vmem:[%s225 + $0x40] sm:$0xff] %v242
                %v244 = vld [vmem:[%s224 + $0x48] sm:$0xff]
                %245 = vst [vmem:[%s225 + $0x48] sm:$0xff] %v244
                %v246 = vld [vmem:[%s224 + $0x50] sm:$0xff]
                %247 = vst [vmem:[%s225 + $0x50] sm:$0xff] %v246
                %v248 = vld [vmem:[%s224 + $0x58] sm:$0xff]
                %249 = vst [vmem:[%s225 + $0x58] sm:$0xff] %v248
                %v250 = vld [vmem:[%s224 + $0xc0] sm:$0xff]
                %251 = vst [vmem:[%s225 + $0x60] sm:$0xff] %v250
                %v252 = vld [vmem:[%s224 + $0xc8] sm:$0xff]
                %253 = vst [vmem:[%s225 + $0x68] sm:$0xff] %v252
                %v254 = vld [vmem:[%s224 + $0xd0] sm:$0xff]
                %255 = vst [vmem:[%s225 + $0x70] sm:$0xff] %v254
                %v256 = vld [vmem:[%s224 + $0xd8] sm:$0xff]
                %257 = vst [vmem:[%s225 + $0x78] sm:$0xff] %v256
                %v258 = vld [vmem:[%s224 + $0xe0] sm:$0xff]
                %259 = vst [vmem:[%s225 + $0x80] sm:$0xff] %v258
                %v260 = vld [vmem:[%s224 + $0xe8] sm:$0xff]
                %261 = vst [vmem:[%s225 + $0x88] sm:$0xff] %v260
                %v262 = vld [vmem:[%s224 + $0xf0] sm:$0xff]
                %263 = vst [vmem:[%s225 + $0x90] sm:$0xff] %v262
                %v264 = vld [vmem:[%s224 + $0xf8] sm:$0xff]
                %265 = vst [vmem:[%s225 + $0x98] sm:$0xff] %v264
                %v266 = vld [vmem:[%s224 + $0x100] sm:$0xff]
                %267 = vst [vmem:[%s225 + $0xa0] sm:$0xff] %v266
                %v268 = vld [vmem:[%s224 + $0x108] sm:$0xff]
                %269 = vst [vmem:[%s225 + $0xa8] sm:$0xff] %v268
                %v270 = vld [vmem:[%s224 + $0x110] sm:$0xff]
                %271 = vst [vmem:[%s225 + $0xb0] sm:$0xff] %v270
                %v272 = vld [vmem:[%s224 + $0x118] sm:$0xff]
                %273 = vst [vmem:[%s225 + $0xb8] sm:$0xff] %v272
                %v274 = vld [vmem:[%s224 + $0x180] sm:$0xff]
                %275 = vst [vmem:[%s225 + $0xc0] sm:$0xff] %v274
                %v276 = vld [vmem:[%s224 + $0x188] sm:$0xff]
                %277 = vst [vmem:[%s225 + $0xc8] sm:$0xff] %v276
                %v278 = vld [vmem:[%s224 + $0x190] sm:$0xff]
                %279 = vst [vmem:[%s225 + $0xd0] sm:$0xff] %v278
                %v280 = vld [vmem:[%s224 + $0x198] sm:$0xff]
                %281 = vst [vmem:[%s225 + $0xd8] sm:$0xff] %v280
                %v282 = vld [vmem:[%s224 + $0x1a0] sm:$0xff]
                %283 = vst [vmem:[%s225 + $0xe0] sm:$0xff] %v282
                %v284 = vld [vmem:[%s224 + $0x1a8] sm:$0xff]
                %285 = vst [vmem:[%s225 + $0xe8] sm:$0xff] %v284
                %v286 = vld [vmem:[%s224 + $0x1b0] sm:$0xff]
                %287 = vst [vmem:[%s225 + $0xf0] sm:$0xff] %v286
                %v288 = vld [vmem:[%s224 + $0x1b8] sm:$0xff]
                %289 = vst [vmem:[%s225 + $0xf8] sm:$0xff] %v288
                %v290 = vld [vmem:[%s224 + $0x1c0] sm:$0xff]
                %291 = vst [vmem:[%s225 + $0x100] sm:$0xff] %v290
                %v292 = vld [vmem:[%s224 + $0x1c8] sm:$0xff]
                %293 = vst [vmem:[%s225 + $0x108] sm:$0xff] %v292
                %v294 = vld [vmem:[%s224 + $0x1d0] sm:$0xff]
                %295 = vst [vmem:[%s225 + $0x110] sm:$0xff] %v294
                %v296 = vld [vmem:[%s224 + $0x1d8] sm:$0xff]
                %297 = vst [vmem:[%s225 + $0x118] sm:$0xff] %v296
                %v298 = vld [vmem:[%s224 + $0x240] sm:$0xff]
                %299 = vst [vmem:[%s225 + $0x120] sm:$0xff] %v298
                %v300 = vld [vmem:[%s224 + $0x248] sm:$0xff]
                %301 = vst [vmem:[%s225 + $0x128] sm:$0xff] %v300
                %v302 = vld [vmem:[%s224 + $0x250] sm:$0xff]
                %303 = vst [vmem:[%s225 + $0x130] sm:$0xff] %v302
                %v304 = vld [vmem:[%s224 + $0x258] sm:$0xff]
                %305 = vst [vmem:[%s225 + $0x138] sm:$0xff] %v304
                %v306 = vld [vmem:[%s224 + $0x260] sm:$0xff]
                %307 = vst [vmem:[%s225 + $0x140] sm:$0xff] %v306
                %v308 = vld [vmem:[%s224 + $0x268] sm:$0xff]
                %309 = vst [vmem:[%s225 + $0x148] sm:$0xff] %v308
                %v310 = vld [vmem:[%s224 + $0x270] sm:$0xff]
                %311 = vst [vmem:[%s225 + $0x150] sm:$0xff] %v310
                %v312 = vld [vmem:[%s224 + $0x278] sm:$0xff]
                %313 = vst [vmem:[%s225 + $0x158] sm:$0xff] %v312
                %v314 = vld [vmem:[%s224 + $0x280] sm:$0xff]
                %315 = vst [vmem:[%s225 + $0x160] sm:$0xff] %v314
                %v316 = vld [vmem:[%s224 + $0x288] sm:$0xff]
                %317 = vst [vmem:[%s225 + $0x168] sm:$0xff] %v316
                %v318 = vld [vmem:[%s224 + $0x290] sm:$0xff]
                %319 = vst [vmem:[%s225 + $0x170] sm:$0xff] %v318
                %v320 = vld [vmem:[%s224 + $0x298] sm:$0xff]
                %321 = vst [vmem:[%s225 + $0x178] sm:$0xff] %v320
                %v322 = vld [vmem:[%s224 + $0x300] sm:$0xff]
                %323 = vst [vmem:[%s225 + $0x180] sm:$0xff] %v322
                %v324 = vld [vmem:[%s224 + $0x308] sm:$0xff]
                %325 = vst [vmem:[%s225 + $0x188] sm:$0xff] %v324
                %v326 = vld [vmem:[%s224 + $0x310] sm:$0xff]
                %327 = vst [vmem:[%s225 + $0x190] sm:$0xff] %v326
                %v328 = vld [vmem:[%s224 + $0x318] sm:$0xff]
                %329 = vst [vmem:[%s225 + $0x198] sm:$0xff] %v328
                %v330 = vld [vmem:[%s224 + $0x320] sm:$0xff]
                %331 = vst [vmem:[%s225 + $0x1a0] sm:$0xff] %v330
                %v332 = vld [vmem:[%s224 + $0x328] sm:$0xff]
                %333 = vst [vmem:[%s225 + $0x1a8] sm:$0xff] %v332
                %v334 = vld [vmem:[%s224 + $0x330] sm:$0xff]
                %335 = vst [vmem:[%s225 + $0x1b0] sm:$0xff] %v334
                %v336 = vld [vmem:[%s224 + $0x338] sm:$0xff]
                %337 = vst [vmem:[%s225 + $0x1b8] sm:$0xff] %v336
                %v338 = vld [vmem:[%s224 + $0x340] sm:$0xff]
                %339 = vst [vmem:[%s225 + $0x1c0] sm:$0xff] %v338
                %v340 = vld [vmem:[%s224 + $0x348] sm:$0xff]
                %341 = vst [vmem:[%s225 + $0x1c8] sm:$0xff] %v340
                %v342 = vld [vmem:[%s224 + $0x350] sm:$0xff]
                %343 = vst [vmem:[%s225 + $0x1d0] sm:$0xff] %v342
                %v344 = vld [vmem:[%s224 + $0x358] sm:$0xff]
                %345 = vst [vmem:[%s225 + $0x1d8] sm:$0xff] %v344
                %v346 = vld [vmem:[%s224 + $0x3c0] sm:$0xff]
                %347 = vst [vmem:[%s225 + $0x1e0] sm:$0xff] %v346
                %v348 = vld [vmem:[%s224 + $0x3c8] sm:$0xff]
                %349 = vst [vmem:[%s225 + $0x1e8] sm:$0xff] %v348
                %v350 = vld [vmem:[%s224 + $0x3d0] sm:$0xff]
                %351 = vst [vmem:[%s225 + $0x1f0] sm:$0xff] %v350
                %v352 = vld [vmem:[%s224 + $0x3d8] sm:$0xff]
                %353 = vst [vmem:[%s225 + $0x1f8] sm:$0xff] %v352
                %v354 = vld [vmem:[%s224 + $0x3e0] sm:$0xff]
                %355 = vst [vmem:[%s225 + $0x200] sm:$0xff] %v354
                %v356 = vld [vmem:[%s224 + $0x3e8] sm:$0xff]
                %357 = vst [vmem:[%s225 + $0x208] sm:$0xff] %v356
                %v358 = vld [vmem:[%s224 + $0x3f0] sm:$0xff]
                %359 = vst [vmem:[%s225 + $0x210] sm:$0xff] %v358
                %v360 = vld [vmem:[%s224 + $0x3f8] sm:$0xff]
                %361 = vst [vmem:[%s225 + $0x218] sm:$0xff] %v360
                %v362 = vld [vmem:[%s224 + $0x400] sm:$0xff]
                %363 = vst [vmem:[%s225 + $0x220] sm:$0xff] %v362
                %v364 = vld [vmem:[%s224 + $0x408] sm:$0xff]
                %365 = vst [vmem:[%s225 + $0x228] sm:$0xff] %v364
                %v366 = vld [vmem:[%s224 + $0x410] sm:$0xff]
                %367 = vst [vmem:[%s225 + $0x230] sm:$0xff] %v366
                %v368 = vld [vmem:[%s224 + $0x418] sm:$0xff]
                %369 = vst [vmem:[%s225 + $0x238] sm:$0xff] %v368
                %v370 = vld [vmem:[%s224 + $0x480] sm:$0xff]
                %371 = vst [vmem:[%s225 + $0x240] sm:$0xff] %v370
                %v372 = vld [vmem:[%s224 + $0x488] sm:$0xff]
                %373 = vst [vmem:[%s225 + $0x248] sm:$0xff] %v372
                %v374 = vld [vmem:[%s224 + $0x490] sm:$0xff]
                %375 = vst [vmem:[%s225 + $0x250] sm:$0xff] %v374
                %v376 = vld [vmem:[%s224 + $0x498] sm:$0xff]
                %377 = vst [vmem:[%s225 + $0x258] sm:$0xff] %v376
                %v378 = vld [vmem:[%s224 + $0x4a0] sm:$0xff]
                %379 = vst [vmem:[%s225 + $0x260] sm:$0xff] %v378
                %v380 = vld [vmem:[%s224 + $0x4a8] sm:$0xff]
                %381 = vst [vmem:[%s225 + $0x268] sm:$0xff] %v380
                %v382 = vld [vmem:[%s224 + $0x4b0] sm:$0xff]
                %383 = vst [vmem:[%s225 + $0x270] sm:$0xff] %v382
                %v384 = vld [vmem:[%s224 + $0x4b8] sm:$0xff]
                %385 = vst [vmem:[%s225 + $0x278] sm:$0xff] %v384
                %v386 = vld [vmem:[%s224 + $0x4c0] sm:$0xff]
                %387 = vst [vmem:[%s225 + $0x280] sm:$0xff] %v386
                %v388 = vld [vmem:[%s224 + $0x4c8] sm:$0xff]
                %389 = vst [vmem:[%s225 + $0x288] sm:$0xff] %v388
                %v390 = vld [vmem:[%s224 + $0x4d0] sm:$0xff]
                %391 = vst [vmem:[%s225 + $0x290] sm:$0xff] %v390
                %v392 = vld [vmem:[%s224 + $0x4d8] sm:$0xff]
                %393 = vst [vmem:[%s225 + $0x298] sm:$0xff] %v392
                %v394 = vld [vmem:[%s224 + $0x540] sm:$0xff]
                %395 = vst [vmem:[%s225 + $0x2a0] sm:$0xff] %v394
                %v396 = vld [vmem:[%s224 + $0x548] sm:$0xff]
                %397 = vst [vmem:[%s225 + $0x2a8] sm:$0xff] %v396
                %v398 = vld [vmem:[%s224 + $0x550] sm:$0xff]
                %399 = vst [vmem:[%s225 + $0x2b0] sm:$0xff] %v398
                %v400 = vld [vmem:[%s224 + $0x558] sm:$0xff]
                %401 = vst [vmem:[%s225 + $0x2b8] sm:$0xff] %v400
                %v402 = vld [vmem:[%s224 + $0x560] sm:$0xff]
                %403 = vst [vmem:[%s225 + $0x2c0] sm:$0xff] %v402
                %v404 = vld [vmem:[%s224 + $0x568] sm:$0xff]
                %405 = vst [vmem:[%s225 + $0x2c8] sm:$0xff] %v404
                %v406 = vld [vmem:[%s224 + $0x570] sm:$0xff]
                %407 = vst [vmem:[%s225 + $0x2d0] sm:$0xff] %v406
                %v408 = vld [vmem:[%s224 + $0x578] sm:$0xff]
                %409 = vst [vmem:[%s225 + $0x2d8] sm:$0xff] %v408
                %v410 = vld [vmem:[%s224 + $0x580] sm:$0xff]
                %411 = vst [vmem:[%s225 + $0x2e0] sm:$0xff] %v410
                %v412 = vld [vmem:[%s224 + $0x588] sm:$0xff]
                %413 = vst [vmem:[%s225 + $0x2e8] sm:$0xff] %v412
                %v414 = vld [vmem:[%s224 + $0x590] sm:$0xff]
                %415 = vst [vmem:[%s225 + $0x2f0] sm:$0xff] %v414
                %v416 = vld [vmem:[%s224 + $0x598] sm:$0xff]
                %417 = vst [vmem:[%s225 + $0x2f8] sm:$0xff] %v416
              $region53: #{ndp_forward.1} parent=47 // loop_footer
                %s223 = sadd.s32 1, %s219
              $region54: #{ndp_forward.1} parent=47 // loop_footer_branch
                %218 = sbr.rel target = $region50
              $region55: #{ndp_forward.1} parent=47 // loop_exit
                _
            $region48: #{ndp_forward.1} parent=43 // pred_fallthru
              _
            // Predicated region
            $region56: #{ndp_forward.1} parent=43 // pred_check
              _
            $region57: #{ndp_forward.1} parent=43 // pred_check_branch
              %419 = sbr.rel target = $region59
            $region58: #{ndp_forward.1} parent=43 // pred_region
              _
            $region59: #{ndp_forward.1} parent=43 // pred_fallthru
              _
          $region44: #{ndp_forward.1} parent=39 // pred_fallthru
            _
          %420 = vnop
        $region40: #{ndp_forward.1} parent=35 // pred_fallthru
          _
      $region36: #{ndp_forward.1} parent=5 // pred_fallthru
        _
      %p421 = scmp.le.s32.totalorder 1, %s12
      %p422 = scmp.lt.s32.totalorder %s12, 3
      %p423 = pnand %p421, %p422
      %p424 = pneg %p423
      // Predicated region
      $region60: #{ndp_forward.1} parent=5 // pred_check
        _
      $region61: #{ndp_forward.1} parent=5 // pred_check_branch
        %426 = sbr.rel (%p423) target = $region63
      $region62: #{ndp_forward.1} parent=5 // pred_region
        %s427 = ssub.s32 %s12, 1
        %s428 = sand.u32 %s25, 1
        %s429 = sand.u32 %s25, 1
        %s430 = smul.addr %s429, 768
        %s431 = scalar_lea.vmem [#allocation2], %s430
        // Predicated region
        $region64: #{ndp_forward.1} parent=62 // pred_check
          %p432 = pneg %p38
        $region65: #{ndp_forward.1} parent=62 // pred_check_branch
          %434 = sbr.rel (%p432) target = $region67
        $region66: #{ndp_forward.1} parent=62 // pred_region
          _
        $region67: #{ndp_forward.1} parent=62 // pred_fallthru
          _
        %s435 = sand.u32 %s25, 1
        %s436 = sand.u32 %s25, 1
        %s437 = smul.addr %s436, 768
        %s438 = scalar_lea.vmem [#allocation2], %s437
        %p439 = pneg %p38
        %p440 = pneg %p35
        %p441 = pneg %p59
        %p442 = pneg %p56
        %p443 = pneg %p80
        %p444 = pneg %p77
        %p445 = pneg %p101
        %p446 = pneg %p98
        %p447 = pneg %p122
        %p448 = pneg %p119
        %p449 = pneg %p143
        %p450 = pneg %p140
        %p451 = pneg %p169
        %p452 = pneg %p166
        %s453 = smul.u32 4, %s17
        %p454 = scmp.lt.s32.totalorder %s453, 7
        %s455 = scalar_select %p454, %s453, 7
        %s456 = smul.addr %s455, 8
        %s457 = scalar_lea.vmem %s6, %s456
        %s458 = smul.u32 4, %s17
        %s459 = smul.u32 4, %s17
        %p460 = scmp.lt.s32.totalorder %s459, 7
        %s461 = scalar_select %p460, %s459, 7
        %s462 = smul.addr %s461, 8
        %s463 = scalar_lea.vmem %s6, %s462
        %s464 = smul.u32 4, %s17
        %v465 = vld [vmem:[%s1] sm:$0xff]
        %v466 = vld [vmem:[%s1 + $0x8] sm:$0xff]
        %v467 = vld [vmem:[%s1 + $0x10] sm:$0xff]
        %v468 = vld [vmem:[%s1 + $0x18] sm:$0xff]
        %v469 = vld [vmem:[%s1 + $0x20] sm:$0xff]
        %v470 = vld [vmem:[%s1 + $0x28] sm:$0xff]
        %v471 = vld [vmem:[%s1 + $0x30] sm:$0xff]
        %v472 = vld [vmem:[%s1 + $0x38] sm:$0xff]
        %v473 = vld [vmem:[%s1 + $0x40] sm:$0xff]
        %v474 = vld [vmem:[%s1 + $0x48] sm:$0xff]
        %v475 = vld [vmem:[%s1 + $0x50] sm:$0xff]
        %v476 = vld [vmem:[%s1 + $0x58] sm:$0xff]
        %v477 = vld [vmem:[%s1 + $0x60] sm:$0xff]
        %v478 = vld [vmem:[%s1 + $0x68] sm:$0xff]
        %v479 = vld [vmem:[%s1 + $0x70] sm:$0xff]
        %v480 = vld [vmem:[%s1 + $0x78] sm:$0xff]
        %v481 = vld [vmem:[%s1 + $0x80] sm:$0xff]
        %v482 = vld [vmem:[%s1 + $0x88] sm:$0xff]
        %v483 = vld [vmem:[%s1 + $0x90] sm:$0xff]
        %v484 = vld [vmem:[%s1 + $0x98] sm:$0xff]
        %v485 = vld [vmem:[%s1 + $0xa0] sm:$0xff]
        %v486 = vld [vmem:[%s1 + $0xa8] sm:$0xff]
        %v487 = vld [vmem:[%s1 + $0xb0] sm:$0xff]
        %v488 = vld [vmem:[%s1 + $0xb8] sm:$0xff]
        %v489 = vld [vmem:[%s1 + $0xc0] sm:$0xff]
        %v490 = vld [vmem:[%s1 + $0xc8] sm:$0xff]
        %v491 = vld [vmem:[%s1 + $0xd0] sm:$0xff]
        %v492 = vld [vmem:[%s1 + $0xd8] sm:$0xff]
        %v493 = vld [vmem:[%s1 + $0xe0] sm:$0xff]
        %v494 = vld [vmem:[%s1 + $0xe8] sm:$0xff]
        %v495 = vld [vmem:[%s1 + $0xf0] sm:$0xff]
        %v496 = vld [vmem:[%s1 + $0xf8] sm:$0xff]
        %v497 = vld [vmem:[%s1 + $0x100] sm:$0xff]
        %v498 = vld [vmem:[%s1 + $0x108] sm:$0xff]
        %v499 = vld [vmem:[%s1 + $0x110] sm:$0xff]
        %v500 = vld [vmem:[%s1 + $0x118] sm:$0xff]
        %v501 = vld [vmem:[%s1 + $0x120] sm:$0xff]
        %v502 = vld [vmem:[%s1 + $0x128] sm:$0xff]
        %v503 = vld [vmem:[%s1 + $0x130] sm:$0xff]
        %v504 = vld [vmem:[%s1 + $0x138] sm:$0xff]
        %v505 = vld [vmem:[%s1 + $0x140] sm:$0xff]
        %v506 = vld [vmem:[%s1 + $0x148] sm:$0xff]
        %v507 = vld [vmem:[%s1 + $0x150] sm:$0xff]
        %v508 = vld [vmem:[%s1 + $0x158] sm:$0xff]
        %v509 = vld [vmem:[%s1 + $0x160] sm:$0xff]
        %v510 = vld [vmem:[%s1 + $0x168] sm:$0xff]
        %v511 = vld [vmem:[%s1 + $0x170] sm:$0xff]
        %v512 = vld [vmem:[%s1 + $0x178] sm:$0xff]
        %v513 = vld [vmem:[%s2] sm:$0x1]
        %v515 = vlaneseq
        %v516 = vshrl.u32 %v515, 7
        %v517 = vsub.s32 0, %v516
        %v518 = vrot.slane %v513, %v517
        %v520 = vld [vmem:[%s431] sm:$0xff]
        %v521 = vld [vmem:[%s431 + $0x8] sm:$0xff]
        %v522 = vld [vmem:[%s431 + $0x10] sm:$0xff]
        %v523 = vld [vmem:[%s431 + $0x18] sm:$0xff]
        %v524 = vld [vmem:[%s431 + $0x20] sm:$0xff]
        %v525 = vld [vmem:[%s431 + $0x28] sm:$0xff]
        %v526 = vld [vmem:[%s431 + $0x30] sm:$0xff]
        %v527 = vld [vmem:[%s431 + $0x38] sm:$0xff]
        %v528 = vld [vmem:[%s431 + $0x40] sm:$0xff]
        %v529 = vld [vmem:[%s431 + $0x48] sm:$0xff]
        %v530 = vld [vmem:[%s431 + $0x50] sm:$0xff]
        %v531 = vld [vmem:[%s431 + $0x58] sm:$0xff]
        %532 = vmatprep.subr.mxu0 %v466
        %533 = vmatpush1.msra.mxu0 %v465
        %534 = vmatprep.subr.mxu0 %v469
        %535 = vmatpush1.msra.mxu0 %v468
        %536 = vmatprep.subr.mxu0 %v472
        %537 = vmatpush1.msra.mxu0 %v471
        %538 = vmatprep.subr.mxu0 %v475
        %539 = vmatpush1.msra.mxu0 %v474
        %540 = vmatprep.subr.mxu0 %v478
        %541 = vmatpush1.msra.mxu0 %v477
        %542 = vmatprep.subr.mxu0 %v481
        %543 = vmatpush1.msra.mxu0 %v480
        %544 = vmatprep.subr.mxu0 %v484
        %545 = vmatpush1.msra.mxu0 %v483
        %546 = vmatprep.subr.mxu0 %v487
        %547 = vmatpush1.msra.mxu0 %v486
        %548 = vmatprep.subr.mxu0 %v490
        %549 = vmatpush1.msra.mxu0 %v489
        %550 = vmatprep.subr.mxu0 %v493
        %551 = vmatpush1.msra.mxu0 %v492
        %552 = vmatprep.subr.mxu0 %v496
        %553 = vmatpush1.msra.mxu0 %v495
        %554 = vmatprep.subr.mxu0 %v499
        %555 = vmatpush1.msra.mxu0 %v498
        %556 = vmatprep.subr.mxu0 %v502
        %557 = vmatpush1.msra.mxu0 %v501
        %558 = vmatprep.subr.mxu0 %v505
        %559 = vmatpush1.msra.mxu0 %v504
        %560 = vmatprep.subr.mxu0 %v508
        %561 = vmatpush1.msra.mxu0 %v507
        %562 = vmatprep.subr.mxu0 %v511
        %563 = vmatpush1.msra.mxu0 %v510
        %564 = vmatprep.subr.mxu0 0.0
        %565 = vmatpush1.msra.mxu0 0.0
        %566 = vmatprep.subr.mxu0 0.0
        %567 = vmatpush1.msra.mxu0 0.0
        %568 = vmatprep.subr.mxu0 0.0
        %569 = vmatpush1.msra.mxu0 0.0
        %570 = vmatprep.subr.mxu0 0.0
        %571 = vmatpush1.msra.mxu0 0.0
        %572 = vmatprep.subr.mxu0 0.0
        %573 = vmatpush1.msra.mxu0 0.0
        %574 = vmatprep.subr.mxu0 0.0
        %575 = vmatpush1.msra.mxu0 0.0
        %576 = vmatprep.subr.mxu0 0.0
        %577 = vmatpush1.msra.mxu0 0.0
        %578 = vmatprep.subr.mxu0 0.0
        %579 = vmatpush1.msra.mxu0 0.0
        %580 = vmatprep.subr.mxu0 0.0
        %581 = vmatpush1.msra.mxu0 0.0
        %582 = vmatprep.subr.mxu0 0.0
        %583 = vmatpush1.msra.mxu0 0.0
        %584 = vmatprep.subr.mxu0 0.0
        %585 = vmatpush1.msra.mxu0 0.0
        %586 = vmatprep.subr.mxu0 0.0
        %587 = vmatpush1.msra.mxu0 0.0
        %588 = vmatprep.subr.mxu0 0.0
        %589 = vmatpush1.msra.mxu0 0.0
        %590 = vmatprep.subr.mxu0 0.0
        %591 = vmatpush1.msra.mxu0 0.0
        %592 = vmatprep.subr.mxu0 0.0
        %593 = vmatpush1.msra.mxu0 0.0
        %594 = vmatprep.subr.mxu0 0.0
        %595 = vmatpush1.msra.mxu0 0.0
        %596 = vmatprep.mubr.f32.mxu0 0.0
        %597 = vmatmul.mubr.f32.gmra.mrb[0].mxu0 0.0
        %v598 = vpop.f32.mrb[0].mxu0
        %v599 = vadd.f32 0.0, %v598
        %v600 = vpop.f32.mrb[0].mxu0
        %v601 = vadd.f32 0.0, %v600
        %602 = vmatprep.mubr.f32.mxu0 0.0
        %603 = vmatmul.mubr.f32.gmra.mrb[0].mxu0 0.0
        %v604 = vpop.f32.mrb[0].mxu0
        %v605 = vadd.f32 0.0, %v604
        %v606 = vpop.f32.mrb[0].mxu0
        %v607 = vadd.f32 0.0, %v606
        %608 = vmatprep.mubr.f32.mxu0 0.0
        %609 = vmatmul.mubr.f32.gmra.mrb[0].mxu0 0.0
        %v610 = vpop.f32.mrb[0].mxu0
        %v611 = vadd.f32 0.0, %v610
        %v612 = vpop.f32.mrb[0].mxu0
        %v613 = vadd.f32 0.0, %v612
        %614 = vmatprep.mubr.f32.mxu0 0.0
        %615 = vmatmul.mubr.f32.gmra.mrb[0].mxu0 0.0
        %v616 = vpop.f32.mrb[0].mxu0
        %v617 = vadd.f32 0.0, %v616
        %v618 = vpop.f32.mrb[0].mxu0
        %v619 = vadd.f32 0.0, %v618
        %620 = vdwg.mxu0
        %621 = vmatprep.subr.mxu0 0.0
        %622 = vmatpush1.msra.mxu0 %v467
        %623 = vmatprep.subr.mxu0 0.0
        %624 = vmatpush1.msra.mxu0 %v470
        %625 = vmatprep.subr.mxu0 0.0
        %626 = vmatpush1.msra.mxu0 %v473
        %627 = vmatprep.subr.mxu0 0.0
        %628 = vmatpush1.msra.mxu0 %v476
        %629 = vmatprep.subr.mxu0 0.0
        %630 = vmatpush1.msra.mxu0 %v479
        %631 = vmatprep.subr.mxu0 0.0
        %632 = vmatpush1.msra.mxu0 %v482
        %633 = vmatprep.subr.mxu0 0.0
        %634 = vmatpush1.msra.mxu0 %v485
        %635 = vmatprep.subr.mxu0 0.0
        %636 = vmatpush1.msra.mxu0 %v488
        %637 = vmatprep.subr.mxu0 0.0
        %638 = vmatpush1.msra.mxu0 %v491
        %639 = vmatprep.subr.mxu0 0.0
        %640 = vmatpush1.msra.mxu0 %v494
        %641 = vmatprep.subr.mxu0 0.0
        %642 = vmatpush1.msra.mxu0 %v497
        %643 = vmatprep.subr.mxu0 0.0
        %644 = vmatpush1.msra.mxu0 %v500
        %645 = vmatprep.subr.mxu0 0.0
        %646 = vmatpush1.msra.mxu0 %v503
        %647 = vmatprep.subr.mxu0 0.0
        %648 = vmatpush1.msra.mxu0 %v506
        %649 = vmatprep.subr.mxu0 0.0
        %650 = vmatpush1.msra.mxu0 %v509
        %651 = vmatprep.subr.mxu0 0.0
        %652 = vmatpush1.msra.mxu0 %v512
        %653 = vmatprep.subr.mxu0 0.0
        %654 = vmatpush1.msra.mxu0 0.0
        %655 = vmatprep.subr.mxu0 0.0
        %656 = vmatpush1.msra.mxu0 0.0
        %657 = vmatprep.subr.mxu0 0.0
        %658 = vmatpush1.msra.mxu0 0.0
        %659 = vmatprep.subr.mxu0 0.0
        %660 = vmatpush1.msra.mxu0 0.0
        %661 = vmatprep.subr.mxu0 0.0
        %662 = vmatpush1.msra.mxu0 0.0
        %663 = vmatprep.subr.mxu0 0.0
        %664 = vmatpush1.msra.mxu0 0.0
        %665 = vmatprep.subr.mxu0 0.0
        %666 = vmatpush1.msra.mxu0 0.0
        %667 = vmatprep.subr.mxu0 0.0
        %668 = vmatpush1.msra.mxu0 0.0
        %669 = vmatprep.subr.mxu0 0.0
        %670 = vmatpush1.msra.mxu0 0.0
        %671 = vmatprep.subr.mxu0 0.0
        %672 = vmatpush1.msra.mxu0 0.0
        %673 = vmatprep.subr.mxu0 0.0
        %674 = vmatpush1.msra.mxu0 0.0
        %675 = vmatprep.subr.mxu0 0.0
        %676 = vmatpush1.msra.mxu0 0.0
        %677 = vmatprep.subr.mxu0 0.0
        %678 = vmatpush1.msra.mxu0 0.0
        %679 = vmatprep.subr.mxu0 0.0
        %680 = vmatpush1.msra.mxu0 0.0
        %681 = vmatprep.subr.mxu0 0.0
        %682 = vmatpush1.msra.mxu0 0.0
        %683 = vmatprep.subr.mxu0 0.0
        %684 = vmatpush1.msra.mxu0 0.0
        %685 = vmatprep.mubr.f32.mxu0 0.0
        %686 = vmatmul.mubr.f32.gmra.mrb[0].mxu0 0.0
        %v687 = vpop.f32.mrb[0].mxu0
        %v688 = vadd.f32 0.0, %v687
        %v689 = vpop.f32.mrb[0].mxu0
        %690 = vmatprep.mubr.f32.mxu0 0.0
        %691 = vmatmul.mubr.f32.gmra.mrb[0].mxu0 0.0
        %v692 = vpop.f32.mrb[0].mxu0
        %v693 = vadd.f32 0.0, %v692
        %v694 = vpop.f32.mrb[0].mxu0
        %695 = vmatprep.mubr.f32.mxu0 0.0
        %696 = vmatmul.mubr.f32.gmra.mrb[0].mxu0 0.0
        %v697 = vpop.f32.mrb[0].mxu0
        %v698 = vadd.f32 0.0, %v697
        %v699 = vpop.f32.mrb[0].mxu0
        %700 = vmatprep.mubr.f32.mxu0 0.0
        %701 = vmatmul.mubr.f32.gmra.mrb[0].mxu0 0.0
        %v702 = vpop.f32.mrb[0].mxu0
        %v703 = vadd.f32 0.0, %v702
        %v704 = vpop.f32.mrb[0].mxu0
        %705 = vdwg.mxu0
        %v706 = vadd.f32 %v520, %v599
        %v707 = vadd.f32 %v521, %v601
        %v708 = vadd.f32 %v523, %v605
        %v709 = vadd.f32 %v524, %v607
        %v710 = vadd.f32 %v526, %v611
        %v711 = vadd.f32 %v527, %v613
        %v712 = vadd.f32 %v529, %v617
        %v713 = vadd.f32 %v530, %v619
        %v714 = vxor.u32 %v706, 2147483648
        %v715 = vxor.u32 %v707, 2147483648
        %v716 = vxor.u32 %v708, 2147483648
        %v717 = vxor.u32 %v709, 2147483648
        %v718 = vxor.u32 %v710, 2147483648
        %v719 = vxor.u32 %v711, 2147483648
        %v720 = vxor.u32 %v712, 2147483648
        %v721 = vxor.u32 %v713, 2147483648
        %v722 = vmul.f32 %v714, 1.442695
        %v723 = vpow.pop %v722
        %v724 = vmul.f32 %v715, 1.442695
        %v725 = vpow.pop %v724
        %v726 = vmul.f32 %v716, 1.442695
        %v727 = vpow.pop %v726
        %v728 = vmul.f32 %v717, 1.442695
        %v729 = vpow.pop %v728
        %v730 = vmul.f32 %v718, 1.442695
        %v731 = vpow.pop %v730
        %v732 = vmul.f32 %v719, 1.442695
        %v733 = vpow.pop %v732
        %v734 = vmul.f32 %v720, 1.442695
        %v735 = vpow.pop %v734
        %v736 = vmul.f32 %v721, 1.442695
        %v737 = vpow.pop %v736
        %v738 = vadd.f32 %v723, 1.0
        %v739 = vadd.f32 %v725, 1.0
        %v740 = vadd.f32 %v727, 1.0
        %v741 = vadd.f32 %v729, 1.0
        %v742 = vadd.f32 %v731, 1.0
        %v743 = vadd.f32 %v733, 1.0
        %v744 = vadd.f32 %v735, 1.0
        %v745 = vadd.f32 %v737, 1.0
        %v746 = vrcp.pop %v738
        %v747 = vmul.f32 1.0, %v746
        %v748 = vrcp.pop %v739
        %v749 = vmul.f32 1.0, %v748
        %v750 = vrcp.pop %v740
        %v751 = vmul.f32 1.0, %v750
        %v752 = vrcp.pop %v741
        %v753 = vmul.f32 1.0, %v752
        %v754 = vrcp.pop %v742
        %v755 = vmul.f32 1.0, %v754
        %v756 = vrcp.pop %v743
        %v757 = vmul.f32 1.0, %v756
        %v758 = vrcp.pop %v744
        %v759 = vmul.f32 1.0, %v758
        %v760 = vrcp.pop %v745
        %v761 = vmul.f32 1.0, %v760
        %v762 = vadd.f32 %v688, %v518
        %v763 = vadd.f32 %v693, %v518
        %v764 = vadd.f32 %v698, %v518
        %v765 = vadd.f32 %v703, %v518
        %v766 = vmul.f32 %v747, %v762
        %v767 = vmul.f32 %v751, %v763
        %v768 = vmul.f32 %v755, %v764
        %v769 = vmul.f32 %v759, %v765
        %v770 = vadd.f32 %v522, %v766
        %v771 = vadd.f32 %v525, %v767
        %v772 = vadd.f32 %v528, %v768
        %v773 = vadd.f32 %v531, %v769
        %v774 = vtanh.pop %v770
        %v775 = vtanh.pop %v771
        %v776 = vtanh.pop %v772
        %v777 = vtanh.pop %v773
        %v778 = vsub.f32 0.0, %v774
        %v779 = vsub.f32 0.0, %v775
        %v780 = vsub.f32 0.0, %v776
        %v781 = vsub.f32 0.0, %v777
        %v782 = vmul.f32 %v749, %v778
        %v783 = vmul.f32 %v753, %v779
        %v784 = vmul.f32 %v757, %v780
        %v785 = vmul.f32 %v761, %v781
        %v786 = vadd.f32 %v774, %v782
        %v787 = vadd.f32 %v775, %v783
        %v788 = vadd.f32 %v776, %v784
        %v789 = vadd.f32 %v777, %v785
        %s790 = scalar_lea.vmem %s431, 96 [#allocation2]
        %v791 = vld [vmem:[%s790] sm:$0xff]
        %v792 = vld [vmem:[%s790 + $0x8] sm:$0xff]
        %v793 = vld [vmem:[%s790 + $0x10] sm:$0xff]
        %v794 = vld [vmem:[%s790 + $0x18] sm:$0xff]
        %v795 = vld [vmem:[%s790 + $0x20] sm:$0xff]
        %v796 = vld [vmem:[%s790 + $0x28] sm:$0xff]
        %v797 = vld [vmem:[%s790 + $0x30] sm:$0xff]
        %v798 = vld [vmem:[%s790 + $0x38] sm:$0xff]
        %v799 = vld [vmem:[%s790 + $0x40] sm:$0xff]
        %v800 = vld [vmem:[%s790 + $0x48] sm:$0xff]
        %v801 = vld [vmem:[%s790 + $0x50] sm:$0xff]
        %v802 = vld [vmem:[%s790 + $0x58] sm:$0xff]
        %803 = vmatprep.subr.mxu0 %v466
        %804 = vmatpush1.msra.mxu0 %v465
        %805 = vmatprep.subr.mxu0 %v469
        %806 = vmatpush1.msra.mxu0 %v468
        %807 = vmatprep.subr.mxu0 %v472
        %808 = vmatpush1.msra.mxu0 %v471
        %809 = vmatprep.subr.mxu0 %v475
        %810 = vmatpush1.msra.mxu0 %v474
        %811 = vmatprep.subr.mxu0 %v478
        %812 = vmatpush1.msra.mxu0 %v477
        %813 = vmatprep.subr.mxu0 %v481
        %814 = vmatpush1.msra.mxu0 %v480
        %815 = vmatprep.subr.mxu0 %v484
        %816 = vmatpush1.msra.mxu0 %v483
        %817 = vmatprep.subr.mxu0 %v487
        %818 = vmatpush1.msra.mxu0 %v486
        %819 = vmatprep.subr.mxu0 %v490
        %820 = vmatpush1.msra.mxu0 %v489
        %821 = vmatprep.subr.mxu0 %v493
        %822 = vmatpush1.msra.mxu0 %v492
        %823 = vmatprep.subr.mxu0 %v496
        %824 = vmatpush1.msra.mxu0 %v495
        %825 = vmatprep.subr.mxu0 %v499
        %826 = vmatpush1.msra.mxu0 %v498
        %827 = vmatprep.subr.mxu0 %v502
        %828 = vmatpush1.msra.mxu0 %v501
        %829 = vmatprep.subr.mxu0 %v505
        %830 = vmatpush1.msra.mxu0 %v504
        %831 = vmatprep.subr.mxu0 %v508
        %832 = vmatpush1.msra.mxu0 %v507
        %833 = vmatprep.subr.mxu0 %v511
        %834 = vmatpush1.msra.mxu0 %v510
        %835 = vmatprep.subr.mxu0 0.0
        %836 = vmatpush1.msra.mxu0 0.0
        %837 = vmatprep.subr.mxu0 0.0
        %838 = vmatpush1.msra.mxu0 0.0
        %839 = vmatprep.subr.mxu0 0.0
        %840 = vmatpush1.msra.mxu0 0.0
        %841 = vmatprep.subr.mxu0 0.0
        %842 = vmatpush1.msra.mxu0 0.0
        %843 = vmatprep.subr.mxu0 0.0
        %844 = vmatpush1.msra.mxu0 0.0
        %845 = vmatprep.subr.mxu0 0.0
        %846 = vmatpush1.msra.mxu0 0.0
        %847 = vmatprep.subr.mxu0 0.0
        %848 = vmatpush1.msra.mxu0 0.0
        %849 = vmatprep.subr.mxu0 0.0
        %850 = vmatpush1.msra.mxu0 0.0
        %851 = vmatprep.subr.mxu0 0.0
        %852 = vmatpush1.msra.mxu0 0.0
        %853 = vmatprep.subr.mxu0 0.0
        %854 = vmatpush1.msra.mxu0 0.0
        %855 = vmatprep.subr.mxu0 0.0
        %856 = vmatpush1.msra.mxu0 0.0
        %857 = vmatprep.subr.mxu0 0.0
        %858 = vmatpush1.msra.mxu0 0.0
        %859 = vmatprep.subr.mxu0 0.0
        %860 = vmatpush1.msra.mxu0 0.0
        %861 = vmatprep.subr.mxu0 0.0
        %862 = vmatpush1.msra.mxu0 0.0
        %863 = vmatprep.subr.mxu0 0.0
        %864 = vmatpush1.msra.mxu0 0.0
        %865 = vmatprep.subr.mxu0 0.0
        %866 = vmatpush1.msra.mxu0 0.0
        %867 = vmatprep.mubr.f32.mxu0 0.0
        %868 = vmatmul.mubr.f32.gmra.mrb[0].mxu0 %v786
        %v869 = vpop.f32.mrb[0].mxu0
        %v870 = vadd.f32 0.0, %v869
        %v871 = vpop.f32.mrb[0].mxu0
        %v872 = vadd.f32 0.0, %v871
        %873 = vmatprep.mubr.f32.mxu0 0.0
        %874 = vmatmul.mubr.f32.gmra.mrb[0].mxu0 %v787
        %v875 = vpop.f32.mrb[0].mxu0
        %v876 = vadd.f32 0.0, %v875
        %v877 = vpop.f32.mrb[0].mxu0
        %v878 = vadd.f32 0.0, %v877
        %879 = vmatprep.mubr.f32.mxu0 0.0
        %880 = vmatmul.mubr.f32.gmra.mrb[0].mxu0 %v788
        %v881 = vpop.f32.mrb[0].mxu0
        %v882 = vadd.f32 0.0, %v881
        %v883 = vpop.f32.mrb[0].mxu0
        %v884 = vadd.f32 0.0, %v883
        %885 = vmatprep.mubr.f32.mxu0 0.0
        %886 = vmatmul.mubr.f32.gmra.mrb[0].mxu0 %v789
        %v887 = vpop.f32.mrb[0].mxu0
        %v888 = vadd.f32 0.0, %v887
        %v889 = vpop.f32.mrb[0].mxu0
        %v890 = vadd.f32 0.0, %v889
        %891 = vdwg.mxu0
        %892 = vmatprep.subr.mxu0 0.0
        %893 = vmatpush1.msra.mxu0 %v467
        %894 = vmatprep.subr.mxu0 0.0
        %895 = vmatpush1.msra.mxu0 %v470
        %896 = vmatprep.subr.mxu0 0.0
        %897 = vmatpush1.msra.mxu0 %v473
        %898 = vmatprep.subr.mxu0 0.0
        %899 = vmatpush1.msra.mxu0 %v476
        %900 = vmatprep.subr.mxu0 0.0
        %901 = vmatpush1.msra.mxu0 %v479
        %902 = vmatprep.subr.mxu0 0.0
        %903 = vmatpush1.msra.mxu0 %v482
        %904 = vmatprep.subr.mxu0 0.0
        %905 = vmatpush1.msra.mxu0 %v485
        %906 = vmatprep.subr.mxu0 0.0
        %907 = vmatpush1.msra.mxu0 %v488
        %908 = vmatprep.subr.mxu0 0.0
        %909 = vmatpush1.msra.mxu0 %v491
        %910 = vmatprep.subr.mxu0 0.0
        %911 = vmatpush1.msra.mxu0 %v494
        %912 = vmatprep.subr.mxu0 0.0
        %913 = vmatpush1.msra.mxu0 %v497
        %914 = vmatprep.subr.mxu0 0.0
        %915 = vmatpush1.msra.mxu0 %v500
        %916 = vmatprep.subr.mxu0 0.0
        %917 = vmatpush1.msra.mxu0 %v503
        %918 = vmatprep.subr.mxu0 0.0
        %919 = vmatpush1.msra.mxu0 %v506
        %920 = vmatprep.subr.mxu0 0.0
        %921 = vmatpush1.msra.mxu0 %v509
        %922 = vmatprep.subr.mxu0 0.0
        %923 = vmatpush1.msra.mxu0 %v512
        %924 = vmatprep.subr.mxu0 0.0
        %925 = vmatpush1.msra.mxu0 0.0
        %926 = vmatprep.subr.mxu0 0.0
        %927 = vmatpush1.msra.mxu0 0.0
        %928 = vmatprep.subr.mxu0 0.0
        %929 = vmatpush1.msra.mxu0 0.0
        %930 = vmatprep.subr.mxu0 0.0
        %931 = vmatpush1.msra.mxu0 0.0
        %932 = vmatprep.subr.mxu0 0.0
        %933 = vmatpush1.msra.mxu0 0.0
        %934 = vmatprep.subr.mxu0 0.0
        %935 = vmatpush1.msra.mxu0 0.0
        %936 = vmatprep.subr.mxu0 0.0
        %937 = vmatpush1.msra.mxu0 0.0
        %938 = vmatprep.subr.mxu0 0.0
        %939 = vmatpush1.msra.mxu0 0.0
        %940 = vmatprep.subr.mxu0 0.0
        %941 = vmatpush1.msra.mxu0 0.0
        %942 = vmatprep.subr.mxu0 0.0
        %943 = vmatpush1.msra.mxu0 0.0
        %944 = vmatprep.subr.mxu0 0.0
        %945 = vmatpush1.msra.mxu0 0.0
        %946 = vmatprep.subr.mxu0 0.0
        %947 = vmatpush1.msra.mxu0 0.0
        %948 = vmatprep.subr.mxu0 0.0
        %949 = vmatpush1.msra.mxu0 0.0
        %950 = vmatprep.subr.mxu0 0.0
        %951 = vmatpush1.msra.mxu0 0.0
        %952 = vmatprep.subr.mxu0 0.0
        %953 = vmatpush1.msra.mxu0 0.0
        %954 = vmatprep.subr.mxu0 0.0
        %955 = vmatpush1.msra.mxu0 0.0
        %956 = vmatprep.mubr.f32.mxu0 0.0
        %957 = vmatmul.mubr.f32.gmra.mrb[0].mxu0 %v786
        %v958 = vpop.f32.mrb[0].mxu0
        %v959 = vadd.f32 0.0, %v958
        %v960 = vpop.f32.mrb[0].mxu0
        %961 = vmatprep.mubr.f32.mxu0 0.0
        %962 = vmatmul.mubr.f32.gmra.mrb[0].mxu0 %v787
        %v963 = vpop.f32.mrb[0].mxu0
        %v964 = vadd.f32 0.0, %v963
        %v965 = vpop.f32.mrb[0].mxu0
        %966 = vmatprep.mubr.f32.mxu0 0.0
        %967 = vmatmul.mubr.f32.gmra.mrb[0].mxu0 %v788
        %v968 = vpop.f32.mrb[0].mxu0
        %v969 = vadd.f32 0.0, %v968
        %v970 = vpop.f32.mrb[0].mxu0
        %971 = vmatprep.mubr.f32.mxu0 0.0
        %972 = vmatmul.mubr.f32.gmra.mrb[0].mxu0 %v789
        %v973 = vpop.f32.mrb[0].mxu0
        %v974 = vadd.f32 0.0, %v973
        %v975 = vpop.f32.mrb[0].mxu0
        %976 = vdwg.mxu0
        %v977 = vadd.f32 %v791, %v870
        %v978 = vadd.f32 %v792, %v872
        %v979 = vadd.f32 %v794, %v876
        %v980 = vadd.f32 %v795, %v878
        %v981 = vadd.f32 %v797, %v882
        %v982 = vadd.f32 %v798, %v884
        %v983 = vadd.f32 %v800, %v888
        %v984 = vadd.f32 %v801, %v890
        %v985 = vxor.u32 %v977, 2147483648
        %v986 = vxor.u32 %v978, 2147483648
        %v987 = vxor.u32 %v979, 2147483648
        %v988 = vxor.u32 %v980, 2147483648
        %v989 = vxor.u32 %v981, 2147483648
        %v990 = vxor.u32 %v982, 2147483648
        %v991 = vxor.u32 %v983, 2147483648
        %v992 = vxor.u32 %v984, 2147483648
        %v993 = vmul.f32 %v985, 1.442695
        %v994 = vpow.pop %v993
        %v995 = vmul.f32 %v986, 1.442695
        %v996 = vpow.pop %v995
        %v997 = vmul.f32 %v987, 1.442695
        %v998 = vpow.pop %v997
        %v999 = vmul.f32 %v988, 1.442695
        %v1000 = vpow.pop %v999
        %v1001 = vmul.f32 %v989, 1.442695
        %v1002 = vpow.pop %v1001
        %v1003 = vmul.f32 %v990, 1.442695
        %v1004 = vpow.pop %v1003
        %v1005 = vmul.f32 %v991, 1.442695
        %v1006 = vpow.pop %v1005
        %v1007 = vmul.f32 %v992, 1.442695
        %v1008 = vpow.pop %v1007
        %v1009 = vadd.f32 %v994, 1.0
        %v1010 = vadd.f32 %v996, 1.0
        %v1011 = vadd.f32 %v998, 1.0
        %v1012 = vadd.f32 %v1000, 1.0
        %v1013 = vadd.f32 %v1002, 1.0
        %v1014 = vadd.f32 %v1004, 1.0
        %v1015 = vadd.f32 %v1006, 1.0
        %v1016 = vadd.f32 %v1008, 1.0
        %v1017 = vrcp.pop %v1009
        %v1018 = vmul.f32 1.0, %v1017
        %v1019 = vrcp.pop %v1010
        %v1020 = vmul.f32 1.0, %v1019
        %v1021 = vrcp.pop %v1011
        %v1022 = vmul.f32 1.0, %v1021
        %v1023 = vrcp.pop %v1012
        %v1024 = vmul.f32 1.0, %v1023
        %v1025 = vrcp.pop %v1013
        %v1026 = vmul.f32 1.0, %v1025
        %v1027 = vrcp.pop %v1014
        %v1028 = vmul.f32 1.0, %v1027
        %v1029 = vrcp.pop %v1015
        %v1030 = vmul.f32 1.0, %v1029
        %v1031 = vrcp.pop %v1016
        %v1032 = vmul.f32 1.0, %v1031
        %v1033 = vadd.f32 %v959, %v518
        %v1034 = vadd.f32 %v964, %v518
        %v1035 = vadd.f32 %v969, %v518
        %v1036 = vadd.f32 %v974, %v518
        %v1037 = vmul.f32 %v1018, %v1033
        %v1038 = vmul.f32 %v1022, %v1034
        %v1039 = vmul.f32 %v1026, %v1035
        %v1040 = vmul.f32 %v1030, %v1036
        %v1041 = vadd.f32 %v793, %v1037
        %v1042 = vadd.f32 %v796, %v1038
        %v1043 = vadd.f32 %v799, %v1039
        %v1044 = vadd.f32 %v802, %v1040
        %v1045 = vtanh.pop %v1041
        %v1046 = vtanh.pop %v1042
        %v1047 = vtanh.pop %v1043
        %v1048 = vtanh.pop %v1044
        %v1049 = vsub.f32 %v786, %v1045
        %v1050 = vsub.f32 %v787, %v1046
        %v1051 = vsub.f32 %v788, %v1047
        %v1052 = vsub.f32 %v789, %v1048
        %v1053 = vmul.f32 %v1020, %v1049
        %v1054 = vmul.f32 %v1024, %v1050
        %v1055 = vmul.f32 %v1028, %v1051
        %v1056 = vmul.f32 %v1032, %v1052
        %v1057 = vadd.f32 %v1045, %v1053
        %v1058 = vadd.f32 %v1046, %v1054
        %v1059 = vadd.f32 %v1047, %v1055
        %v1060 = vadd.f32 %v1048, %v1056
        %s1061 = scalar_lea.vmem %s431, 192 [#allocation2]
        %v1062 = vld [vmem:[%s1061] sm:$0xff]
        %v1063 = vld [vmem:[%s1061 + $0x8] sm:$0xff]
        %v1064 = vld [vmem:[%s1061 + $0x10] sm:$0xff]
        %v1065 = vld [vmem:[%s1061 + $0x18] sm:$0xff]
        %v1066 = vld [vmem:[%s1061 + $0x20] sm:$0xff]
        %v1067 = vld [vmem:[%s1061 + $0x28] sm:$0xff]
        %v1068 = vld [vmem:[%s1061 + $0x30] sm:$0xff]
        %v1069 = vld [vmem:[%s1061 + $0x38] sm:$0xff]
        %v1070 = vld [vmem:[%s1061 + $0x40] sm:$0xff]
        %v1071 = vld [vmem:[%s1061 + $0x48] sm:$0xff]
        %v1072 = vld [vmem:[%s1061 + $0x50] sm:$0xff]
        %v1073 = vld [vmem:[%s1061 + $0x58] sm:$0xff]
        %1074 = vmatprep.subr.mxu0 %v466
        %1075 = vmatpush1.msra.mxu0 %v465
        %1076 = vmatprep.subr.mxu0 %v469
        %1077 = vmatpush1.msra.mxu0 %v468
        %1078 = vmatprep.subr.mxu0 %v472
        %1079 = vmatpush1.msra.mxu0 %v471
        %1080 = vmatprep.subr.mxu0 %v475
        %1081 = vmatpush1.msra.mxu0 %v474
        %1082 = vmatprep.subr.mxu0 %v478
        %1083 = vmatpush1.msra.mxu0 %v477
        %1084 = vmatprep.subr.mxu0 %v481
        %1085 = vmatpush1.msra.mxu0 %v480
        %1086 = vmatprep.subr.mxu0 %v484
        %1087 = vmatpush1.msra.mxu0 %v483
        %1088 = vmatprep.subr.mxu0 %v487
        %1089 = vmatpush1.msra.mxu0 %v486
        %1090 = vmatprep.subr.mxu0 %v490
        %1091 = vmatpush1.msra.mxu0 %v489
        %1092 = vmatprep.subr.mxu0 %v493
        %1093 = vmatpush1.msra.mxu0 %v492
        %1094 = vmatprep.subr.mxu0 %v496
        %1095 = vmatpush1.msra.mxu0 %v495
        %1096 = vmatprep.subr.mxu0 %v499
        %1097 = vmatpush1.msra.mxu0 %v498
        %1098 = vmatprep.subr.mxu0 %v502
        %1099 = vmatpush1.msra.mxu0 %v501
        %1100 = vmatprep.subr.mxu0 %v505
        %1101 = vmatpush1.msra.mxu0 %v504
        %1102 = vmatprep.subr.mxu0 %v508
        %1103 = vmatpush1.msra.mxu0 %v507
        %1104 = vmatprep.subr.mxu0 %v511
        %1105 = vmatpush1.msra.mxu0 %v510
        %1106 = vmatprep.subr.mxu0 0.0
        %1107 = vmatpush1.msra.mxu0 0.0
        %1108 = vmatprep.subr.mxu0 0.0
        %1109 = vmatpush1.msra.mxu0 0.0
        %1110 = vmatprep.subr.mxu0 0.0
        %1111 = vmatpush1.msra.mxu0 0.0
        %1112 = vmatprep.subr.mxu0 0.0
        %1113 = vmatpush1.msra.mxu0 0.0
        %1114 = vmatprep.subr.mxu0 0.0
        %1115 = vmatpush1.msra.mxu0 0.0
        %1116 = vmatprep.subr.mxu0 0.0
        %1117 = vmatpush1.msra.mxu0 0.0
        %1118 = vmatprep.subr.mxu0 0.0
        %1119 = vmatpush1.msra.mxu0 0.0
        %1120 = vmatprep.subr.mxu0 0.0
        %1121 = vmatpush1.msra.mxu0 0.0
        %1122 = vmatprep.subr.mxu0 0.0
        %1123 = vmatpush1.msra.mxu0 0.0
        %1124 = vmatprep.subr.mxu0 0.0
        %1125 = vmatpush1.msra.mxu0 0.0
        %1126 = vmatprep.subr.mxu0 0.0
        %1127 = vmatpush1.msra.mxu0 0.0
        %1128 = vmatprep.subr.mxu0 0.0
        %1129 = vmatpush1.msra.mxu0 0.0
        %1130 = vmatprep.subr.mxu0 0.0
        %1131 = vmatpush1.msra.mxu0 0.0
        %1132 = vmatprep.subr.mxu0 0.0
        %1133 = vmatpush1.msra.mxu0 0.0
        %1134 = vmatprep.subr.mxu0 0.0
        %1135 = vmatpush1.msra.mxu0 0.0
        %1136 = vmatprep.subr.mxu0 0.0
        %1137 = vmatpush1.msra.mxu0 0.0
        %1138 = vmatprep.mubr.f32.mxu0 0.0
        %1139 = vmatmul.mubr.f32.gmra.mrb[0].mxu0 %v1057
        %v1140 = vpop.f32.mrb[0].mxu0
        %v1141 = vadd.f32 0.0, %v1140
        %v1142 = vpop.f32.mrb[0].mxu0
        %v1143 = vadd.f32 0.0, %v1142
        %1144 = vmatprep.mubr.f32.mxu0 0.0
        %1145 = vmatmul.mubr.f32.gmra.mrb[0].mxu0 %v1058
        %v1146 = vpop.f32.mrb[0].mxu0
        %v1147 = vadd.f32 0.0, %v1146
        %v1148 = vpop.f32.mrb[0].mxu0
        %v1149 = vadd.f32 0.0, %v1148
        %1150 = vmatprep.mubr.f32.mxu0 0.0
        %1151 = vmatmul.mubr.f32.gmra.mrb[0].mxu0 %v1059
        %v1152 = vpop.f32.mrb[0].mxu0
        %v1153 = vadd.f32 0.0, %v1152
        %v1154 = vpop.f32.mrb[0].mxu0
        %v1155 = vadd.f32 0.0, %v1154
        %1156 = vmatprep.mubr.f32.mxu0 0.0
        %1157 = vmatmul.mubr.f32.gmra.mrb[0].mxu0 %v1060
        %v1158 = vpop.f32.mrb[0].mxu0
        %v1159 = vadd.f32 0.0, %v1158
        %v1160 = vpop.f32.mrb[0].mxu0
        %v1161 = vadd.f32 0.0, %v1160
        %1162 = vdwg.mxu0
        %1163 = vmatprep.subr.mxu0 0.0
        %1164 = vmatpush1.msra.mxu0 %v467
        %1165 = vmatprep.subr.mxu0 0.0
        %1166 = vmatpush1.msra.mxu0 %v470
        %1167 = vmatprep.subr.mxu0 0.0
        %1168 = vmatpush1.msra.mxu0 %v473
        %1169 = vmatprep.subr.mxu0 0.0
        %1170 = vmatpush1.msra.mxu0 %v476
        %1171 = vmatprep.subr.mxu0 0.0
        %1172 = vmatpush1.msra.mxu0 %v479
        %1173 = vmatprep.subr.mxu0 0.0
        %1174 = vmatpush1.msra.mxu0 %v482
        %1175 = vmatprep.subr.mxu0 0.0
        %1176 = vmatpush1.msra.mxu0 %v485
        %1177 = vmatprep.subr.mxu0 0.0
        %1178 = vmatpush1.msra.mxu0 %v488
        %1179 = vmatprep.subr.mxu0 0.0
        %1180 = vmatpush1.msra.mxu0 %v491
        %1181 = vmatprep.subr.mxu0 0.0
        %1182 = vmatpush1.msra.mxu0 %v494
        %1183 = vmatprep.subr.mxu0 0.0
        %1184 = vmatpush1.msra.mxu0 %v497
        %1185 = vmatprep.subr.mxu0 0.0
        %1186 = vmatpush1.msra.mxu0 %v500
        %1187 = vmatprep.subr.mxu0 0.0
        %1188 = vmatpush1.msra.mxu0 %v503
        %1189 = vmatprep.subr.mxu0 0.0
        %1190 = vmatpush1.msra.mxu0 %v506
        %1191 = vmatprep.subr.mxu0 0.0
        %1192 = vmatpush1.msra.mxu0 %v509
        %1193 = vmatprep.subr.mxu0 0.0
        %1194 = vmatpush1.msra.mxu0 %v512
        %1195 = vmatprep.subr.mxu0 0.0
        %1196 = vmatpush1.msra.mxu0 0.0
        %1197 = vmatprep.subr.mxu0 0.0
        %1198 = vmatpush1.msra.mxu0 0.0
        %1199 = vmatprep.subr.mxu0 0.0
        %1200 = vmatpush1.msra.mxu0 0.0
        %1201 = vmatprep.subr.mxu0 0.0
        %1202 = vmatpush1.msra.mxu0 0.0
        %1203 = vmatprep.subr.mxu0 0.0
        %1204 = vmatpush1.msra.mxu0 0.0
        %1205 = vmatprep.subr.mxu0 0.0
        %1206 = vmatpush1.msra.mxu0 0.0
        %1207 = vmatprep.subr.mxu0 0.0
        %1208 = vmatpush1.msra.mxu0 0.0
        %1209 = vmatprep.subr.mxu0 0.0
        %1210 = vmatpush1.msra.mxu0 0.0
        %1211 = vmatprep.subr.mxu0 0.0
        %1212 = vmatpush1.msra.mxu0 0.0
        %1213 = vmatprep.subr.mxu0 0.0
        %1214 = vmatpush1.msra.mxu0 0.0
        %1215 = vmatprep.subr.mxu0 0.0
        %1216 = vmatpush1.msra.mxu0 0.0
        %1217 = vmatprep.subr.mxu0 0.0
        %1218 = vmatpush1.msra.mxu0 0.0
        %1219 = vmatprep.subr.mxu0 0.0
        %1220 = vmatpush1.msra.mxu0 0.0
        %1221 = vmatprep.subr.mxu0 0.0
        %1222 = vmatpush1.msra.mxu0 0.0
        %1223 = vmatprep.subr.mxu0 0.0
        %1224 = vmatpush1.msra.mxu0 0.0
        %1225 = vmatprep.subr.mxu0 0.0
        %1226 = vmatpush1.msra.mxu0 0.0
        %1227 = vmatprep.mubr.f32.mxu0 0.0
        %1228 = vmatmul.mubr.f32.gmra.mrb[0].mxu0 %v1057
        %v1229 = vpop.f32.mrb[0].mxu0
        %v1230 = vadd.f32 0.0, %v1229
        %v1231 = vpop.f32.mrb[0].mxu0
        %1232 = vmatprep.mubr.f32.mxu0 0.0
        %1233 = vmatmul.mubr.f32.gmra.mrb[0].mxu0 %v1058
        %v1234 = vpop.f32.mrb[0].mxu0
        %v1235 = vadd.f32 0.0, %v1234
        %v1236 = vpop.f32.mrb[0].mxu0
        %1237 = vmatprep.mubr.f32.mxu0 0.0
        %1238 = vmatmul.mubr.f32.gmra.mrb[0].mxu0 %v1059
        %v1239 = vpop.f32.mrb[0].mxu0
        %v1240 = vadd.f32 0.0, %v1239
        %v1241 = vpop.f32.mrb[0].mxu0
        %1242 = vmatprep.mubr.f32.mxu0 0.0
        %1243 = vmatmul.mubr.f32.gmra.mrb[0].mxu0 %v1060
        %v1244 = vpop.f32.mrb[0].mxu0
        %v1245 = vadd.f32 0.0, %v1244
        %v1246 = vpop.f32.mrb[0].mxu0
        %1247 = vdwg.mxu0
        %v1248 = vadd.f32 %v1062, %v1141
        %v1249 = vadd.f32 %v1063, %v1143
        %v1250 = vadd.f32 %v1065, %v1147
        %v1251 = vadd.f32 %v1066, %v1149
        %v1252 = vadd.f32 %v1068, %v1153
        %v1253 = vadd.f32 %v1069, %v1155
        %v1254 = vadd.f32 %v1071, %v1159
        %v1255 = vadd.f32 %v1072, %v1161
        %v1256 = vxor.u32 %v1248, 2147483648
        %v1257 = vxor.u32 %v1249, 2147483648
        %v1258 = vxor.u32 %v1250, 2147483648
        %v1259 = vxor.u32 %v1251, 2147483648
        %v1260 = vxor.u32 %v1252, 2147483648
        %v1261 = vxor.u32 %v1253, 2147483648
        %v1262 = vxor.u32 %v1254, 2147483648
        %v1263 = vxor.u32 %v1255, 2147483648
        %v1264 = vmul.f32 %v1256, 1.442695
        %v1265 = vpow.pop %v1264
        %v1266 = vmul.f32 %v1257, 1.442695
        %v1267 = vpow.pop %v1266
        %v1268 = vmul.f32 %v1258, 1.442695
        %v1269 = vpow.pop %v1268
        %v1270 = vmul.f32 %v1259, 1.442695
        %v1271 = vpow.pop %v1270
        %v1272 = vmul.f32 %v1260, 1.442695
        %v1273 = vpow.pop %v1272
        %v1274 = vmul.f32 %v1261, 1.442695
        %v1275 = vpow.pop %v1274
        %v1276 = vmul.f32 %v1262, 1.442695
        %v1277 = vpow.pop %v1276
        %v1278 = vmul.f32 %v1263, 1.442695
        %v1279 = vpow.pop %v1278
        %v1280 = vadd.f32 %v1265, 1.0
        %v1281 = vadd.f32 %v1267, 1.0
        %v1282 = vadd.f32 %v1269, 1.0
        %v1283 = vadd.f32 %v1271, 1.0
        %v1284 = vadd.f32 %v1273, 1.0
        %v1285 = vadd.f32 %v1275, 1.0
        %v1286 = vadd.f32 %v1277, 1.0
        %v1287 = vadd.f32 %v1279, 1.0
        %v1288 = vrcp.pop %v1280
        %v1289 = vmul.f32 1.0, %v1288
        %v1290 = vrcp.pop %v1281
        %v1291 = vmul.f32 1.0, %v1290
        %v1292 = vrcp.pop %v1282
        %v1293 = vmul.f32 1.0, %v1292
        %v1294 = vrcp.pop %v1283
        %v1295 = vmul.f32 1.0, %v1294
        %v1296 = vrcp.pop %v1284
        %v1297 = vmul.f32 1.0, %v1296
        %v1298 = vrcp.pop %v1285
        %v1299 = vmul.f32 1.0, %v1298
        %v1300 = vrcp.pop %v1286
        %v1301 = vmul.f32 1.0, %v1300
        %v1302 = vrcp.pop %v1287
        %v1303 = vmul.f32 1.0, %v1302
        %v1304 = vadd.f32 %v1230, %v518
        %v1305 = vadd.f32 %v1235, %v518
        %v1306 = vadd.f32 %v1240, %v518
        %v1307 = vadd.f32 %v1245, %v518
        %v1308 = vmul.f32 %v1289, %v1304
        %v1309 = vmul.f32 %v1293, %v1305
        %v1310 = vmul.f32 %v1297, %v1306
        %v1311 = vmul.f32 %v1301, %v1307
        %v1312 = vadd.f32 %v1064, %v1308
        %v1313 = vadd.f32 %v1067, %v1309
        %v1314 = vadd.f32 %v1070, %v1310
        %v1315 = vadd.f32 %v1073, %v1311
        %v1316 = vtanh.pop %v1312
        %v1317 = vtanh.pop %v1313
        %v1318 = vtanh.pop %v1314
        %v1319 = vtanh.pop %v1315
        %v1320 = vsub.f32 %v1057, %v1316
        %v1321 = vsub.f32 %v1058, %v1317
        %v1322 = vsub.f32 %v1059, %v1318
        %v1323 = vsub.f32 %v1060, %v1319
        %v1324 = vmul.f32 %v1291, %v1320
        %v1325 = vmul.f32 %v1295, %v1321
        %v1326 = vmul.f32 %v1299, %v1322
        %v1327 = vmul.f32 %v1303, %v1323
        %v1328 = vadd.f32 %v1316, %v1324
        %v1329 = vadd.f32 %v1317, %v1325
        %v1330 = vadd.f32 %v1318, %v1326
        %v1331 = vadd.f32 %v1319, %v1327
        %s1332 = scalar_lea.vmem %s431, 288 [#allocation2]
        %v1333 = vld [vmem:[%s1332] sm:$0xff]
        %v1334 = vld [vmem:[%s1332 + $0x8] sm:$0xff]
        %v1335 = vld [vmem:[%s1332 + $0x10] sm:$0xff]
        %v1336 = vld [vmem:[%s1332 + $0x18] sm:$0xff]
        %v1337 = vld [vmem:[%s1332 + $0x20] sm:$0xff]
        %v1338 = vld [vmem:[%s1332 + $0x28] sm:$0xff]
        %v1339 = vld [vmem:[%s1332 + $0x30] sm:$0xff]
        %v1340 = vld [vmem:[%s1332 + $0x38] sm:$0xff]
        %v1341 = vld [vmem:[%s1332 + $0x40] sm:$0xff]
        %v1342 = vld [vmem:[%s1332 + $0x48] sm:$0xff]
        %v1343 = vld [vmem:[%s1332 + $0x50] sm:$0xff]
        %v1344 = vld [vmem:[%s1332 + $0x58] sm:$0xff]
        %1345 = vmatprep.subr.mxu0 %v466
        %1346 = vmatpush1.msra.mxu0 %v465
        %1347 = vmatprep.subr.mxu0 %v469
        %1348 = vmatpush1.msra.mxu0 %v468
        %1349 = vmatprep.subr.mxu0 %v472
        %1350 = vmatpush1.msra.mxu0 %v471
        %1351 = vmatprep.subr.mxu0 %v475
        %1352 = vmatpush1.msra.mxu0 %v474
        %1353 = vmatprep.subr.mxu0 %v478
        %1354 = vmatpush1.msra.mxu0 %v477
        %1355 = vmatprep.subr.mxu0 %v481
        %1356 = vmatpush1.msra.mxu0 %v480
        %1357 = vmatprep.subr.mxu0 %v484
        %1358 = vmatpush1.msra.mxu0 %v483
        %1359 = vmatprep.subr.mxu0 %v487
        %1360 = vmatpush1.msra.mxu0 %v486
        %1361 = vmatprep.subr.mxu0 %v490
        %1362 = vmatpush1.msra.mxu0 %v489
        %1363 = vmatprep.subr.mxu0 %v493
        %1364 = vmatpush1.msra.mxu0 %v492
        %1365 = vmatprep.subr.mxu0 %v496
        %1366 = vmatpush1.msra.mxu0 %v495
        %1367 = vmatprep.subr.mxu0 %v499
        %1368 = vmatpush1.msra.mxu0 %v498
        %1369 = vmatprep.subr.mxu0 %v502
        %1370 = vmatpush1.msra.mxu0 %v501
        %1371 = vmatprep.subr.mxu0 %v505
        %1372 = vmatpush1.msra.mxu0 %v504
        %1373 = vmatprep.subr.mxu0 %v508
        %1374 = vmatpush1.msra.mxu0 %v507
        %1375 = vmatprep.subr.mxu0 %v511
        %1376 = vmatpush1.msra.mxu0 %v510
        %1377 = vmatprep.subr.mxu0 0.0
        %1378 = vmatpush1.msra.mxu0 0.0
        %1379 = vmatprep.subr.mxu0 0.0
        %1380 = vmatpush1.msra.mxu0 0.0
        %1381 = vmatprep.subr.mxu0 0.0
        %1382 = vmatpush1.msra.mxu0 0.0
        %1383 = vmatprep.subr.mxu0 0.0
        %1384 = vmatpush1.msra.mxu0 0.0
        %1385 = vmatprep.subr.mxu0 0.0
        %1386 = vmatpush1.msra.mxu0 0.0
        %1387 = vmatprep.subr.mxu0 0.0
        %1388 = vmatpush1.msra.mxu0 0.0
        %1389 = vmatprep.subr.mxu0 0.0
        %1390 = vmatpush1.msra.mxu0 0.0
        %1391 = vmatprep.subr.mxu0 0.0
        %1392 = vmatpush1.msra.mxu0 0.0
        %1393 = vmatprep.subr.mxu0 0.0
        %1394 = vmatpush1.msra.mxu0 0.0
        %1395 = vmatprep.subr.mxu0 0.0
        %1396 = vmatpush1.msra.mxu0 0.0
        %1397 = vmatprep.subr.mxu0 0.0
        %1398 = vmatpush1.msra.mxu0 0.0
        %1399 = vmatprep.subr.mxu0 0.0
        %1400 = vmatpush1.msra.mxu0 0.0
        %1401 = vmatprep.subr.mxu0 0.0
        %1402 = vmatpush1.msra.mxu0 0.0
        %1403 = vmatprep.subr.mxu0 0.0
        %1404 = vmatpush1.msra.mxu0 0.0
        %1405 = vmatprep.subr.mxu0 0.0
        %1406 = vmatpush1.msra.mxu0 0.0
        %1407 = vmatprep.subr.mxu0 0.0
        %1408 = vmatpush1.msra.mxu0 0.0
        %1409 = vmatprep.mubr.f32.mxu0 0.0
        %1410 = vmatmul.mubr.f32.gmra.mrb[0].mxu0 %v1328
        %v1411 = vpop.f32.mrb[0].mxu0
        %v1412 = vadd.f32 0.0, %v1411
        %v1413 = vpop.f32.mrb[0].mxu0
        %v1414 = vadd.f32 0.0, %v1413
        %1415 = vmatprep.mubr.f32.mxu0 0.0
        %1416 = vmatmul.mubr.f32.gmra.mrb[0].mxu0 %v1329
        %v1417 = vpop.f32.mrb[0].mxu0
        %v1418 = vadd.f32 0.0, %v1417
        %v1419 = vpop.f32.mrb[0].mxu0
        %v1420 = vadd.f32 0.0, %v1419
        %1421 = vmatprep.mubr.f32.mxu0 0.0
        %1422 = vmatmul.mubr.f32.gmra.mrb[0].mxu0 %v1330
        %v1423 = vpop.f32.mrb[0].mxu0
        %v1424 = vadd.f32 0.0, %v1423
        %v1425 = vpop.f32.mrb[0].mxu0
        %v1426 = vadd.f32 0.0, %v1425
        %1427 = vmatprep.mubr.f32.mxu0 0.0
        %1428 = vmatmul.mubr.f32.gmra.mrb[0].mxu0 %v1331
        %v1429 = vpop.f32.mrb[0].mxu0
        %v1430 = vadd.f32 0.0, %v1429
        %v1431 = vpop.f32.mrb[0].mxu0
        %v1432 = vadd.f32 0.0, %v1431
        %1433 = vdwg.mxu0
        %1434 = vmatprep.subr.mxu0 0.0
        %1435 = vmatpush1.msra.mxu0 %v467
        %1436 = vmatprep.subr.mxu0 0.0
        %1437 = vmatpush1.msra.mxu0 %v470
        %1438 = vmatprep.subr.mxu0 0.0
        %1439 = vmatpush1.msra.mxu0 %v473
        %1440 = vmatprep.subr.mxu0 0.0
        %1441 = vmatpush1.msra.mxu0 %v476
        %1442 = vmatprep.subr.mxu0 0.0
        %1443 = vmatpush1.msra.mxu0 %v479
        %1444 = vmatprep.subr.mxu0 0.0
        %1445 = vmatpush1.msra.mxu0 %v482
        %1446 = vmatprep.subr.mxu0 0.0
        %1447 = vmatpush1.msra.mxu0 %v485
        %1448 = vmatprep.subr.mxu0 0.0
        %1449 = vmatpush1.msra.mxu0 %v488
        %1450 = vmatprep.subr.mxu0 0.0
        %1451 = vmatpush1.msra.mxu0 %v491
        %1452 = vmatprep.subr.mxu0 0.0
        %1453 = vmatpush1.msra.mxu0 %v494
        %1454 = vmatprep.subr.mxu0 0.0
        %1455 = vmatpush1.msra.mxu0 %v497
        %1456 = vmatprep.subr.mxu0 0.0
        %1457 = vmatpush1.msra.mxu0 %v500
        %1458 = vmatprep.subr.mxu0 0.0
        %1459 = vmatpush1.msra.mxu0 %v503
        %1460 = vmatprep.subr.mxu0 0.0
        %1461 = vmatpush1.msra.mxu0 %v506
        %1462 = vmatprep.subr.mxu0 0.0
        %1463 = vmatpush1.msra.mxu0 %v509
        %1464 = vmatprep.subr.mxu0 0.0
        %1465 = vmatpush1.msra.mxu0 %v512
        %1466 = vmatprep.subr.mxu0 0.0
        %1467 = vmatpush1.msra.mxu0 0.0
        %1468 = vmatprep.subr.mxu0 0.0
        %1469 = vmatpush1.msra.mxu0 0.0
        %1470 = vmatprep.subr.mxu0 0.0
        %1471 = vmatpush1.msra.mxu0 0.0
        %1472 = vmatprep.subr.mxu0 0.0
        %1473 = vmatpush1.msra.mxu0 0.0
        %1474 = vmatprep.subr.mxu0 0.0
        %1475 = vmatpush1.msra.mxu0 0.0
        %1476 = vmatprep.subr.mxu0 0.0
        %1477 = vmatpush1.msra.mxu0 0.0
        %1478 = vmatprep.subr.mxu0 0.0
        %1479 = vmatpush1.msra.mxu0 0.0
        %1480 = vmatprep.subr.mxu0 0.0
        %1481 = vmatpush1.msra.mxu0 0.0
        %1482 = vmatprep.subr.mxu0 0.0
        %1483 = vmatpush1.msra.mxu0 0.0
        %1484 = vmatprep.subr.mxu0 0.0
        %1485 = vmatpush1.msra.mxu0 0.0
        %1486 = vmatprep.subr.mxu0 0.0
        %1487 = vmatpush1.msra.mxu0 0.0
        %1488 = vmatprep.subr.mxu0 0.0
        %1489 = vmatpush1.msra.mxu0 0.0
        %1490 = vmatprep.subr.mxu0 0.0
        %1491 = vmatpush1.msra.mxu0 0.0
        %1492 = vmatprep.subr.mxu0 0.0
        %1493 = vmatpush1.msra.mxu0 0.0
        %1494 = vmatprep.subr.mxu0 0.0
        %1495 = vmatpush1.msra.mxu0 0.0
        %1496 = vmatprep.subr.mxu0 0.0
        %1497 = vmatpush1.msra.mxu0 0.0
        %1498 = vmatprep.mubr.f32.mxu0 0.0
        %1499 = vmatmul.mubr.f32.gmra.mrb[0].mxu0 %v1328
        %v1500 = vpop.f32.mrb[0].mxu0
        %v1501 = vadd.f32 0.0, %v1500
        %v1502 = vpop.f32.mrb[0].mxu0
        %1503 = vmatprep.mubr.f32.mxu0 0.0
        %1504 = vmatmul.mubr.f32.gmra.mrb[0].mxu0 %v1329
        %v1505 = vpop.f32.mrb[0].mxu0
        %v1506 = vadd.f32 0.0, %v1505
        %v1507 = vpop.f32.mrb[0].mxu0
        %1508 = vmatprep.mubr.f32.mxu0 0.0
        %1509 = vmatmul.mubr.f32.gmra.mrb[0].mxu0 %v1330
        %v1510 = vpop.f32.mrb[0].mxu0
        %v1511 = vadd.f32 0.0, %v1510
        %v1512 = vpop.f32.mrb[0].mxu0
        %1513 = vmatprep.mubr.f32.mxu0 0.0
        %1514 = vmatmul.mubr.f32.gmra.mrb[0].mxu0 %v1331
        %v1515 = vpop.f32.mrb[0].mxu0
        %v1516 = vadd.f32 0.0, %v1515
        %v1517 = vpop.f32.mrb[0].mxu0
        %1518 = vdwg.mxu0
        %v1519 = vadd.f32 %v1333, %v1412
        %v1520 = vadd.f32 %v1334, %v1414
        %v1521 = vadd.f32 %v1336, %v1418
        %v1522 = vadd.f32 %v1337, %v1420
        %v1523 = vadd.f32 %v1339, %v1424
        %v1524 = vadd.f32 %v1340, %v1426
        %v1525 = vadd.f32 %v1342, %v1430
        %v1526 = vadd.f32 %v1343, %v1432
        %v1527 = vxor.u32 %v1519, 2147483648
        %v1528 = vxor.u32 %v1520, 2147483648
        %v1529 = vxor.u32 %v1521, 2147483648
        %v1530 = vxor.u32 %v1522, 2147483648
        %v1531 = vxor.u32 %v1523, 2147483648
        %v1532 = vxor.u32 %v1524, 2147483648
        %v1533 = vxor.u32 %v1525, 2147483648
        %v1534 = vxor.u32 %v1526, 2147483648
        %v1535 = vmul.f32 %v1527, 1.442695
        %v1536 = vpow.pop %v1535
        %v1537 = vmul.f32 %v1528, 1.442695
        %v1538 = vpow.pop %v1537
        %v1539 = vmul.f32 %v1529, 1.442695
        %v1540 = vpow.pop %v1539
        %v1541 = vmul.f32 %v1530, 1.442695
        %v1542 = vpow.pop %v1541
        %v1543 = vmul.f32 %v1531, 1.442695
        %v1544 = vpow.pop %v1543
        %v1545 = vmul.f32 %v1532, 1.442695
        %v1546 = vpow.pop %v1545
        %v1547 = vmul.f32 %v1533, 1.442695
        %v1548 = vpow.pop %v1547
        %v1549 = vmul.f32 %v1534, 1.442695
        %v1550 = vpow.pop %v1549
        %v1551 = vadd.f32 %v1536, 1.0
        %v1552 = vadd.f32 %v1538, 1.0
        %v1553 = vadd.f32 %v1540, 1.0
        %v1554 = vadd.f32 %v1542, 1.0
        %v1555 = vadd.f32 %v1544, 1.0
        %v1556 = vadd.f32 %v1546, 1.0
        %v1557 = vadd.f32 %v1548, 1.0
        %v1558 = vadd.f32 %v1550, 1.0
        %v1559 = vrcp.pop %v1551
        %v1560 = vmul.f32 1.0, %v1559
        %v1561 = vrcp.pop %v1552
        %v1562 = vmul.f32 1.0, %v1561
        %v1563 = vrcp.pop %v1553
        %v1564 = vmul.f32 1.0, %v1563
        %v1565 = vrcp.pop %v1554
        %v1566 = vmul.f32 1.0, %v1565
        %v1567 = vrcp.pop %v1555
        %v1568 = vmul.f32 1.0, %v1567
        %v1569 = vrcp.pop %v1556
        %v1570 = vmul.f32 1.0, %v1569
        %v1571 = vrcp.pop %v1557
        %v1572 = vmul.f32 1.0, %v1571
        %v1573 = vrcp.pop %v1558
        %v1574 = vmul.f32 1.0, %v1573
        %v1575 = vadd.f32 %v1501, %v518
        %v1576 = vadd.f32 %v1506, %v518
        %v1577 = vadd.f32 %v1511, %v518
        %v1578 = vadd.f32 %v1516, %v518
        %v1579 = vmul.f32 %v1560, %v1575
        %v1580 = vmul.f32 %v1564, %v1576
        %v1581 = vmul.f32 %v1568, %v1577
        %v1582 = vmul.f32 %v1572, %v1578
        %v1583 = vadd.f32 %v1335, %v1579
        %v1584 = vadd.f32 %v1338, %v1580
        %v1585 = vadd.f32 %v1341, %v1581
        %v1586 = vadd.f32 %v1344, %v1582
        %v1587 = vtanh.pop %v1583
        %v1588 = vtanh.pop %v1584
        %v1589 = vtanh.pop %v1585
        %v1590 = vtanh.pop %v1586
        %v1591 = vsub.f32 %v1328, %v1587
        %v1592 = vsub.f32 %v1329, %v1588
        %v1593 = vsub.f32 %v1330, %v1589
        %v1594 = vsub.f32 %v1331, %v1590
        %v1595 = vmul.f32 %v1562, %v1591
        %v1596 = vmul.f32 %v1566, %v1592
        %v1597 = vmul.f32 %v1570, %v1593
        %v1598 = vmul.f32 %v1574, %v1594
        %v1599 = vadd.f32 %v1587, %v1595
        %v1600 = vadd.f32 %v1588, %v1596
        %v1601 = vadd.f32 %v1589, %v1597
        %v1602 = vadd.f32 %v1590, %v1598
        %s1603 = scalar_lea.vmem %s431, 384 [#allocation2]
        %v1604 = vld [vmem:[%s1603] sm:$0xff]
        %v1605 = vld [vmem:[%s1603 + $0x8] sm:$0xff]
        %v1606 = vld [vmem:[%s1603 + $0x10] sm:$0xff]
        %v1607 = vld [vmem:[%s1603 + $0x18] sm:$0xff]
        %v1608 = vld [vmem:[%s1603 + $0x20] sm:$0xff]
        %v1609 = vld [vmem:[%s1603 + $0x28] sm:$0xff]
        %v1610 = vld [vmem:[%s1603 + $0x30] sm:$0xff]
        %v1611 = vld [vmem:[%s1603 + $0x38] sm:$0xff]
        %v1612 = vld [vmem:[%s1603 + $0x40] sm:$0xff]
        %v1613 = vld [vmem:[%s1603 + $0x48] sm:$0xff]
        %v1614 = vld [vmem:[%s1603 + $0x50] sm:$0xff]
        %v1615 = vld [vmem:[%s1603 + $0x58] sm:$0xff]
        %1616 = vmatprep.subr.mxu0 %v466
        %1617 = vmatpush1.msra.mxu0 %v465
        %1618 = vmatprep.subr.mxu0 %v469
        %1619 = vmatpush1.msra.mxu0 %v468
        %1620 = vmatprep.subr.mxu0 %v472
        %1621 = vmatpush1.msra.mxu0 %v471
        %1622 = vmatprep.subr.mxu0 %v475
        %1623 = vmatpush1.msra.mxu0 %v474
        %1624 = vmatprep.subr.mxu0 %v478
        %1625 = vmatpush1.msra.mxu0 %v477
        %1626 = vmatprep.subr.mxu0 %v481
        %1627 = vmatpush1.msra.mxu0 %v480
        %1628 = vmatprep.subr.mxu0 %v484
        %1629 = vmatpush1.msra.mxu0 %v483
        %1630 = vmatprep.subr.mxu0 %v487
        %1631 = vmatpush1.msra.mxu0 %v486
        %1632 = vmatprep.subr.mxu0 %v490
        %1633 = vmatpush1.msra.mxu0 %v489
        %1634 = vmatprep.subr.mxu0 %v493
        %1635 = vmatpush1.msra.mxu0 %v492
        %1636 = vmatprep.subr.mxu0 %v496
        %1637 = vmatpush1.msra.mxu0 %v495
        %1638 = vmatprep.subr.mxu0 %v499
        %1639 = vmatpush1.msra.mxu0 %v498
        %1640 = vmatprep.subr.mxu0 %v502
        %1641 = vmatpush1.msra.mxu0 %v501
        %1642 = vmatprep.subr.mxu0 %v505
        %1643 = vmatpush1.msra.mxu0 %v504
        %1644 = vmatprep.subr.mxu0 %v508
        %1645 = vmatpush1.msra.mxu0 %v507
        %1646 = vmatprep.subr.mxu0 %v511
        %1647 = vmatpush1.msra.mxu0 %v510
        %1648 = vmatprep.subr.mxu0 0.0
        %1649 = vmatpush1.msra.mxu0 0.0
        %1650 = vmatprep.subr.mxu0 0.0
        %1651 = vmatpush1.msra.mxu0 0.0
        %1652 = vmatprep.subr.mxu0 0.0
        %1653 = vmatpush1.msra.mxu0 0.0
        %1654 = vmatprep.subr.mxu0 0.0
        %1655 = vmatpush1.msra.mxu0 0.0
        %1656 = vmatprep.subr.mxu0 0.0
        %1657 = vmatpush1.msra.mxu0 0.0
        %1658 = vmatprep.subr.mxu0 0.0
        %1659 = vmatpush1.msra.mxu0 0.0
        %1660 = vmatprep.subr.mxu0 0.0
        %1661 = vmatpush1.msra.mxu0 0.0
        %1662 = vmatprep.subr.mxu0 0.0
        %1663 = vmatpush1.msra.mxu0 0.0
        %1664 = vmatprep.subr.mxu0 0.0
        %1665 = vmatpush1.msra.mxu0 0.0
        %1666 = vmatprep.subr.mxu0 0.0
        %1667 = vmatpush1.msra.mxu0 0.0
        %1668 = vmatprep.subr.mxu0 0.0
        %1669 = vmatpush1.msra.mxu0 0.0
        %1670 = vmatprep.subr.mxu0 0.0
        %1671 = vmatpush1.msra.mxu0 0.0
        %1672 = vmatprep.subr.mxu0 0.0
        %1673 = vmatpush1.msra.mxu0 0.0
        %1674 = vmatprep.subr.mxu0 0.0
        %1675 = vmatpush1.msra.mxu0 0.0
        %1676 = vmatprep.subr.mxu0 0.0
        %1677 = vmatpush1.msra.mxu0 0.0
        %1678 = vmatprep.subr.mxu0 0.0
        %1679 = vmatpush1.msra.mxu0 0.0
        %1680 = vmatprep.mubr.f32.mxu0 0.0
        %1681 = vmatmul.mubr.f32.gmra.mrb[0].mxu0 %v1599
        %v1682 = vpop.f32.mrb[0].mxu0
        %v1683 = vadd.f32 0.0, %v1682
        %v1684 = vpop.f32.mrb[0].mxu0
        %v1685 = vadd.f32 0.0, %v1684
        %1686 = vmatprep.mubr.f32.mxu0 0.0
        %1687 = vmatmul.mubr.f32.gmra.mrb[0].mxu0 %v1600
        %v1688 = vpop.f32.mrb[0].mxu0
        %v1689 = vadd.f32 0.0, %v1688
        %v1690 = vpop.f32.mrb[0].mxu0
        %v1691 = vadd.f32 0.0, %v1690
        %1692 = vmatprep.mubr.f32.mxu0 0.0
        %1693 = vmatmul.mubr.f32.gmra.mrb[0].mxu0 %v1601
        %v1694 = vpop.f32.mrb[0].mxu0
        %v1695 = vadd.f32 0.0, %v1694
        %v1696 = vpop.f32.mrb[0].mxu0
        %v1697 = vadd.f32 0.0, %v1696
        %1698 = vmatprep.mubr.f32.mxu0 0.0
        %1699 = vmatmul.mubr.f32.gmra.mrb[0].mxu0 %v1602
        %v1700 = vpop.f32.mrb[0].mxu0
        %v1701 = vadd.f32 0.0, %v1700
        %v1702 = vpop.f32.mrb[0].mxu0
        %v1703 = vadd.f32 0.0, %v1702
        %1704 = vdwg.mxu0
        %1705 = vmatprep.subr.mxu0 0.0
        %1706 = vmatpush1.msra.mxu0 %v467
        %1707 = vmatprep.subr.mxu0 0.0
        %1708 = vmatpush1.msra.mxu0 %v470
        %1709 = vmatprep.subr.mxu0 0.0
        %1710 = vmatpush1.msra.mxu0 %v473
        %1711 = vmatprep.subr.mxu0 0.0
        %1712 = vmatpush1.msra.mxu0 %v476
        %1713 = vmatprep.subr.mxu0 0.0
        %1714 = vmatpush1.msra.mxu0 %v479
        %1715 = vmatprep.subr.mxu0 0.0
        %1716 = vmatpush1.msra.mxu0 %v482
        %1717 = vmatprep.subr.mxu0 0.0
        %1718 = vmatpush1.msra.mxu0 %v485
        %1719 = vmatprep.subr.mxu0 0.0
        %1720 = vmatpush1.msra.mxu0 %v488
        %1721 = vmatprep.subr.mxu0 0.0
        %1722 = vmatpush1.msra.mxu0 %v491
        %1723 = vmatprep.subr.mxu0 0.0
        %1724 = vmatpush1.msra.mxu0 %v494
        %1725 = vmatprep.subr.mxu0 0.0
        %1726 = vmatpush1.msra.mxu0 %v497
        %1727 = vmatprep.subr.mxu0 0.0
        %1728 = vmatpush1.msra.mxu0 %v500
        %1729 = vmatprep.subr.mxu0 0.0
        %1730 = vmatpush1.msra.mxu0 %v503
        %1731 = vmatprep.subr.mxu0 0.0
        %1732 = vmatpush1.msra.mxu0 %v506
        %1733 = vmatprep.subr.mxu0 0.0
        %1734 = vmatpush1.msra.mxu0 %v509
        %1735 = vmatprep.subr.mxu0 0.0
        %1736 = vmatpush1.msra.mxu0 %v512
        %1737 = vmatprep.subr.mxu0 0.0
        %1738 = vmatpush1.msra.mxu0 0.0
        %1739 = vmatprep.subr.mxu0 0.0
        %1740 = vmatpush1.msra.mxu0 0.0
        %1741 = vmatprep.subr.mxu0 0.0
        %1742 = vmatpush1.msra.mxu0 0.0
        %1743 = vmatprep.subr.mxu0 0.0
        %1744 = vmatpush1.msra.mxu0 0.0
        %1745 = vmatprep.subr.mxu0 0.0
        %1746 = vmatpush1.msra.mxu0 0.0
        %1747 = vmatprep.subr.mxu0 0.0
        %1748 = vmatpush1.msra.mxu0 0.0
        %1749 = vmatprep.subr.mxu0 0.0
        %1750 = vmatpush1.msra.mxu0 0.0
        %1751 = vmatprep.subr.mxu0 0.0
        %1752 = vmatpush1.msra.mxu0 0.0
        %1753 = vmatprep.subr.mxu0 0.0
        %1754 = vmatpush1.msra.mxu0 0.0
        %1755 = vmatprep.subr.mxu0 0.0
        %1756 = vmatpush1.msra.mxu0 0.0
        %1757 = vmatprep.subr.mxu0 0.0
        %1758 = vmatpush1.msra.mxu0 0.0
        %1759 = vmatprep.subr.mxu0 0.0
        %1760 = vmatpush1.msra.mxu0 0.0
        %1761 = vmatprep.subr.mxu0 0.0
        %1762 = vmatpush1.msra.mxu0 0.0
        %1763 = vmatprep.subr.mxu0 0.0
        %1764 = vmatpush1.msra.mxu0 0.0
        %1765 = vmatprep.subr.mxu0 0.0
        %1766 = vmatpush1.msra.mxu0 0.0
        %1767 = vmatprep.subr.mxu0 0.0
        %1768 = vmatpush1.msra.mxu0 0.0
        %1769 = vmatprep.mubr.f32.mxu0 0.0
        %1770 = vmatmul.mubr.f32.gmra.mrb[0].mxu0 %v1599
        %v1771 = vpop.f32.mrb[0].mxu0
        %v1772 = vadd.f32 0.0, %v1771
        %v1773 = vpop.f32.mrb[0].mxu0
        %1774 = vmatprep.mubr.f32.mxu0 0.0
        %1775 = vmatmul.mubr.f32.gmra.mrb[0].mxu0 %v1600
        %v1776 = vpop.f32.mrb[0].mxu0
        %v1777 = vadd.f32 0.0, %v1776
        %v1778 = vpop.f32.mrb[0].mxu0
        %1779 = vmatprep.mubr.f32.mxu0 0.0
        %1780 = vmatmul.mubr.f32.gmra.mrb[0].mxu0 %v1601
        %v1781 = vpop.f32.mrb[0].mxu0
        %v1782 = vadd.f32 0.0, %v1781
        %v1783 = vpop.f32.mrb[0].mxu0
        %1784 = vmatprep.mubr.f32.mxu0 0.0
        %1785 = vmatmul.mubr.f32.gmra.mrb[0].mxu0 %v1602
        %v1786 = vpop.f32.mrb[0].mxu0
        %v1787 = vadd.f32 0.0, %v1786
        %v1788 = vpop.f32.mrb[0].mxu0
        %1789 = vdwg.mxu0
        %v1790 = vadd.f32 %v1604, %v1683
        %v1791 = vadd.f32 %v1605, %v1685
        %v1792 = vadd.f32 %v1607, %v1689
        %v1793 = vadd.f32 %v1608, %v1691
        %v1794 = vadd.f32 %v1610, %v1695
        %v1795 = vadd.f32 %v1611, %v1697
        %v1796 = vadd.f32 %v1613, %v1701
        %v1797 = vadd.f32 %v1614, %v1703
        %v1798 = vxor.u32 %v1790, 2147483648
        %v1799 = vxor.u32 %v1791, 2147483648
        %v1800 = vxor.u32 %v1792, 2147483648
        %v1801 = vxor.u32 %v1793, 2147483648
        %v1802 = vxor.u32 %v1794, 2147483648
        %v1803 = vxor.u32 %v1795, 2147483648
        %v1804 = vxor.u32 %v1796, 2147483648
        %v1805 = vxor.u32 %v1797, 2147483648
        %v1806 = vmul.f32 %v1798, 1.442695
        %v1807 = vpow.pop %v1806
        %v1808 = vmul.f32 %v1799, 1.442695
        %v1809 = vpow.pop %v1808
        %v1810 = vmul.f32 %v1800, 1.442695
        %v1811 = vpow.pop %v1810
        %v1812 = vmul.f32 %v1801, 1.442695
        %v1813 = vpow.pop %v1812
        %v1814 = vmul.f32 %v1802, 1.442695
        %v1815 = vpow.pop %v1814
        %v1816 = vmul.f32 %v1803, 1.442695
        %v1817 = vpow.pop %v1816
        %v1818 = vmul.f32 %v1804, 1.442695
        %v1819 = vpow.pop %v1818
        %v1820 = vmul.f32 %v1805, 1.442695
        %v1821 = vpow.pop %v1820
        %v1822 = vadd.f32 %v1807, 1.0
        %v1823 = vadd.f32 %v1809, 1.0
        %v1824 = vadd.f32 %v1811, 1.0
        %v1825 = vadd.f32 %v1813, 1.0
        %v1826 = vadd.f32 %v1815, 1.0
        %v1827 = vadd.f32 %v1817, 1.0
        %v1828 = vadd.f32 %v1819, 1.0
        %v1829 = vadd.f32 %v1821, 1.0
        %v1830 = vrcp.pop %v1822
        %v1831 = vmul.f32 1.0, %v1830
        %v1832 = vrcp.pop %v1823
        %v1833 = vmul.f32 1.0, %v1832
        %v1834 = vrcp.pop %v1824
        %v1835 = vmul.f32 1.0, %v1834
        %v1836 = vrcp.pop %v1825
        %v1837 = vmul.f32 1.0, %v1836
        %v1838 = vrcp.pop %v1826
        %v1839 = vmul.f32 1.0, %v1838
        %v1840 = vrcp.pop %v1827
        %v1841 = vmul.f32 1.0, %v1840
        %v1842 = vrcp.pop %v1828
        %v1843 = vmul.f32 1.0, %v1842
        %v1844 = vrcp.pop %v1829
        %v1845 = vmul.f32 1.0, %v1844
        %v1846 = vadd.f32 %v1772, %v518
        %v1847 = vadd.f32 %v1777, %v518
        %v1848 = vadd.f32 %v1782, %v518
        %v1849 = vadd.f32 %v1787, %v518
        %v1850 = vmul.f32 %v1831, %v1846
        %v1851 = vmul.f32 %v1835, %v1847
        %v1852 = vmul.f32 %v1839, %v1848
        %v1853 = vmul.f32 %v1843, %v1849
        %v1854 = vadd.f32 %v1606, %v1850
        %v1855 = vadd.f32 %v1609, %v1851
        %v1856 = vadd.f32 %v1612, %v1852
        %v1857 = vadd.f32 %v1615, %v1853
        %v1858 = vtanh.pop %v1854
        %v1859 = vtanh.pop %v1855
        %v1860 = vtanh.pop %v1856
        %v1861 = vtanh.pop %v1857
        %v1862 = vsub.f32 %v1599, %v1858
        %v1863 = vsub.f32 %v1600, %v1859
        %v1864 = vsub.f32 %v1601, %v1860
        %v1865 = vsub.f32 %v1602, %v1861
        %v1866 = vmul.f32 %v1833, %v1862
        %v1867 = vmul.f32 %v1837, %v1863
        %v1868 = vmul.f32 %v1841, %v1864
        %v1869 = vmul.f32 %v1845, %v1865
        %v1870 = vadd.f32 %v1858, %v1866
        %v1871 = vadd.f32 %v1859, %v1867
        %v1872 = vadd.f32 %v1860, %v1868
        %v1873 = vadd.f32 %v1861, %v1869
        %s1874 = scalar_lea.vmem %s431, 480 [#allocation2]
        %v1875 = vld [vmem:[%s1874] sm:$0xff]
        %v1876 = vld [vmem:[%s1874 + $0x8] sm:$0xff]
        %v1877 = vld [vmem:[%s1874 + $0x10] sm:$0xff]
        %v1878 = vld [vmem:[%s1874 + $0x18] sm:$0xff]
        %v1879 = vld [vmem:[%s1874 + $0x20] sm:$0xff]
        %v1880 = vld [vmem:[%s1874 + $0x28] sm:$0xff]
        %v1881 = vld [vmem:[%s1874 + $0x30] sm:$0xff]
        %v1882 = vld [vmem:[%s1874 + $0x38] sm:$0xff]
        %v1883 = vld [vmem:[%s1874 + $0x40] sm:$0xff]
        %v1884 = vld [vmem:[%s1874 + $0x48] sm:$0xff]
        %v1885 = vld [vmem:[%s1874 + $0x50] sm:$0xff]
        %v1886 = vld [vmem:[%s1874 + $0x58] sm:$0xff]
        %1887 = vmatprep.subr.mxu0 %v466
        %1888 = vmatpush1.msra.mxu0 %v465
        %1889 = vmatprep.subr.mxu0 %v469
        %1890 = vmatpush1.msra.mxu0 %v468
        %1891 = vmatprep.subr.mxu0 %v472
        %1892 = vmatpush1.msra.mxu0 %v471
        %1893 = vmatprep.subr.mxu0 %v475
        %1894 = vmatpush1.msra.mxu0 %v474
        %1895 = vmatprep.subr.mxu0 %v478
        %1896 = vmatpush1.msra.mxu0 %v477
        %1897 = vmatprep.subr.mxu0 %v481
        %1898 = vmatpush1.msra.mxu0 %v480
        %1899 = vmatprep.subr.mxu0 %v484
        %1900 = vmatpush1.msra.mxu0 %v483
        %1901 = vmatprep.subr.mxu0 %v487
        %1902 = vmatpush1.msra.mxu0 %v486
        %1903 = vmatprep.subr.mxu0 %v490
        %1904 = vmatpush1.msra.mxu0 %v489
        %1905 = vmatprep.subr.mxu0 %v493
        %1906 = vmatpush1.msra.mxu0 %v492
        %1907 = vmatprep.subr.mxu0 %v496
        %1908 = vmatpush1.msra.mxu0 %v495
        %1909 = vmatprep.subr.mxu0 %v499
        %1910 = vmatpush1.msra.mxu0 %v498
        %1911 = vmatprep.subr.mxu0 %v502
        %1912 = vmatpush1.msra.mxu0 %v501
        %1913 = vmatprep.subr.mxu0 %v505
        %1914 = vmatpush1.msra.mxu0 %v504
        %1915 = vmatprep.subr.mxu0 %v508
        %1916 = vmatpush1.msra.mxu0 %v507
        %1917 = vmatprep.subr.mxu0 %v511
        %1918 = vmatpush1.msra.mxu0 %v510
        %1919 = vmatprep.subr.mxu0 0.0
        %1920 = vmatpush1.msra.mxu0 0.0
        %1921 = vmatprep.subr.mxu0 0.0
        %1922 = vmatpush1.msra.mxu0 0.0
        %1923 = vmatprep.subr.mxu0 0.0
        %1924 = vmatpush1.msra.mxu0 0.0
        %1925 = vmatprep.subr.mxu0 0.0
        %1926 = vmatpush1.msra.mxu0 0.0
        %1927 = vmatprep.subr.mxu0 0.0
        %1928 = vmatpush1.msra.mxu0 0.0
        %1929 = vmatprep.subr.mxu0 0.0
        %1930 = vmatpush1.msra.mxu0 0.0
        %1931 = vmatprep.subr.mxu0 0.0
        %1932 = vmatpush1.msra.mxu0 0.0
        %1933 = vmatprep.subr.mxu0 0.0
        %1934 = vmatpush1.msra.mxu0 0.0
        %1935 = vmatprep.subr.mxu0 0.0
        %1936 = vmatpush1.msra.mxu0 0.0
        %1937 = vmatprep.subr.mxu0 0.0
        %1938 = vmatpush1.msra.mxu0 0.0
        %1939 = vmatprep.subr.mxu0 0.0
        %1940 = vmatpush1.msra.mxu0 0.0
        %1941 = vmatprep.subr.mxu0 0.0
        %1942 = vmatpush1.msra.mxu0 0.0
        %1943 = vmatprep.subr.mxu0 0.0
        %1944 = vmatpush1.msra.mxu0 0.0
        %1945 = vmatprep.subr.mxu0 0.0
        %1946 = vmatpush1.msra.mxu0 0.0
        %1947 = vmatprep.subr.mxu0 0.0
        %1948 = vmatpush1.msra.mxu0 0.0
        %1949 = vmatprep.subr.mxu0 0.0
        %1950 = vmatpush1.msra.mxu0 0.0
        %1951 = vmatprep.mubr.f32.mxu0 0.0
        %1952 = vmatmul.mubr.f32.gmra.mrb[0].mxu0 %v1870
        %v1953 = vpop.f32.mrb[0].mxu0
        %v1954 = vadd.f32 0.0, %v1953
        %v1955 = vpop.f32.mrb[0].mxu0
        %v1956 = vadd.f32 0.0, %v1955
        %1957 = vmatprep.mubr.f32.mxu0 0.0
        %1958 = vmatmul.mubr.f32.gmra.mrb[0].mxu0 %v1871
        %v1959 = vpop.f32.mrb[0].mxu0
        %v1960 = vadd.f32 0.0, %v1959
        %v1961 = vpop.f32.mrb[0].mxu0
        %v1962 = vadd.f32 0.0, %v1961
        %1963 = vmatprep.mubr.f32.mxu0 0.0
        %1964 = vmatmul.mubr.f32.gmra.mrb[0].mxu0 %v1872
        %v1965 = vpop.f32.mrb[0].mxu0
        %v1966 = vadd.f32 0.0, %v1965
        %v1967 = vpop.f32.mrb[0].mxu0
        %v1968 = vadd.f32 0.0, %v1967
        %1969 = vmatprep.mubr.f32.mxu0 0.0
        %1970 = vmatmul.mubr.f32.gmra.mrb[0].mxu0 %v1873
        %v1971 = vpop.f32.mrb[0].mxu0
        %v1972 = vadd.f32 0.0, %v1971
        %v1973 = vpop.f32.mrb[0].mxu0
        %v1974 = vadd.f32 0.0, %v1973
        %1975 = vdwg.mxu0
        %1976 = vmatprep.subr.mxu0 0.0
        %1977 = vmatpush1.msra.mxu0 %v467
        %1978 = vmatprep.subr.mxu0 0.0
        %1979 = vmatpush1.msra.mxu0 %v470
        %1980 = vmatprep.subr.mxu0 0.0
        %1981 = vmatpush1.msra.mxu0 %v473
        %1982 = vmatprep.subr.mxu0 0.0
        %1983 = vmatpush1.msra.mxu0 %v476
        %1984 = vmatprep.subr.mxu0 0.0
        %1985 = vmatpush1.msra.mxu0 %v479
        %1986 = vmatprep.subr.mxu0 0.0
        %1987 = vmatpush1.msra.mxu0 %v482
        %1988 = vmatprep.subr.mxu0 0.0
        %1989 = vmatpush1.msra.mxu0 %v485
        %1990 = vmatprep.subr.mxu0 0.0
        %1991 = vmatpush1.msra.mxu0 %v488
        %1992 = vmatprep.subr.mxu0 0.0
        %1993 = vmatpush1.msra.mxu0 %v491
        %1994 = vmatprep.subr.mxu0 0.0
        %1995 = vmatpush1.msra.mxu0 %v494
        %1996 = vmatprep.subr.mxu0 0.0
        %1997 = vmatpush1.msra.mxu0 %v497
        %1998 = vmatprep.subr.mxu0 0.0
        %1999 = vmatpush1.msra.mxu0 %v500
        %2000 = vmatprep.subr.mxu0 0.0
        %2001 = vmatpush1.msra.mxu0 %v503
        %2002 = vmatprep.subr.mxu0 0.0
        %2003 = vmatpush1.msra.mxu0 %v506
        %2004 = vmatprep.subr.mxu0 0.0
        %2005 = vmatpush1.msra.mxu0 %v509
        %2006 = vmatprep.subr.mxu0 0.0
        %2007 = vmatpush1.msra.mxu0 %v512
        %2008 = vmatprep.subr.mxu0 0.0
        %2009 = vmatpush1.msra.mxu0 0.0
        %2010 = vmatprep.subr.mxu0 0.0
        %2011 = vmatpush1.msra.mxu0 0.0
        %2012 = vmatprep.subr.mxu0 0.0
        %2013 = vmatpush1.msra.mxu0 0.0
        %2014 = vmatprep.subr.mxu0 0.0
        %2015 = vmatpush1.msra.mxu0 0.0
        %2016 = vmatprep.subr.mxu0 0.0
        %2017 = vmatpush1.msra.mxu0 0.0
        %2018 = vmatprep.subr.mxu0 0.0
        %2019 = vmatpush1.msra.mxu0 0.0
        %2020 = vmatprep.subr.mxu0 0.0
        %2021 = vmatpush1.msra.mxu0 0.0
        %2022 = vmatprep.subr.mxu0 0.0
        %2023 = vmatpush1.msra.mxu0 0.0
        %2024 = vmatprep.subr.mxu0 0.0
        %2025 = vmatpush1.msra.mxu0 0.0
        %2026 = vmatprep.subr.mxu0 0.0
        %2027 = vmatpush1.msra.mxu0 0.0
        %2028 = vmatprep.subr.mxu0 0.0
        %2029 = vmatpush1.msra.mxu0 0.0
        %2030 = vmatprep.subr.mxu0 0.0
        %2031 = vmatpush1.msra.mxu0 0.0
        %2032 = vmatprep.subr.mxu0 0.0
        %2033 = vmatpush1.msra.mxu0 0.0
        %2034 = vmatprep.subr.mxu0 0.0
        %2035 = vmatpush1.msra.mxu0 0.0
        %2036 = vmatprep.subr.mxu0 0.0
        %2037 = vmatpush1.msra.mxu0 0.0
        %2038 = vmatprep.subr.mxu0 0.0
        %2039 = vmatpush1.msra.mxu0 0.0
        %2040 = vmatprep.mubr.f32.mxu0 0.0
        %2041 = vmatmul.mubr.f32.gmra.mrb[0].mxu0 %v1870
        %v2042 = vpop.f32.mrb[0].mxu0
        %v2043 = vadd.f32 0.0, %v2042
        %v2044 = vpop.f32.mrb[0].mxu0
        %2045 = vmatprep.mubr.f32.mxu0 0.0
        %2046 = vmatmul.mubr.f32.gmra.mrb[0].mxu0 %v1871
        %v2047 = vpop.f32.mrb[0].mxu0
        %v2048 = vadd.f32 0.0, %v2047
        %v2049 = vpop.f32.mrb[0].mxu0
        %2050 = vmatprep.mubr.f32.mxu0 0.0
        %2051 = vmatmul.mubr.f32.gmra.mrb[0].mxu0 %v1872
        %v2052 = vpop.f32.mrb[0].mxu0
        %v2053 = vadd.f32 0.0, %v2052
        %v2054 = vpop.f32.mrb[0].mxu0
        %2055 = vmatprep.mubr.f32.mxu0 0.0
        %2056 = vmatmul.mubr.f32.gmra.mrb[0].mxu0 %v1873
        %v2057 = vpop.f32.mrb[0].mxu0
        %v2058 = vadd.f32 0.0, %v2057
        %v2059 = vpop.f32.mrb[0].mxu0
        %2060 = vdwg.mxu0
        %v2061 = vadd.f32 %v1875, %v1954
        %v2062 = vadd.f32 %v1876, %v1956
        %v2063 = vadd.f32 %v1878, %v1960
        %v2064 = vadd.f32 %v1879, %v1962
        %v2065 = vadd.f32 %v1881, %v1966
        %v2066 = vadd.f32 %v1882, %v1968
        %v2067 = vadd.f32 %v1884, %v1972
        %v2068 = vadd.f32 %v1885, %v1974
        %v2069 = vxor.u32 %v2061, 2147483648
        %v2070 = vxor.u32 %v2062, 2147483648
        %v2071 = vxor.u32 %v2063, 2147483648
        %v2072 = vxor.u32 %v2064, 2147483648
        %v2073 = vxor.u32 %v2065, 2147483648
        %v2074 = vxor.u32 %v2066, 2147483648
        %v2075 = vxor.u32 %v2067, 2147483648
        %v2076 = vxor.u32 %v2068, 2147483648
        %v2077 = vmul.f32 %v2069, 1.442695
        %v2078 = vpow.pop %v2077
        %v2079 = vmul.f32 %v2070, 1.442695
        %v2080 = vpow.pop %v2079
        %v2081 = vmul.f32 %v2071, 1.442695
        %v2082 = vpow.pop %v2081
        %v2083 = vmul.f32 %v2072, 1.442695
        %v2084 = vpow.pop %v2083
        %v2085 = vmul.f32 %v2073, 1.442695
        %v2086 = vpow.pop %v2085
        %v2087 = vmul.f32 %v2074, 1.442695
        %v2088 = vpow.pop %v2087
        %v2089 = vmul.f32 %v2075, 1.442695
        %v2090 = vpow.pop %v2089
        %v2091 = vmul.f32 %v2076, 1.442695
        %v2092 = vpow.pop %v2091
        %v2093 = vadd.f32 %v2078, 1.0
        %v2094 = vadd.f32 %v2080, 1.0
        %v2095 = vadd.f32 %v2082, 1.0
        %v2096 = vadd.f32 %v2084, 1.0
        %v2097 = vadd.f32 %v2086, 1.0
        %v2098 = vadd.f32 %v2088, 1.0
        %v2099 = vadd.f32 %v2090, 1.0
        %v2100 = vadd.f32 %v2092, 1.0
        %v2101 = vrcp.pop %v2093
        %v2102 = vmul.f32 1.0, %v2101
        %v2103 = vrcp.pop %v2094
        %v2104 = vmul.f32 1.0, %v2103
        %v2105 = vrcp.pop %v2095
        %v2106 = vmul.f32 1.0, %v2105
        %v2107 = vrcp.pop %v2096
        %v2108 = vmul.f32 1.0, %v2107
        %v2109 = vrcp.pop %v2097
        %v2110 = vmul.f32 1.0, %v2109
        %v2111 = vrcp.pop %v2098
        %v2112 = vmul.f32 1.0, %v2111
        %v2113 = vrcp.pop %v2099
        %v2114 = vmul.f32 1.0, %v2113
        %v2115 = vrcp.pop %v2100
        %v2116 = vmul.f32 1.0, %v2115
        %v2117 = vadd.f32 %v2043, %v518
        %v2118 = vadd.f32 %v2048, %v518
        %v2119 = vadd.f32 %v2053, %v518
        %v2120 = vadd.f32 %v2058, %v518
        %v2121 = vmul.f32 %v2102, %v2117
        %v2122 = vmul.f32 %v2106, %v2118
        %v2123 = vmul.f32 %v2110, %v2119
        %v2124 = vmul.f32 %v2114, %v2120
        %v2125 = vadd.f32 %v1877, %v2121
        %v2126 = vadd.f32 %v1880, %v2122
        %v2127 = vadd.f32 %v1883, %v2123
        %v2128 = vadd.f32 %v1886, %v2124
        %v2129 = vtanh.pop %v2125
        %v2130 = vtanh.pop %v2126
        %v2131 = vtanh.pop %v2127
        %v2132 = vtanh.pop %v2128
        %v2133 = vsub.f32 %v1870, %v2129
        %v2134 = vsub.f32 %v1871, %v2130
        %v2135 = vsub.f32 %v1872, %v2131
        %v2136 = vsub.f32 %v1873, %v2132
        %v2137 = vmul.f32 %v2104, %v2133
        %v2138 = vmul.f32 %v2108, %v2134
        %v2139 = vmul.f32 %v2112, %v2135
        %v2140 = vmul.f32 %v2116, %v2136
        %v2141 = vadd.f32 %v2129, %v2137
        %v2142 = vadd.f32 %v2130, %v2138
        %v2143 = vadd.f32 %v2131, %v2139
        %v2144 = vadd.f32 %v2132, %v2140
        %s2145 = scalar_lea.vmem %s431, 576 [#allocation2]
        %v2146 = vld [vmem:[%s2145] sm:$0xff]
        %v2147 = vld [vmem:[%s2145 + $0x8] sm:$0xff]
        %v2148 = vld [vmem:[%s2145 + $0x10] sm:$0xff]
        %v2149 = vld [vmem:[%s2145 + $0x18] sm:$0xff]
        %v2150 = vld [vmem:[%s2145 + $0x20] sm:$0xff]
        %v2151 = vld [vmem:[%s2145 + $0x28] sm:$0xff]
        %v2152 = vld [vmem:[%s2145 + $0x30] sm:$0xff]
        %v2153 = vld [vmem:[%s2145 + $0x38] sm:$0xff]
        %v2154 = vld [vmem:[%s2145 + $0x40] sm:$0xff]
        %v2155 = vld [vmem:[%s2145 + $0x48] sm:$0xff]
        %v2156 = vld [vmem:[%s2145 + $0x50] sm:$0xff]
        %v2157 = vld [vmem:[%s2145 + $0x58] sm:$0xff]
        %2158 = vmatprep.subr.mxu0 %v466
        %2159 = vmatpush1.msra.mxu0 %v465
        %2160 = vmatprep.subr.mxu0 %v469
        %2161 = vmatpush1.msra.mxu0 %v468
        %2162 = vmatprep.subr.mxu0 %v472
        %2163 = vmatpush1.msra.mxu0 %v471
        %2164 = vmatprep.subr.mxu0 %v475
        %2165 = vmatpush1.msra.mxu0 %v474
        %2166 = vmatprep.subr.mxu0 %v478
        %2167 = vmatpush1.msra.mxu0 %v477
        %2168 = vmatprep.subr.mxu0 %v481
        %2169 = vmatpush1.msra.mxu0 %v480
        %2170 = vmatprep.subr.mxu0 %v484
        %2171 = vmatpush1.msra.mxu0 %v483
        %2172 = vmatprep.subr.mxu0 %v487
        %2173 = vmatpush1.msra.mxu0 %v486
        %2174 = vmatprep.subr.mxu0 %v490
        %2175 = vmatpush1.msra.mxu0 %v489
        %2176 = vmatprep.subr.mxu0 %v493
        %2177 = vmatpush1.msra.mxu0 %v492
        %2178 = vmatprep.subr.mxu0 %v496
        %2179 = vmatpush1.msra.mxu0 %v495
        %2180 = vmatprep.subr.mxu0 %v499
        %2181 = vmatpush1.msra.mxu0 %v498
        %2182 = vmatprep.subr.mxu0 %v502
        %2183 = vmatpush1.msra.mxu0 %v501
        %2184 = vmatprep.subr.mxu0 %v505
        %2185 = vmatpush1.msra.mxu0 %v504
        %2186 = vmatprep.subr.mxu0 %v508
        %2187 = vmatpush1.msra.mxu0 %v507
        %2188 = vmatprep.subr.mxu0 %v511
        %2189 = vmatpush1.msra.mxu0 %v510
        %2190 = vmatprep.subr.mxu0 0.0
        %2191 = vmatpush1.msra.mxu0 0.0
        %2192 = vmatprep.subr.mxu0 0.0
        %2193 = vmatpush1.msra.mxu0 0.0
        %2194 = vmatprep.subr.mxu0 0.0
        %2195 = vmatpush1.msra.mxu0 0.0
        %2196 = vmatprep.subr.mxu0 0.0
        %2197 = vmatpush1.msra.mxu0 0.0
        %2198 = vmatprep.subr.mxu0 0.0
        %2199 = vmatpush1.msra.mxu0 0.0
        %2200 = vmatprep.subr.mxu0 0.0
        %2201 = vmatpush1.msra.mxu0 0.0
        %2202 = vmatprep.subr.mxu0 0.0
        %2203 = vmatpush1.msra.mxu0 0.0
        %2204 = vmatprep.subr.mxu0 0.0
        %2205 = vmatpush1.msra.mxu0 0.0
        %2206 = vmatprep.subr.mxu0 0.0
        %2207 = vmatpush1.msra.mxu0 0.0
        %2208 = vmatprep.subr.mxu0 0.0
        %2209 = vmatpush1.msra.mxu0 0.0
        %2210 = vmatprep.subr.mxu0 0.0
        %2211 = vmatpush1.msra.mxu0 0.0
        %2212 = vmatprep.subr.mxu0 0.0
        %2213 = vmatpush1.msra.mxu0 0.0
        %2214 = vmatprep.subr.mxu0 0.0
        %2215 = vmatpush1.msra.mxu0 0.0
        %2216 = vmatprep.subr.mxu0 0.0
        %2217 = vmatpush1.msra.mxu0 0.0
        %2218 = vmatprep.subr.mxu0 0.0
        %2219 = vmatpush1.msra.mxu0 0.0
        %2220 = vmatprep.subr.mxu0 0.0
        %2221 = vmatpush1.msra.mxu0 0.0
        %2222 = vmatprep.mubr.f32.mxu0 0.0
        %2223 = vmatmul.mubr.f32.gmra.mrb[0].mxu0 %v2141
        %v2224 = vpop.f32.mrb[0].mxu0
        %v2225 = vadd.f32 0.0, %v2224
        %v2226 = vpop.f32.mrb[0].mxu0
        %v2227 = vadd.f32 0.0, %v2226
        %2228 = vmatprep.mubr.f32.mxu0 0.0
        %2229 = vmatmul.mubr.f32.gmra.mrb[0].mxu0 %v2142
        %v2230 = vpop.f32.mrb[0].mxu0
        %v2231 = vadd.f32 0.0, %v2230
        %v2232 = vpop.f32.mrb[0].mxu0
        %v2233 = vadd.f32 0.0, %v2232
        %2234 = vmatprep.mubr.f32.mxu0 0.0
        %2235 = vmatmul.mubr.f32.gmra.mrb[0].mxu0 %v2143
        %v2236 = vpop.f32.mrb[0].mxu0
        %v2237 = vadd.f32 0.0, %v2236
        %v2238 = vpop.f32.mrb[0].mxu0
        %v2239 = vadd.f32 0.0, %v2238
        %2240 = vmatprep.mubr.f32.mxu0 0.0
        %2241 = vmatmul.mubr.f32.gmra.mrb[0].mxu0 %v2144
        %v2242 = vpop.f32.mrb[0].mxu0
        %v2243 = vadd.f32 0.0, %v2242
        %v2244 = vpop.f32.mrb[0].mxu0
        %v2245 = vadd.f32 0.0, %v2244
        %2246 = vdwg.mxu0
        %2247 = vmatprep.subr.mxu0 0.0
        %2248 = vmatpush1.msra.mxu0 %v467
        %2249 = vmatprep.subr.mxu0 0.0
        %2250 = vmatpush1.msra.mxu0 %v470
        %2251 = vmatprep.subr.mxu0 0.0
        %2252 = vmatpush1.msra.mxu0 %v473
        %2253 = vmatprep.subr.mxu0 0.0
        %2254 = vmatpush1.msra.mxu0 %v476
        %2255 = vmatprep.subr.mxu0 0.0
        %2256 = vmatpush1.msra.mxu0 %v479
        %2257 = vmatprep.subr.mxu0 0.0
        %2258 = vmatpush1.msra.mxu0 %v482
        %2259 = vmatprep.subr.mxu0 0.0
        %2260 = vmatpush1.msra.mxu0 %v485
        %2261 = vmatprep.subr.mxu0 0.0
        %2262 = vmatpush1.msra.mxu0 %v488
        %2263 = vmatprep.subr.mxu0 0.0
        %2264 = vmatpush1.msra.mxu0 %v491
        %2265 = vmatprep.subr.mxu0 0.0
        %2266 = vmatpush1.msra.mxu0 %v494
        %2267 = vmatprep.subr.mxu0 0.0
        %2268 = vmatpush1.msra.mxu0 %v497
        %2269 = vmatprep.subr.mxu0 0.0
        %2270 = vmatpush1.msra.mxu0 %v500
        %2271 = vmatprep.subr.mxu0 0.0
        %2272 = vmatpush1.msra.mxu0 %v503
        %2273 = vmatprep.subr.mxu0 0.0
        %2274 = vmatpush1.msra.mxu0 %v506
        %2275 = vmatprep.subr.mxu0 0.0
        %2276 = vmatpush1.msra.mxu0 %v509
        %2277 = vmatprep.subr.mxu0 0.0
        %2278 = vmatpush1.msra.mxu0 %v512
        %2279 = vmatprep.subr.mxu0 0.0
        %2280 = vmatpush1.msra.mxu0 0.0
        %2281 = vmatprep.subr.mxu0 0.0
        %2282 = vmatpush1.msra.mxu0 0.0
        %2283 = vmatprep.subr.mxu0 0.0
        %2284 = vmatpush1.msra.mxu0 0.0
        %2285 = vmatprep.subr.mxu0 0.0
        %2286 = vmatpush1.msra.mxu0 0.0
        %2287 = vmatprep.subr.mxu0 0.0
        %2288 = vmatpush1.msra.mxu0 0.0
        %2289 = vmatprep.subr.mxu0 0.0
        %2290 = vmatpush1.msra.mxu0 0.0
        %2291 = vmatprep.subr.mxu0 0.0
        %2292 = vmatpush1.msra.mxu0 0.0
        %2293 = vmatprep.subr.mxu0 0.0
        %2294 = vmatpush1.msra.mxu0 0.0
        %2295 = vmatprep.subr.mxu0 0.0
        %2296 = vmatpush1.msra.mxu0 0.0
        %2297 = vmatprep.subr.mxu0 0.0
        %2298 = vmatpush1.msra.mxu0 0.0
        %2299 = vmatprep.subr.mxu0 0.0
        %2300 = vmatpush1.msra.mxu0 0.0
        %2301 = vmatprep.subr.mxu0 0.0
        %2302 = vmatpush1.msra.mxu0 0.0
        %2303 = vmatprep.subr.mxu0 0.0
        %2304 = vmatpush1.msra.mxu0 0.0
        %2305 = vmatprep.subr.mxu0 0.0
        %2306 = vmatpush1.msra.mxu0 0.0
        %2307 = vmatprep.subr.mxu0 0.0
        %2308 = vmatpush1.msra.mxu0 0.0
        %2309 = vmatprep.subr.mxu0 0.0
        %2310 = vmatpush1.msra.mxu0 0.0
        %2311 = vmatprep.mubr.f32.mxu0 0.0
        %2312 = vmatmul.mubr.f32.gmra.mrb[0].mxu0 %v2141
        %v2313 = vpop.f32.mrb[0].mxu0
        %v2314 = vadd.f32 0.0, %v2313
        %v2315 = vpop.f32.mrb[0].mxu0
        %2316 = vmatprep.mubr.f32.mxu0 0.0
        %2317 = vmatmul.mubr.f32.gmra.mrb[0].mxu0 %v2142
        %v2318 = vpop.f32.mrb[0].mxu0
        %v2319 = vadd.f32 0.0, %v2318
        %v2320 = vpop.f32.mrb[0].mxu0
        %2321 = vmatprep.mubr.f32.mxu0 0.0
        %2322 = vmatmul.mubr.f32.gmra.mrb[0].mxu0 %v2143
        %v2323 = vpop.f32.mrb[0].mxu0
        %v2324 = vadd.f32 0.0, %v2323
        %v2325 = vpop.f32.mrb[0].mxu0
        %2326 = vmatprep.mubr.f32.mxu0 0.0
        %2327 = vmatmul.mubr.f32.gmra.mrb[0].mxu0 %v2144
        %v2328 = vpop.f32.mrb[0].mxu0
        %v2329 = vadd.f32 0.0, %v2328
        %v2330 = vpop.f32.mrb[0].mxu0
        %2331 = vdwg.mxu0
        %v2332 = vadd.f32 %v2146, %v2225
        %v2333 = vadd.f32 %v2147, %v2227
        %v2334 = vadd.f32 %v2149, %v2231
        %v2335 = vadd.f32 %v2150, %v2233
        %v2336 = vadd.f32 %v2152, %v2237
        %v2337 = vadd.f32 %v2153, %v2239
        %v2338 = vadd.f32 %v2155, %v2243
        %v2339 = vadd.f32 %v2156, %v2245
        %v2340 = vxor.u32 %v2332, 2147483648
        %v2341 = vxor.u32 %v2333, 2147483648
        %v2342 = vxor.u32 %v2334, 2147483648
        %v2343 = vxor.u32 %v2335, 2147483648
        %v2344 = vxor.u32 %v2336, 2147483648
        %v2345 = vxor.u32 %v2337, 2147483648
        %v2346 = vxor.u32 %v2338, 2147483648
        %v2347 = vxor.u32 %v2339, 2147483648
        %v2348 = vmul.f32 %v2340, 1.442695
        %v2349 = vpow.pop %v2348
        %v2350 = vmul.f32 %v2341, 1.442695
        %v2351 = vpow.pop %v2350
        %v2352 = vmul.f32 %v2342, 1.442695
        %v2353 = vpow.pop %v2352
        %v2354 = vmul.f32 %v2343, 1.442695
        %v2355 = vpow.pop %v2354
        %v2356 = vmul.f32 %v2344, 1.442695
        %v2357 = vpow.pop %v2356
        %v2358 = vmul.f32 %v2345, 1.442695
        %v2359 = vpow.pop %v2358
        %v2360 = vmul.f32 %v2346, 1.442695
        %v2361 = vpow.pop %v2360
        %v2362 = vmul.f32 %v2347, 1.442695
        %v2363 = vpow.pop %v2362
        %v2364 = vadd.f32 %v2349, 1.0
        %v2365 = vadd.f32 %v2351, 1.0
        %v2366 = vadd.f32 %v2353, 1.0
        %v2367 = vadd.f32 %v2355, 1.0
        %v2368 = vadd.f32 %v2357, 1.0
        %v2369 = vadd.f32 %v2359, 1.0
        %v2370 = vadd.f32 %v2361, 1.0
        %v2371 = vadd.f32 %v2363, 1.0
        %v2372 = vrcp.pop %v2364
        %v2373 = vmul.f32 1.0, %v2372
        %v2374 = vrcp.pop %v2365
        %v2375 = vmul.f32 1.0, %v2374
        %v2376 = vrcp.pop %v2366
        %v2377 = vmul.f32 1.0, %v2376
        %v2378 = vrcp.pop %v2367
        %v2379 = vmul.f32 1.0, %v2378
        %v2380 = vrcp.pop %v2368
        %v2381 = vmul.f32 1.0, %v2380
        %v2382 = vrcp.pop %v2369
        %v2383 = vmul.f32 1.0, %v2382
        %v2384 = vrcp.pop %v2370
        %v2385 = vmul.f32 1.0, %v2384
        %v2386 = vrcp.pop %v2371
        %v2387 = vmul.f32 1.0, %v2386
        %v2388 = vadd.f32 %v2314, %v518
        %v2389 = vadd.f32 %v2319, %v518
        %v2390 = vadd.f32 %v2324, %v518
        %v2391 = vadd.f32 %v2329, %v518
        %v2392 = vmul.f32 %v2373, %v2388
        %v2393 = vmul.f32 %v2377, %v2389
        %v2394 = vmul.f32 %v2381, %v2390
        %v2395 = vmul.f32 %v2385, %v2391
        %v2396 = vadd.f32 %v2148, %v2392
        %v2397 = vadd.f32 %v2151, %v2393
        %v2398 = vadd.f32 %v2154, %v2394
        %v2399 = vadd.f32 %v2157, %v2395
        %v2400 = vtanh.pop %v2396
        %v2401 = vtanh.pop %v2397
        %v2402 = vtanh.pop %v2398
        %v2403 = vtanh.pop %v2399
        %v2404 = vsub.f32 %v2141, %v2400
        %v2405 = vsub.f32 %v2142, %v2401
        %v2406 = vsub.f32 %v2143, %v2402
        %v2407 = vsub.f32 %v2144, %v2403
        %v2408 = vmul.f32 %v2375, %v2404
        %v2409 = vmul.f32 %v2379, %v2405
        %v2410 = vmul.f32 %v2383, %v2406
        %v2411 = vmul.f32 %v2387, %v2407
        %v2412 = vadd.f32 %v2400, %v2408
        %v2413 = vadd.f32 %v2401, %v2409
        %v2414 = vadd.f32 %v2402, %v2410
        %v2415 = vadd.f32 %v2403, %v2411
        %s2416 = scalar_lea.vmem %s431, 672 [#allocation2]
        %v2417 = vld [vmem:[%s2416] sm:$0xff]
        %v2418 = vld [vmem:[%s2416 + $0x8] sm:$0xff]
        %v2419 = vld [vmem:[%s2416 + $0x10] sm:$0xff]
        %v2420 = vld [vmem:[%s2416 + $0x18] sm:$0xff]
        %v2421 = vld [vmem:[%s2416 + $0x20] sm:$0xff]
        %v2422 = vld [vmem:[%s2416 + $0x28] sm:$0xff]
        %v2423 = vld [vmem:[%s2416 + $0x30] sm:$0xff]
        %v2424 = vld [vmem:[%s2416 + $0x38] sm:$0xff]
        %v2425 = vld [vmem:[%s2416 + $0x40] sm:$0xff]
        %v2426 = vld [vmem:[%s2416 + $0x48] sm:$0xff]
        %v2427 = vld [vmem:[%s2416 + $0x50] sm:$0xff]
        %v2428 = vld [vmem:[%s2416 + $0x58] sm:$0xff]
        %2429 = vmatprep.subr.mxu0 %v466
        %2430 = vmatpush1.msra.mxu0 %v465
        %2431 = vmatprep.subr.mxu0 %v469
        %2432 = vmatpush1.msra.mxu0 %v468
        %2433 = vmatprep.subr.mxu0 %v472
        %2434 = vmatpush1.msra.mxu0 %v471
        %2435 = vmatprep.subr.mxu0 %v475
        %2436 = vmatpush1.msra.mxu0 %v474
        %2437 = vmatprep.subr.mxu0 %v478
        %2438 = vmatpush1.msra.mxu0 %v477
        %2439 = vmatprep.subr.mxu0 %v481
        %2440 = vmatpush1.msra.mxu0 %v480
        %2441 = vmatprep.subr.mxu0 %v484
        %2442 = vmatpush1.msra.mxu0 %v483
        %2443 = vmatprep.subr.mxu0 %v487
        %2444 = vmatpush1.msra.mxu0 %v486
        %2445 = vmatprep.subr.mxu0 %v490
        %2446 = vmatpush1.msra.mxu0 %v489
        %2447 = vmatprep.subr.mxu0 %v493
        %2448 = vmatpush1.msra.mxu0 %v492
        %2449 = vmatprep.subr.mxu0 %v496
        %2450 = vmatpush1.msra.mxu0 %v495
        %2451 = vmatprep.subr.mxu0 %v499
        %2452 = vmatpush1.msra.mxu0 %v498
        %2453 = vmatprep.subr.mxu0 %v502
        %2454 = vmatpush1.msra.mxu0 %v501
        %2455 = vmatprep.subr.mxu0 %v505
        %2456 = vmatpush1.msra.mxu0 %v504
        %2457 = vmatprep.subr.mxu0 %v508
        %2458 = vmatpush1.msra.mxu0 %v507
        %2459 = vmatprep.subr.mxu0 %v511
        %2460 = vmatpush1.msra.mxu0 %v510
        %2461 = vmatprep.subr.mxu0 0.0
        %2462 = vmatpush1.msra.mxu0 0.0
        %2463 = vmatprep.subr.mxu0 0.0
        %2464 = vmatpush1.msra.mxu0 0.0
        %2465 = vmatprep.subr.mxu0 0.0
        %2466 = vmatpush1.msra.mxu0 0.0
        %2467 = vmatprep.subr.mxu0 0.0
        %2468 = vmatpush1.msra.mxu0 0.0
        %2469 = vmatprep.subr.mxu0 0.0
        %2470 = vmatpush1.msra.mxu0 0.0
        %2471 = vmatprep.subr.mxu0 0.0
        %2472 = vmatpush1.msra.mxu0 0.0
        %2473 = vmatprep.subr.mxu0 0.0
        %2474 = vmatpush1.msra.mxu0 0.0
        %2475 = vmatprep.subr.mxu0 0.0
        %2476 = vmatpush1.msra.mxu0 0.0
        %2477 = vmatprep.subr.mxu0 0.0
        %2478 = vmatpush1.msra.mxu0 0.0
        %2479 = vmatprep.subr.mxu0 0.0
        %2480 = vmatpush1.msra.mxu0 0.0
        %2481 = vmatprep.subr.mxu0 0.0
        %2482 = vmatpush1.msra.mxu0 0.0
        %2483 = vmatprep.subr.mxu0 0.0
        %2484 = vmatpush1.msra.mxu0 0.0
        %2485 = vmatprep.subr.mxu0 0.0
        %2486 = vmatpush1.msra.mxu0 0.0
        %2487 = vmatprep.subr.mxu0 0.0
        %2488 = vmatpush1.msra.mxu0 0.0
        %2489 = vmatprep.subr.mxu0 0.0
        %2490 = vmatpush1.msra.mxu0 0.0
        %2491 = vmatprep.subr.mxu0 0.0
        %2492 = vmatpush1.msra.mxu0 0.0
        %2493 = vmatprep.mubr.f32.mxu0 0.0
        %2494 = vmatmul.mubr.f32.gmra.mrb[0].mxu0 %v2412
        %v2495 = vpop.f32.mrb[0].mxu0
        %v2496 = vadd.f32 0.0, %v2495
        %v2497 = vpop.f32.mrb[0].mxu0
        %v2498 = vadd.f32 0.0, %v2497
        %2499 = vmatprep.mubr.f32.mxu0 0.0
        %2500 = vmatmul.mubr.f32.gmra.mrb[0].mxu0 %v2413
        %v2501 = vpop.f32.mrb[0].mxu0
        %v2502 = vadd.f32 0.0, %v2501
        %v2503 = vpop.f32.mrb[0].mxu0
        %v2504 = vadd.f32 0.0, %v2503
        %2505 = vmatprep.mubr.f32.mxu0 0.0
        %2506 = vmatmul.mubr.f32.gmra.mrb[0].mxu0 %v2414
        %v2507 = vpop.f32.mrb[0].mxu0
        %v2508 = vadd.f32 0.0, %v2507
        %v2509 = vpop.f32.mrb[0].mxu0
        %v2510 = vadd.f32 0.0, %v2509
        %2511 = vmatprep.mubr.f32.mxu0 0.0
        %2512 = vmatmul.mubr.f32.gmra.mrb[0].mxu0 %v2415
        %v2513 = vpop.f32.mrb[0].mxu0
        %v2514 = vadd.f32 0.0, %v2513
        %v2515 = vpop.f32.mrb[0].mxu0
        %v2516 = vadd.f32 0.0, %v2515
        %2517 = vdwg.mxu0
        %2518 = vmatprep.subr.mxu0 0.0
        %2519 = vmatpush1.msra.mxu0 %v467
        %2520 = vmatprep.subr.mxu0 0.0
        %2521 = vmatpush1.msra.mxu0 %v470
        %2522 = vmatprep.subr.mxu0 0.0
        %2523 = vmatpush1.msra.mxu0 %v473
        %2524 = vmatprep.subr.mxu0 0.0
        %2525 = vmatpush1.msra.mxu0 %v476
        %2526 = vmatprep.subr.mxu0 0.0
        %2527 = vmatpush1.msra.mxu0 %v479
        %2528 = vmatprep.subr.mxu0 0.0
        %2529 = vmatpush1.msra.mxu0 %v482
        %2530 = vmatprep.subr.mxu0 0.0
        %2531 = vmatpush1.msra.mxu0 %v485
        %2532 = vmatprep.subr.mxu0 0.0
        %2533 = vmatpush1.msra.mxu0 %v488
        %2534 = vmatprep.subr.mxu0 0.0
        %2535 = vmatpush1.msra.mxu0 %v491
        %2536 = vmatprep.subr.mxu0 0.0
        %2537 = vmatpush1.msra.mxu0 %v494
        %2538 = vmatprep.subr.mxu0 0.0
        %2539 = vmatpush1.msra.mxu0 %v497
        %2540 = vmatprep.subr.mxu0 0.0
        %2541 = vmatpush1.msra.mxu0 %v500
        %2542 = vmatprep.subr.mxu0 0.0
        %2543 = vmatpush1.msra.mxu0 %v503
        %2544 = vmatprep.subr.mxu0 0.0
        %2545 = vmatpush1.msra.mxu0 %v506
        %2546 = vmatprep.subr.mxu0 0.0
        %2547 = vmatpush1.msra.mxu0 %v509
        %2548 = vmatprep.subr.mxu0 0.0
        %2549 = vmatpush1.msra.mxu0 %v512
        %2550 = vmatprep.subr.mxu0 0.0
        %2551 = vmatpush1.msra.mxu0 0.0
        %2552 = vmatprep.subr.mxu0 0.0
        %2553 = vmatpush1.msra.mxu0 0.0
        %2554 = vmatprep.subr.mxu0 0.0
        %2555 = vmatpush1.msra.mxu0 0.0
        %2556 = vmatprep.subr.mxu0 0.0
        %2557 = vmatpush1.msra.mxu0 0.0
        %2558 = vmatprep.subr.mxu0 0.0
        %2559 = vmatpush1.msra.mxu0 0.0
        %2560 = vmatprep.subr.mxu0 0.0
        %2561 = vmatpush1.msra.mxu0 0.0
        %2562 = vmatprep.subr.mxu0 0.0
        %2563 = vmatpush1.msra.mxu0 0.0
        %2564 = vmatprep.subr.mxu0 0.0
        %2565 = vmatpush1.msra.mxu0 0.0
        %2566 = vmatprep.subr.mxu0 0.0
        %2567 = vmatpush1.msra.mxu0 0.0
        %2568 = vmatprep.subr.mxu0 0.0
        %2569 = vmatpush1.msra.mxu0 0.0
        %2570 = vmatprep.subr.mxu0 0.0
        %2571 = vmatpush1.msra.mxu0 0.0
        %2572 = vmatprep.subr.mxu0 0.0
        %2573 = vmatpush1.msra.mxu0 0.0
        %2574 = vmatprep.subr.mxu0 0.0
        %2575 = vmatpush1.msra.mxu0 0.0
        %2576 = vmatprep.subr.mxu0 0.0
        %2577 = vmatpush1.msra.mxu0 0.0
        %2578 = vmatprep.subr.mxu0 0.0
        %2579 = vmatpush1.msra.mxu0 0.0
        %2580 = vmatprep.subr.mxu0 0.0
        %2581 = vmatpush1.msra.mxu0 0.0
        %2582 = vmatprep.mubr.f32.mxu0 0.0
        %2583 = vmatmul.mubr.f32.gmra.mrb[0].mxu0 %v2412
        %v2584 = vpop.f32.mrb[0].mxu0
        %v2585 = vadd.f32 0.0, %v2584
        %v2586 = vpop.f32.mrb[0].mxu0
        %2587 = vmatprep.mubr.f32.mxu0 0.0
        %2588 = vmatmul.mubr.f32.gmra.mrb[0].mxu0 %v2413
        %v2589 = vpop.f32.mrb[0].mxu0
        %v2590 = vadd.f32 0.0, %v2589
        %v2591 = vpop.f32.mrb[0].mxu0
        %2592 = vmatprep.mubr.f32.mxu0 0.0
        %2593 = vmatmul.mubr.f32.gmra.mrb[0].mxu0 %v2414
        %v2594 = vpop.f32.mrb[0].mxu0
        %v2595 = vadd.f32 0.0, %v2594
        %v2596 = vpop.f32.mrb[0].mxu0
        %2597 = vmatprep.mubr.f32.mxu0 0.0
        %2598 = vmatmul.mubr.f32.gmra.mrb[0].mxu0 %v2415
        %v2599 = vpop.f32.mrb[0].mxu0
        %v2600 = vadd.f32 0.0, %v2599
        %v2601 = vpop.f32.mrb[0].mxu0
        %2602 = vdwg.mxu0
        %v2603 = vadd.f32 %v2417, %v2496
        %v2604 = vadd.f32 %v2418, %v2498
        %v2605 = vadd.f32 %v2420, %v2502
        %v2606 = vadd.f32 %v2421, %v2504
        %v2607 = vadd.f32 %v2423, %v2508
        %v2608 = vadd.f32 %v2424, %v2510
        %v2609 = vadd.f32 %v2426, %v2514
        %v2610 = vadd.f32 %v2427, %v2516
        %v2611 = vxor.u32 %v2603, 2147483648
        %v2612 = vxor.u32 %v2604, 2147483648
        %v2613 = vxor.u32 %v2605, 2147483648
        %v2614 = vxor.u32 %v2606, 2147483648
        %v2615 = vxor.u32 %v2607, 2147483648
        %v2616 = vxor.u32 %v2608, 2147483648
        %v2617 = vxor.u32 %v2609, 2147483648
        %v2618 = vxor.u32 %v2610, 2147483648
        %v2619 = vmul.f32 %v2611, 1.442695
        %v2620 = vpow.pop %v2619
        %v2621 = vmul.f32 %v2612, 1.442695
        %v2622 = vpow.pop %v2621
        %v2623 = vmul.f32 %v2613, 1.442695
        %v2624 = vpow.pop %v2623
        %v2625 = vmul.f32 %v2614, 1.442695
        %v2626 = vpow.pop %v2625
        %v2627 = vmul.f32 %v2615, 1.442695
        %v2628 = vpow.pop %v2627
        %v2629 = vmul.f32 %v2616, 1.442695
        %v2630 = vpow.pop %v2629
        %v2631 = vmul.f32 %v2617, 1.442695
        %v2632 = vpow.pop %v2631
        %v2633 = vmul.f32 %v2618, 1.442695
        %v2634 = vpow.pop %v2633
        %v2635 = vadd.f32 %v2620, 1.0
        %v2636 = vadd.f32 %v2622, 1.0
        %v2637 = vadd.f32 %v2624, 1.0
        %v2638 = vadd.f32 %v2626, 1.0
        %v2639 = vadd.f32 %v2628, 1.0
        %v2640 = vadd.f32 %v2630, 1.0
        %v2641 = vadd.f32 %v2632, 1.0
        %v2642 = vadd.f32 %v2634, 1.0
        %v2643 = vrcp.pop %v2635
        %v2644 = vmul.f32 1.0, %v2643
        %v2645 = vrcp.pop %v2636
        %v2646 = vmul.f32 1.0, %v2645
        %v2647 = vrcp.pop %v2637
        %v2648 = vmul.f32 1.0, %v2647
        %v2649 = vrcp.pop %v2638
        %v2650 = vmul.f32 1.0, %v2649
        %v2651 = vrcp.pop %v2639
        %v2652 = vmul.f32 1.0, %v2651
        %v2653 = vrcp.pop %v2640
        %v2654 = vmul.f32 1.0, %v2653
        %v2655 = vrcp.pop %v2641
        %v2656 = vmul.f32 1.0, %v2655
        %v2657 = vrcp.pop %v2642
        %v2658 = vmul.f32 1.0, %v2657
        %v2659 = vadd.f32 %v2585, %v518
        %v2660 = vadd.f32 %v2590, %v518
        %v2661 = vadd.f32 %v2595, %v518
        %v2662 = vadd.f32 %v2600, %v518
        %v2663 = vmul.f32 %v2644, %v2659
        %v2664 = vmul.f32 %v2648, %v2660
        %v2665 = vmul.f32 %v2652, %v2661
        %v2666 = vmul.f32 %v2656, %v2662
        %v2667 = vadd.f32 %v2419, %v2663
        %v2668 = vadd.f32 %v2422, %v2664
        %v2669 = vadd.f32 %v2425, %v2665
        %v2670 = vadd.f32 %v2428, %v2666
        %v2671 = vtanh.pop %v2667
        %v2672 = vtanh.pop %v2668
        %v2673 = vtanh.pop %v2669
        %v2674 = vtanh.pop %v2670
        %v2675 = vsub.f32 %v2412, %v2671
        %v2676 = vsub.f32 %v2413, %v2672
        %v2677 = vsub.f32 %v2414, %v2673
        %v2678 = vsub.f32 %v2415, %v2674
        %v2679 = vmul.f32 %v2646, %v2675
        %v2680 = vmul.f32 %v2650, %v2676
        %v2681 = vmul.f32 %v2654, %v2677
        %v2682 = vmul.f32 %v2658, %v2678
        %v2683 = vadd.f32 %v2671, %v2679
        %v2684 = vadd.f32 %v2672, %v2680
        %v2685 = vadd.f32 %v2673, %v2681
        %v2686 = vadd.f32 %v2674, %v2682
        %v2687 = vld [vmem:[%s3] sm:$0xff]
        %v2688 = vld [vmem:[%s3 + $0x8] sm:$0xff]
        %v2689 = vld [vmem:[%s3 + $0x10] sm:$0xff]
        %v2690 = vld [vmem:[%s3 + $0x18] sm:$0xff]
        %v2691 = vld [vmem:[%s3 + $0x20] sm:$0xff]
        %v2692 = vld [vmem:[%s3 + $0x28] sm:$0xff]
        %v2693 = vld [vmem:[%s3 + $0x30] sm:$0xff]
        %v2694 = vld [vmem:[%s3 + $0x38] sm:$0xff]
        %v2695 = vld [vmem:[%s3 + $0x40] sm:$0xff]
        %v2696 = vld [vmem:[%s3 + $0x48] sm:$0xff]
        %v2697 = vld [vmem:[%s3 + $0x50] sm:$0xff]
        %v2698 = vld [vmem:[%s3 + $0x58] sm:$0xff]
        %v2699 = vld [vmem:[%s3 + $0x60] sm:$0xff]
        %v2700 = vld [vmem:[%s3 + $0x68] sm:$0xff]
        %v2701 = vld [vmem:[%s3 + $0x70] sm:$0xff]
        %v2702 = vld [vmem:[%s3 + $0x78] sm:$0xff]
        %v2703 = vld [vmem:[%s4] sm:$0x1]
        %v2705 = vlaneseq
        %v2706 = vshrl.u32 %v2705, 7
        %v2707 = vsub.s32 0, %v2706
        %v2708 = vrot.slane %v2703, %v2707
        %2710 = vmatprep.subr.mxu0 0.0
        %2711 = vmatpush1.msra.mxu0 %v2687
        %2712 = vmatprep.subr.mxu0 0.0
        %2713 = vmatpush1.msra.mxu0 %v2688
        %2714 = vmatprep.subr.mxu0 0.0
        %2715 = vmatpush1.msra.mxu0 %v2689
        %2716 = vmatprep.subr.mxu0 0.0
        %2717 = vmatpush1.msra.mxu0 %v2690
        %2718 = vmatprep.subr.mxu0 0.0
        %2719 = vmatpush1.msra.mxu0 %v2691
        %2720 = vmatprep.subr.mxu0 0.0
        %2721 = vmatpush1.msra.mxu0 %v2692
        %2722 = vmatprep.subr.mxu0 0.0
        %2723 = vmatpush1.msra.mxu0 %v2693
        %2724 = vmatprep.subr.mxu0 0.0
        %2725 = vmatpush1.msra.mxu0 %v2694
        %2726 = vmatprep.subr.mxu0 0.0
        %2727 = vmatpush1.msra.mxu0 %v2695
        %2728 = vmatprep.subr.mxu0 0.0
        %2729 = vmatpush1.msra.mxu0 %v2696
        %2730 = vmatprep.subr.mxu0 0.0
        %2731 = vmatpush1.msra.mxu0 %v2697
        %2732 = vmatprep.subr.mxu0 0.0
        %2733 = vmatpush1.msra.mxu0 %v2698
        %2734 = vmatprep.subr.mxu0 0.0
        %2735 = vmatpush1.msra.mxu0 %v2699
        %2736 = vmatprep.subr.mxu0 0.0
        %2737 = vmatpush1.msra.mxu0 %v2700
        %2738 = vmatprep.subr.mxu0 0.0
        %2739 = vmatpush1.msra.mxu0 %v2701
        %2740 = vmatprep.subr.mxu0 0.0
        %2741 = vmatpush1.msra.mxu0 %v2702
        %2742 = vmatprep.subr.mxu0 0.0
        %2743 = vmatpush1.msra.mxu0 0.0
        %2744 = vmatprep.subr.mxu0 0.0
        %2745 = vmatpush1.msra.mxu0 0.0
        %2746 = vmatprep.subr.mxu0 0.0
        %2747 = vmatpush1.msra.mxu0 0.0
        %2748 = vmatprep.subr.mxu0 0.0
        %2749 = vmatpush1.msra.mxu0 0.0
        %2750 = vmatprep.subr.mxu0 0.0
        %2751 = vmatpush1.msra.mxu0 0.0
        %2752 = vmatprep.subr.mxu0 0.0
        %2753 = vmatpush1.msra.mxu0 0.0
        %2754 = vmatprep.subr.mxu0 0.0
        %2755 = vmatpush1.msra.mxu0 0.0
        %2756 = vmatprep.subr.mxu0 0.0
        %2757 = vmatpush1.msra.mxu0 0.0
        %2758 = vmatprep.subr.mxu0 0.0
        %2759 = vmatpush1.msra.mxu0 0.0
        %2760 = vmatprep.subr.mxu0 0.0
        %2761 = vmatpush1.msra.mxu0 0.0
        %2762 = vmatprep.subr.mxu0 0.0
        %2763 = vmatpush1.msra.mxu0 0.0
        %2764 = vmatprep.subr.mxu0 0.0
        %2765 = vmatpush1.msra.mxu0 0.0
        %2766 = vmatprep.subr.mxu0 0.0
        %2767 = vmatpush1.msra.mxu0 0.0
        %2768 = vmatprep.subr.mxu0 0.0
        %2769 = vmatpush1.msra.mxu0 0.0
        %2770 = vmatprep.subr.mxu0 0.0
        %2771 = vmatpush1.msra.mxu0 0.0
        %2772 = vmatprep.subr.mxu0 0.0
        %2773 = vmatpush1.msra.mxu0 0.0
        %2774 = vmatprep.mubr.f32.mxu0 0.0
        %2775 = vmatmul.mubr.f32.gmra.mrb[0].mxu0 %v2683
        %v2776 = vpop.f32.mrb[0].mxu0
        %v2777 = vadd.f32 %v2708, %v2776
        %v2778 = vpop.f32.mrb[0].mxu0
        %2779 = vmatprep.mubr.f32.mxu0 0.0
        %2780 = vmatmul.mubr.f32.gmra.mrb[0].mxu0 %v2684
        %v2781 = vpop.f32.mrb[0].mxu0
        %v2782 = vadd.f32 %v2708, %v2781
        %v2783 = vpop.f32.mrb[0].mxu0
        %2784 = vmatprep.mubr.f32.mxu0 0.0
        %2785 = vmatmul.mubr.f32.gmra.mrb[0].mxu0 %v2685
        %v2786 = vpop.f32.mrb[0].mxu0
        %v2787 = vadd.f32 %v2708, %v2786
        %v2788 = vpop.f32.mrb[0].mxu0
        %2789 = vmatprep.mubr.f32.mxu0 0.0
        %2790 = vmatmul.mubr.f32.gmra.mrb[0].mxu0 %v2686
        %v2791 = vpop.f32.mrb[0].mxu0
        %v2792 = vadd.f32 %v2708, %v2791
        %v2793 = vpop.f32.mrb[0].mxu0
        %2794 = vdwg.mxu0
        %2795 = vmax.xlane.f32.xlu0 %v2777
        %v2796 = vpop.xlane.xlu0 %2795
        %2797 = vmax.xlane.f32.xlu0 %v2782
        %v2798 = vpop.xlane.xlu0 %2797
        %2799 = vmax.xlane.f32.xlu0 %v2787
        %v2800 = vpop.xlane.xlu0 %2799
        %2801 = vmax.xlane.f32.xlu0 %v2792
        %v2802 = vpop.xlane.xlu0 %2801
        %v2803 = vsub.f32 %v2777, %v2796
        %v2804 = vsub.f32 %v2782, %v2798
        %v2805 = vsub.f32 %v2787, %v2800
        %v2806 = vsub.f32 %v2792, %v2802
        %v2807 = vmul.f32 %v2803, 1.442695
        %v2808 = vpow.pop %v2807
        %v2809 = vmul.f32 %v2804, 1.442695
        %v2810 = vpow.pop %v2809
        %v2811 = vmul.f32 %v2805, 1.442695
        %v2812 = vpow.pop %v2811
        %v2813 = vmul.f32 %v2806, 1.442695
        %v2814 = vpow.pop %v2813
        %2815 = vadd.xlane.f32.xlu0 %v2808
        %v2816 = vpop.xlane.xlu0 %2815
        %2817 = vadd.xlane.f32.xlu0 %v2810
        %v2818 = vpop.xlane.xlu0 %2817
        %2819 = vadd.xlane.f32.xlu0 %v2812
        %v2820 = vpop.xlane.xlu0 %2819
        %2821 = vadd.xlane.f32.xlu0 %v2814
        %v2822 = vpop.xlane.xlu0 %2821
        %v2823 = vrcp.pop %v2816
        %v2824 = vmul.f32 %v2808, %v2823
        %v2825 = vrcp.pop %v2818
        %v2826 = vmul.f32 %v2810, %v2825
        %v2827 = vrcp.pop %v2820
        %v2828 = vmul.f32 %v2812, %v2827
        %v2829 = vrcp.pop %v2822
        %v2830 = vmul.f32 %v2814, %v2829
        %v2831 = vld [vmem:[%s5] sm:$0xff]
        %v2832 = vld [vmem:[%s5 + $0x8] sm:$0xff]
        %v2833 = vld [vmem:[%s5 + $0x10] sm:$0xff]
        %v2834 = vld [vmem:[%s5 + $0x18] sm:$0xff]
        %v2835 = vld [vmem:[%s5 + $0x20] sm:$0xff]
        %v2836 = vld [vmem:[%s5 + $0x28] sm:$0xff]
        %v2837 = vld [vmem:[%s5 + $0x30] sm:$0xff]
        %v2838 = vld [vmem:[%s5 + $0x38] sm:$0xff]
        %v2839 = vld [vmem:[%s5 + $0x40] sm:$0xff]
        %v2840 = vld [vmem:[%s5 + $0x48] sm:$0xff]
        %v2841 = vld [vmem:[%s5 + $0x50] sm:$0xff]
        %v2842 = vld [vmem:[%s5 + $0x58] sm:$0xff]
        %v2843 = vld [vmem:[%s5 + $0x60] sm:$0xff]
        %v2844 = vld [vmem:[%s5 + $0x68] sm:$0xff]
        %v2845 = vld [vmem:[%s5 + $0x70] sm:$0xff]
        %v2846 = vld [vmem:[%s5 + $0x78] sm:$0xff]
        %2847 = vmatprep.subr.mxu0 0.0
        %2848 = vmatpush1.msra.mxu0 %v2831
        %2849 = vmatprep.subr.mxu0 0.0
        %2850 = vmatpush1.msra.mxu0 %v2832
        %2851 = vmatprep.subr.mxu0 0.0
        %2852 = vmatpush1.msra.mxu0 %v2833
        %2853 = vmatprep.subr.mxu0 0.0
        %2854 = vmatpush1.msra.mxu0 %v2834
        %2855 = vmatprep.subr.mxu0 0.0
        %2856 = vmatpush1.msra.mxu0 %v2835
        %2857 = vmatprep.subr.mxu0 0.0
        %2858 = vmatpush1.msra.mxu0 %v2836
        %2859 = vmatprep.subr.mxu0 0.0
        %2860 = vmatpush1.msra.mxu0 %v2837
        %2861 = vmatprep.subr.mxu0 0.0
        %2862 = vmatpush1.msra.mxu0 %v2838
        %2863 = vmatprep.subr.mxu0 0.0
        %2864 = vmatpush1.msra.mxu0 %v2839
        %2865 = vmatprep.subr.mxu0 0.0
        %2866 = vmatpush1.msra.mxu0 %v2840
        %2867 = vmatprep.subr.mxu0 0.0
        %2868 = vmatpush1.msra.mxu0 %v2841
        %2869 = vmatprep.subr.mxu0 0.0
        %2870 = vmatpush1.msra.mxu0 %v2842
        %2871 = vmatprep.subr.mxu0 0.0
        %2872 = vmatpush1.msra.mxu0 %v2843
        %2873 = vmatprep.subr.mxu0 0.0
        %2874 = vmatpush1.msra.mxu0 %v2844
        %2875 = vmatprep.subr.mxu0 0.0
        %2876 = vmatpush1.msra.mxu0 %v2845
        %2877 = vmatprep.subr.mxu0 0.0
        %2878 = vmatpush1.msra.mxu0 %v2846
        %2879 = vmatprep.subr.mxu0 0.0
        %2880 = vmatpush1.msra.mxu0 0.0
        %2881 = vmatprep.subr.mxu0 0.0
        %2882 = vmatpush1.msra.mxu0 0.0
        %2883 = vmatprep.subr.mxu0 0.0
        %2884 = vmatpush1.msra.mxu0 0.0
        %2885 = vmatprep.subr.mxu0 0.0
        %2886 = vmatpush1.msra.mxu0 0.0
        %2887 = vmatprep.subr.mxu0 0.0
        %2888 = vmatpush1.msra.mxu0 0.0
        %2889 = vmatprep.subr.mxu0 0.0
        %2890 = vmatpush1.msra.mxu0 0.0
        %2891 = vmatprep.subr.mxu0 0.0
        %2892 = vmatpush1.msra.mxu0 0.0
        %2893 = vmatprep.subr.mxu0 0.0
        %2894 = vmatpush1.msra.mxu0 0.0
        %2895 = vmatprep.subr.mxu0 0.0
        %2896 = vmatpush1.msra.mxu0 0.0
        %2897 = vmatprep.subr.mxu0 0.0
        %2898 = vmatpush1.msra.mxu0 0.0
        %2899 = vmatprep.subr.mxu0 0.0
        %2900 = vmatpush1.msra.mxu0 0.0
        %2901 = vmatprep.subr.mxu0 0.0
        %2902 = vmatpush1.msra.mxu0 0.0
        %2903 = vmatprep.subr.mxu0 0.0
        %2904 = vmatpush1.msra.mxu0 0.0
        %2905 = vmatprep.subr.mxu0 0.0
        %2906 = vmatpush1.msra.mxu0 0.0
        %2907 = vmatprep.subr.mxu0 0.0
        %2908 = vmatpush1.msra.mxu0 0.0
        %2909 = vmatprep.subr.mxu0 0.0
        %2910 = vmatpush1.msra.mxu0 0.0
        %2911 = vmatprep.mubr.f32.mxu0 0.0
        %2912 = vmatmul.mubr.f32.gmra.mrb[0].mxu0 %v2824
        %v2913 = vpop.f32.mrb[0].mxu0
        %v2914 = vadd.f32 0.0, %v2913
        %v2915 = vpop.f32.mrb[0].mxu0
        %2916 = vmatprep.mubr.f32.mxu0 0.0
        %2917 = vmatmul.mubr.f32.gmra.mrb[0].mxu0 %v2826
        %v2918 = vpop.f32.mrb[0].mxu0
        %v2919 = vadd.f32 0.0, %v2918
        %v2920 = vpop.f32.mrb[0].mxu0
        %2921 = vmatprep.mubr.f32.mxu0 0.0
        %2922 = vmatmul.mubr.f32.gmra.mrb[0].mxu0 %v2828
        %v2923 = vpop.f32.mrb[0].mxu0
        %v2924 = vadd.f32 0.0, %v2923
        %v2925 = vpop.f32.mrb[0].mxu0
        %2926 = vmatprep.mubr.f32.mxu0 0.0
        %2927 = vmatmul.mubr.f32.gmra.mrb[0].mxu0 %v2830
        %v2928 = vpop.f32.mrb[0].mxu0
        %v2929 = vadd.f32 0.0, %v2928
        %v2930 = vpop.f32.mrb[0].mxu0
        %2931 = vdwg.mxu0
        %v2932 = vmax.f32 %v2914, 5e-08
        %v2933 = vmax.f32 %v2919, 5e-08
        %v2934 = vmax.f32 %v2924, 5e-08
        %v2935 = vmax.f32 %v2929, 5e-08
        %v2936 = vmin.f32 %v2932, 0.99999994
        %v2937 = vmin.f32 %v2933, 0.99999994
        %v2938 = vmin.f32 %v2934, 0.99999994
        %v2939 = vmin.f32 %v2935, 0.99999994
        %2940 = vst [vmem:[%s463] sm:$0xff] %v2936
        %2941 = vst [vmem:[%s463 + $0x8] sm:$0xff] %v2937
        %2942 = vst [vmem:[%s463 + $0x10] sm:$0xff] %v2938
        %2943 = vst [vmem:[%s463 + $0x18] sm:$0xff] %v2939
        %s2944 = smul.u32 4, %s17
        %p2945 = scmp.lt.s32.totalorder %s2944, 7
        %s2946 = scalar_select %p2945, %s2944, 7
        %s2947 = smul.addr %s2946, 8
        %s2948 = scalar_lea.vmem %s6, %s2947
        // Predicated region
        $region68: #{ndp_forward.1} parent=62 // pred_check
          %p2949 = pneg %p166
        $region69: #{ndp_forward.1} parent=62 // pred_check_branch
          %2951 = sbr.rel (%p2949) target = $region71
        $region70: #{ndp_forward.1} parent=62 // pred_region
          %s2952 = smul.u32 4, %s17
        $region71: #{ndp_forward.1} parent=62 // pred_fallthru
          _
      $region63: #{ndp_forward.1} parent=5 // pred_fallthru
        _
      %p2953 = scmp.le.s32.totalorder 2, %s12
      // Predicated region
      $region72: #{ndp_forward.1} parent=5 // pred_check
        %p2954 = pneg %p2953
      $region73: #{ndp_forward.1} parent=5 // pred_check_branch
        %2956 = sbr.rel (%p2954) target = $region75
      $region74: #{ndp_forward.1} parent=5 // pred_region
        %s2957 = ssub.s32 %s12, 2
        // Predicated region
        $region76: #{ndp_forward.1} parent=74 // pred_check
          %p2958 = pneg %p172
        $region77: #{ndp_forward.1} parent=74 // pred_check_branch
          %2960 = sbr.rel (%p2958) target = $region79
        $region78: #{ndp_forward.1} parent=74 // pred_region
          %s2961 = smul.u32 4, %s18
          %p2962 = scmp.lt.s32.totalorder %s2961, 7
          %s2963 = scalar_select %p2962, %s2961, 7
          %s2964 = smul.addr %s2963, 8
          %s2965 = scalar_lea.vmem %s6, %s2964
        $region79: #{ndp_forward.1} parent=74 // pred_fallthru
          _
      $region75: #{ndp_forward.1} parent=5 // pred_fallthru
        _
    $region6: #{ndp_forward.1} parent=1 // loop_footer
      %s16 = sadd.s32 1, %s12
    $region7: #{ndp_forward.1} parent=1 // loop_footer_branch
      %11 = sbr.rel target = $region3
    $region8: #{ndp_forward.1} parent=1 // loop_exit
      _

</llo_original>
